<compile_context>
chip_gen: v7x
topology: tpu7x:2x2x1
jax: 0.10.0
libtpu: 0.0.40
codegen_flags: <defaults>
</compile_context>

<pallas_src>
import functools

import jax
import jax.numpy as jnp
from jax.experimental import pallas as pl
from jax.experimental.pallas import tpu as pltpu

EPS = 1e-5                    # nn.LayerNorm default eps
NEG_INF = -1e30               # large finite negative for masked keys / classes
SQRT_2_OVER_PI = 0.7978845608028654


# ----------------------------- in-kernel math helpers -----------------------------

def _layernorm(x, g, b):
    mu = jnp.mean(x, axis=-1, keepdims=True)
    var = jnp.mean((x - mu) ** 2, axis=-1, keepdims=True)
    return (x - mu) * jax.lax.rsqrt(var + EPS) * g + b


def _softmax_approx(x):
    # max-subtracted softmax; denominator reciprocal on the EUP (approx mode).
    m = jnp.max(x, axis=-1, keepdims=True)
    e = jnp.exp(x - m)
    return e * pl.reciprocal(jnp.sum(e, axis=-1, keepdims=True), approx=True)


def _softmax_exact(x):
    m = jnp.max(x, axis=-1, keepdims=True)
    e = jnp.exp(x - m)
    return e / jnp.sum(e, axis=-1, keepdims=True)


def _gelu_tanh(x):
    # TODO(synk): PyTorch nn.GELU() default is exact erf; the tanh approximation
    # differs by <1e-3, below the bf16 weight-cast noise floor, and moves the
    # work onto the EUP slot instead of ~10 VALU ops per element.
    return 0.5 * x * (1.0 + jnp.tanh(SQRT_2_OVER_PI * (x + 0.044715 * (x * x * x))))


# ----------------------------- small host-side helpers -----------------------------

def _largest_divisor_leq(n, cap):
    best = 1
    for d in range(1, n + 1):
        if n % d == 0 and d <= cap:
            best = d
    return best


def _head_group(num_heads, head_dim):
    # largest divisor of num_heads whose combined width stays <= 128 lanes
    g = 1
    for c in range(1, num_heads + 1):
        if num_heads % c == 0 and c * head_dim <= 128:
            g = c
    return g


def _vmem_limit_bytes():
    # Budget per chip generation: ~80% of physical VMEM, capped at 100 MiB.
    # (v7x: 64 MiB physical -> ~51 MiB; v5e/v6e: 128 MiB -> 100 MiB.)
    try:
        cap = pltpu.get_tpu_info().vmem_capacity_bytes
        return int(min(100 * 1024 * 1024, cap * 0.8))
    except Exception:
        return 48 * 1024 * 1024   # safe on all generations


# ----------------------------- Pallas kernels -----------------------------

def patch_embed_kernel(p_ref, ln1g, ln1b, w, bias, ln2g, ln2b, o_ref):
    G, N, P = p_ref.shape
    D = o_ref.shape[-1]
    x = p_ref[...].reshape(G * N, P)
    x = _layernorm(x, ln1g[...], ln1b[...])
    x = jnp.dot(x.astype(jnp.bfloat16), w[...],
                preferred_element_type=jnp.float32) + bias[...]
    o_ref[...] = _layernorm(x, ln2g[...], ln2b[...]).reshape(G, N, D)


def transformer_kernel(x_ref, small_ref, wq, wk, wv, wo, w1, w2,
                       o_ref, attn_buf, q_buf, k_buf, v_buf,
                       *, num_heads, head_dim, head_group, seq_real, hidden):
    """One (batch-group, layer) grid step of the fused transformer stack.

    The residual stream lives in the resident output block o_ref (its block
    index is constant along the layer axis), so activations never leave VMEM
    between layers of a batch group.
    """
    layer = pl.program_id(1)
    Bb, S, D = o_ref.shape
    rows = Bb * S

    @pl.when(layer == 0)
    def _():
        o_ref[...] = x_ref[...]

    x = o_ref[...].reshape(rows, D)                              # residual, f32

    # tiny per-layer params packed into one (8, maxw) slab
    sm = small_ref[0]
    ln_a_g, ln_a_b = sm[0:1, :D], sm[1:2, :D]
    bo = sm[2:3, :D]
    ln_f_g, ln_f_b = sm[3:4, :D], sm[4:5, :D]
    b2 = sm[5:6, :D]
    b1 = sm[6:7, :hidden]

    # ----- Attention (pre-LN, residual add); scale already folded into wq -----
    h = _layernorm(x, ln_a_g, ln_a_b).astype(jnp.bfloat16)
    q_buf[...] = jnp.dot(h, wq[0], preferred_element_type=jnp.float32).astype(jnp.bfloat16)
    k_buf[...] = jnp.dot(h, wk[0], preferred_element_type=jnp.float32).astype(jnp.bfloat16)
    v_buf[...] = jnp.dot(h, wv[0], preferred_element_type=jnp.float32).astype(jnp.bfloat16)

    # additive key mask: 0 for real keys, NEG_INF for padded key positions
    key_mask = jnp.where(
        jax.lax.broadcasted_iota(jnp.int32, (1, S), 1) < seq_real,
        0.0, NEG_INF).astype(jnp.float32)

    dn = (((1,), (1,)), ((), ()))                                # q @ k^T
    gw = head_group * head_dim

    def one_batch(b, carry):
        r0 = pl.multiple_of(b * S, 16)                           # S is a multiple of 16
        qb = q_buf[pl.ds(r0, S), :]
        kb = k_buf[pl.ds(r0, S), :]
        vb = v_buf[pl.ds(r0, S), :]
        for g in range(num_heads // head_group):
            outs = []
            for j in range(head_group):
                c0 = (g * head_group + j) * head_dim
                qh = qb[:, c0:c0 + head_dim]
                kh = kb[:, c0:c0 + head_dim]
                vh = vb[:, c0:c0 + head_dim]
                s = jax.lax.dot_general(qh, kh, dn, preferred_element_type=jnp.float32)
                p = _softmax_approx(s + key_mask).astype(jnp.bfloat16)
                outs.append(jnp.dot(p, vh,
                                    preferred_element_type=jnp.float32).astype(jnp.bfloat16))
            og = outs[0] if head_group == 1 else jnp.concatenate(outs, axis=-1)
            attn_buf[pl.ds(r0, S), g * gw:(g + 1) * gw] = og     # lane-dense store
        return carry

    jax.lax.fori_loop(0, Bb, one_batch, 0)

    resid = o_ref[...].reshape(rows, D)                          # reload residual
    x = resid + jnp.dot(attn_buf[...], wo[0], preferred_element_type=jnp.float32) + bo

    # ----- FeedForward (pre-LN, residual add) -----
    h2 = _layernorm(x, ln_f_g, ln_f_b).astype(jnp.bfloat16)
    f = jnp.dot(h2, w1[0], preferred_element_type=jnp.float32) + b1
    f = _gelu_tanh(f).astype(jnp.bfloat16)
    x = x + jnp.dot(f, w2[0], preferred_element_type=jnp.float32) + b2

    o_ref[...] = x.reshape(Bb, S, D)


def head_kernel(x_ref, lng, lnb, w, b, o_ref):
    # final transformer LayerNorm (CLS tokens only -- LN is per-token) then
    # classifier + softmax over the (padded) class dim; padded logits carry a
    # -1e30 bias so their probability mass is exactly zero.
    cls = _layernorm(x_ref[...], lng[...], lnb[...])
    logits = jnp.dot(cls.astype(jnp.bfloat16), w[...],
                     preferred_element_type=jnp.float32) + b[...]
    o_ref[...] = _softmax_exact(logits)


# ----------------------------- pallas_call wrappers -----------------------------

def patch_embed(patches, pk, *, block_imgs=None):
    B, N, P = patches.shape
    D = pk["w_patch"].shape[1]
    if block_imgs is None:
        block_imgs = _largest_divisor_leq(B, max(1, 1024 // N)) if N % 8 == 0 else 1

    def full(a):
        return pl.BlockSpec(a.shape, lambda b: (0,) * a.ndim)

    args = (pk["ln_patch_g"], pk["ln_patch_b"], pk["w_patch"], pk["b_patch"],
            pk["ln_emb_g"], pk["ln_emb_b"])
    return pl.pallas_call(
        patch_embed_kernel,
        out_shape=jax.ShapeDtypeStruct((B, N, D), jnp.float32),
        grid=(B // block_imgs,),
        in_specs=[pl.BlockSpec((block_imgs, N, P), lambda b: (b, 0, 0))]
                 + [full(a) for a in args],
        out_specs=pl.BlockSpec((block_imgs, N, D), lambda b: (b, 0, 0)),
        compiler_params=pltpu.CompilerParams(dimension_semantics=("parallel",)),
    )(patches, *args)


def vit_transformer(x, pk, *, num_heads, seq_real, block_b=None):
    """Fused transformer stack: grid = (batch_groups, depth)."""
    B, S, D = x.shape
    depth = pk["wq"].shape[0]
    hd = D // num_heads
    hidden = pk["w1"].shape[2]
    if block_b is None:
        # big batch groups amortize weight streaming (the dominant HBM cost);
        # ~1024 activation rows per group keeps scratch comfortably in VMEM.
        block_b = _largest_divisor_leq(B, max(1, 1024 // S))
    assert B % block_b == 0
    rows = block_b * S
    head_group = _head_group(num_heads, hd)

    kern = functools.partial(transformer_kernel, num_heads=num_heads, head_dim=hd,
                             head_group=head_group, seq_real=seq_real, hidden=hidden)
    names = ("small", "wq", "wk", "wv", "wo", "w1", "w2")
    weights = [pk[n] for n in names]                 # each stacked (depth, r, c)
    w_specs = [pl.BlockSpec((1,) + a.shape[1:], lambda b, l: (l, 0, 0))
               for a in weights]

    return pl.pallas_call(
        kern,
        out_shape=jax.ShapeDtypeStruct((B, S, D), jnp.float32),
        grid=(B // block_b, depth),
        in_specs=[pl.BlockSpec((block_b, S, D), lambda b, l: (b, 0, 0))] + w_specs,
        out_specs=pl.BlockSpec((block_b, S, D), lambda b, l: (b, 0, 0)),
        scratch_shapes=[pltpu.VMEM((rows, D), jnp.bfloat16),   # attention output
                        pltpu.VMEM((rows, D), jnp.bfloat16),   # q
                        pltpu.VMEM((rows, D), jnp.bfloat16),   # k
                        pltpu.VMEM((rows, D), jnp.bfloat16)],  # v
        compiler_params=pltpu.CompilerParams(
            dimension_semantics=("parallel", "arbitrary"),
            vmem_limit_bytes=_vmem_limit_bytes()),
    )(x, *weights)


def classifier_head(x_cls, pk):
    B, D = x_cls.shape
    Cp = pk["w_head"].shape[1]                        # already padded to 128 mult
    bb = B
    if B > 512:
        for d in range(1, B + 1):                     # tile batch if very large
            if B % d == 0 and d <= 512 and d % 8 == 0:
                bb = d

    def full(a):
        return pl.BlockSpec(a.shape, lambda i: (0,) * a.ndim)

    args = (pk["ln_out_g"], pk["ln_out_b"], pk["w_head"], pk["b_head"])
    return pl.pallas_call(
        head_kernel,
        out_shape=jax.ShapeDtypeStruct((B, Cp), jnp.float32),
        grid=(B // bb,),
        in_specs=[pl.BlockSpec((bb, D), lambda i: (i, 0))] + [full(a) for a in args],
        out_specs=pl.BlockSpec((bb, Cp), lambda i: (i, 0)),
        compiler_params=pltpu.CompilerParams(dimension_semantics=("parallel",)),
    )(x_cls, *args)


# ----------------------------- parameters -----------------------------

def init_params(key, *, channels, patch, dim, depth, hidden_dim, num_classes, num_patches):
    patch_dim = channels * patch * patch
    keys = jax.random.split(key, depth + 8)

    def lin(k, din, dout):
        kw, kb = jax.random.split(k)
        w = jax.random.normal(kw, (din, dout), jnp.float32) * (din ** -0.5)
        b = jax.random.normal(kb, (1, dout), jnp.float32) * 0.02
        return w, b

    p = {
        "ln_patch_g": jnp.ones((1, patch_dim), jnp.float32),
        "ln_patch_b": jnp.zeros((1, patch_dim), jnp.float32),
        "ln_emb_g": jnp.ones((1, dim), jnp.float32),
        "ln_emb_b": jnp.zeros((1, dim), jnp.float32),
        "pos": jax.random.normal(keys[0], (1, num_patches + 1, dim), jnp.float32),
        "cls": jax.random.normal(keys[1], (1, 1, dim), jnp.float32),
        "ln_out_g": jnp.ones((1, dim), jnp.float32),
        "ln_out_b": jnp.zeros((1, dim), jnp.float32),
    }
    p["w_patch"], p["b_patch"] = lin(keys[2], patch_dim, dim)
    p["w_head"], p["b_head"] = lin(keys[3], dim, num_classes)

    layers = []
    for l in range(depth):
        k = jax.random.split(keys[4 + l], 6)
        layer = {
            "ln_a_g": jnp.ones((1, dim), jnp.float32),
            "ln_a_b": jnp.zeros((1, dim), jnp.float32),
            "wq": jax.random.normal(k[0], (dim, dim), jnp.float32) * (dim ** -0.5),
            "wk": jax.random.normal(k[1], (dim, dim), jnp.float32) * (dim ** -0.5),
            "wv": jax.random.normal(k[2], (dim, dim), jnp.float32) * (dim ** -0.5),
            "ln_f_g": jnp.ones((1, dim), jnp.float32),
            "ln_f_b": jnp.zeros((1, dim), jnp.float32),
        }
        layer["wo"], layer["bo"] = lin(k[3], dim, dim)
        layer["w1"], layer["b1"] = lin(k[4], dim, hidden_dim)
        layer["w2"], layer["b2"] = lin(k[5], hidden_dim, dim)
        layers.append(layer)
    p["layers"] = layers
    return p


def pack_params(p, *, num_heads):
    """Stack per-layer weights along depth, cast matmul weights to bf16, fold
    the attention scale into wq, pack tiny per-layer params into one tensor,
    and pad the classifier classes to a lane-dense multiple of 128."""
    dim = p["w_patch"].shape[1]
    hidden = p["layers"][0]["w1"].shape[1]
    scale = (dim // num_heads) ** (-0.5)
    bf = lambda a: a.astype(jnp.bfloat16)

    pk = {
        "ln_patch_g": p["ln_patch_g"], "ln_patch_b": p["ln_patch_b"],
        "w_patch": bf(p["w_patch"]), "b_patch": p["b_patch"],
        "ln_emb_g": p["ln_emb_g"], "ln_emb_b": p["ln_emb_b"],
        "pos": p["pos"], "cls": p["cls"],
        "ln_out_g": p["ln_out_g"], "ln_out_b": p["ln_out_b"],
    }

    # classifier head: pad classes; padded cols get zero weight + NEG_INF bias
    C = p["w_head"].shape[1]
    Cp = ((C + 127) // 128) * 128
    pk["w_head"] = bf(jnp.pad(p["w_head"], ((0, 0), (0, Cp - C))))
    pk["b_head"] = jnp.pad(p["b_head"], ((0, 0), (0, Cp - C)), constant_values=NEG_INF)

    L = p["layers"]
    stack = lambda name: jnp.stack([l[name] for l in L], axis=0)
    pk["wq"] = bf(stack("wq") * scale)              # scale folded into q projection
    pk["wk"] = bf(stack("wk"))
    pk["wv"] = bf(stack("wv"))
    pk["wo"] = bf(stack("wo"))
    pk["w1"] = bf(stack("w1"))
    pk["w2"] = bf(stack("w2"))

    # pack all tiny per-layer params into one (depth, 8, maxw) tensor
    maxw = max(dim, hidden)

    def row(v):
        v = v.reshape(-1).astype(jnp.float32)
        return jnp.pad(v, (0, maxw - v.shape[0]))

    small = []
    for l in L:
        rows = [row(l["ln_a_g"]), row(l["ln_a_b"]), row(l["bo"]),
                row(l["ln_f_g"]), row(l["ln_f_b"]), row(l["b2"]), row(l["b1"]),
                jnp.zeros((maxw,), jnp.float32)]
        small.append(jnp.stack(rows, axis=0))
    pk["small"] = jnp.stack(small, axis=0)          # (depth, 8, maxw) f32
    return pk


# ----------------------------- forward -----------------------------

def vit_forward(x_nchw, pk, *, patch_size, num_heads, num_classes, block_b=None):
    B, C, H, W = x_nchw.shape
    ph = pw = patch_size
    h, w = H // ph, W // pw
    # Rearrange('b c (h h1) (w w1) -> b (h w) (h1 w1 c)') -- glue reshape in JAX
    patches = x_nchw.reshape(B, C, h, ph, w, pw)
    patches = patches.transpose(0, 2, 4, 3, 5, 1).reshape(B, h * w, ph * pw * C)

    x = patch_embed(patches, pk)                                 # (B, N, D)
    D = x.shape[-1]
    cls = jnp.broadcast_to(pk["cls"], (B, 1, D))
    x = jnp.concatenate([cls, x], axis=1) + pk["pos"]            # (B, N+1, D)
    # TODO(synk): nn.Dropout layers are identity here (inference semantics / p=0.0)

    # pad sequence to a multiple of 16 (clean f32 and packed-bf16 sublane tiles);
    # padded key positions are masked inside the attention softmax.
    seq_real = x.shape[1]
    seq_pad = ((seq_real + 15) // 16) * 16
    if seq_pad != seq_real:
        x = jnp.pad(x, ((0, 0), (0, seq_pad - seq_real), (0, 0)))

    x = vit_transformer(x, pk, num_heads=num_heads, seq_real=seq_real,
                        block_b=block_b)                         # (B, S_pad, D)
    probs = classifier_head(x[:, 0, :], pk)                      # (B, C_pad) softmax
    return probs[:, :num_classes]


# ----------------------------- demo -----------------------------

if __name__ == "__main__":
    B, C, IMG, PATCH = 2, 4, 16, 4
    DIM, DEPTH, HEADS, HIDDEN, NUM_CLASSES = 32, 2, 4, 64, 10
    num_patches = (IMG // PATCH) * (IMG // PATCH)

    key = jax.random.PRNGKey(0)
    kx, kp = jax.random.split(key)
    x = jax.random.normal(kx, (B, C, IMG, IMG), jnp.float32)     # NCHW, like PyTorch
    params = init_params(kp, channels=C, patch=PATCH, dim=DIM, depth=DEPTH,
                         hidden_dim=HIDDEN, num_classes=NUM_CLASSES,
                         num_patches=num_patches)
    packed = pack_params(params, num_heads=HEADS)

    # block_b auto-picks the largest batch group (<= ~1024 rows) to amortize
    # weight streaming; at tiny demo shapes this is block_b = B.
    fwd = jax.jit(functools.partial(vit_forward, patch_size=PATCH,
                                    num_heads=HEADS, num_classes=NUM_CLASSES))
    out = fwd(x, packed)
    jax.block_until_ready(out)
    assert out.shape == (B, NUM_CLASSES)
    assert bool(jnp.all(jnp.isfinite(out)))
    assert bool(jnp.all(jnp.abs(jnp.sum(out, axis=-1) - 1.0) < 1e-2))
    print("KERNEL_OK")
</pallas_src>

<mosaic_0001>
module attributes {stable_mosaic.version = 11 : i64} {
  func.func @patch_embed_kernel(%arg0: i32, %arg1: memref<2x16x64xf32, #tpu.memory_space<vmem>>, %arg2: memref<1x64xf32, #tpu.memory_space<vmem>>, %arg3: memref<1x64xf32, #tpu.memory_space<vmem>>, %arg4: memref<64x32xbf16, #tpu.memory_space<vmem>>, %arg5: memref<1x32xf32, #tpu.memory_space<vmem>>, %arg6: memref<1x32xf32, #tpu.memory_space<vmem>>, %arg7: memref<1x32xf32, #tpu.memory_space<vmem>>, %arg8: memref<2x16x32xf32, #tpu.memory_space<vmem>>) attributes {dimension_semantics = [#tpu.dimension_semantics<parallel>], iteration_bounds = array<i64: 1>, scalar_prefetch = 0 : i64, scratch_operands = 0 : i64, tpu.core_type = #tpu.core_type<tc>, window_params = [{transform_indices = @transform_0, window_bounds = array<i64: 2, 16, 64>}, {pipeline_mode = #tpu.pipeline_mode<synchronous>, transform_indices = @transform_1, window_bounds = array<i64: 1, 64>}, {pipeline_mode = #tpu.pipeline_mode<synchronous>, transform_indices = @transform_2, window_bounds = array<i64: 1, 64>}, {pipeline_mode = #tpu.pipeline_mode<synchronous>, transform_indices = @transform_3, window_bounds = array<i64: 64, 32>}, {pipeline_mode = #tpu.pipeline_mode<synchronous>, transform_indices = @transform_4, window_bounds = array<i64: 1, 32>}, {pipeline_mode = #tpu.pipeline_mode<synchronous>, transform_indices = @transform_5, window_bounds = array<i64: 1, 32>}, {pipeline_mode = #tpu.pipeline_mode<synchronous>, transform_indices = @transform_6, window_bounds = array<i64: 1, 32>}, {transform_indices = @transform_7, window_bounds = array<i64: 2, 16, 32>}]} {
    %c0 = arith.constant 0 : index
    %c0_0 = arith.constant 0 : index
    %c0_1 = arith.constant 0 : index
    %0 = vector.load %arg1[%c0, %c0_0, %c0_1] : memref<2x16x64xf32, #tpu.memory_space<vmem>>, vector<2x16x64xf32>
    %1 = vector.shape_cast %0 : vector<2x16x64xf32> to vector<32x64xf32>
    %c0_2 = arith.constant 0 : index
    %c0_3 = arith.constant 0 : index
    %2 = vector.load %arg2[%c0_2, %c0_3] : memref<1x64xf32, #tpu.memory_space<vmem>>, vector<1x64xf32>
    %c0_4 = arith.constant 0 : index
    %c0_5 = arith.constant 0 : index
    %3 = vector.load %arg3[%c0_4, %c0_5] : memref<1x64xf32, #tpu.memory_space<vmem>>, vector<1x64xf32>
    %cst = arith.constant dense<0.000000e+00> : vector<32xf32>
    %4 = vector.multi_reduction <add>, %1, %cst [1] : vector<32x64xf32> to vector<32xf32>
    %5 = vector.shape_cast %4 : vector<32xf32> to vector<32x1xf32>
    %cst_6 = arith.constant 6.400000e+01 : f32
    %6 = vector.broadcast %cst_6 : f32 to vector<32x1xf32>
    %7 = arith.divf %5, %6 : vector<32x1xf32>
    %8 = vector.broadcast %7 : vector<32x1xf32> to vector<32x64xf32>
    %9 = arith.subf %1, %8 : vector<32x64xf32>
    %10 = arith.mulf %9, %9 : vector<32x64xf32>
    %cst_7 = arith.constant dense<0.000000e+00> : vector<32xf32>
    %11 = vector.multi_reduction <add>, %10, %cst_7 [1] : vector<32x64xf32> to vector<32xf32>
    %12 = vector.shape_cast %11 : vector<32xf32> to vector<32x1xf32>
    %cst_8 = arith.constant 6.400000e+01 : f32
    %13 = vector.broadcast %cst_8 : f32 to vector<32x1xf32>
    %14 = arith.divf %12, %13 : vector<32x1xf32>
    %15 = vector.broadcast %7 : vector<32x1xf32> to vector<32x64xf32>
    %16 = arith.subf %1, %15 : vector<32x64xf32>
    %cst_9 = arith.constant 9.99999974E-6 : f32
    %17 = vector.broadcast %cst_9 : f32 to vector<32x1xf32>
    %18 = arith.addf %14, %17 : vector<32x1xf32>
    %19 = math.rsqrt %18 : vector<32x1xf32>
    %20 = vector.broadcast %19 : vector<32x1xf32> to vector<32x64xf32>
    %21 = arith.mulf %16, %20 : vector<32x64xf32>
    %22 = vector.broadcast %2 : vector<1x64xf32> to vector<32x64xf32>
    %23 = arith.mulf %21, %22 : vector<32x64xf32>
    %24 = vector.broadcast %3 : vector<1x64xf32> to vector<32x64xf32>
    %25 = arith.addf %23, %24 : vector<32x64xf32>
    %26 = arith.truncf %25 : vector<32x64xf32> to vector<32x64xbf16>
    %c0_10 = arith.constant 0 : index
    %c0_11 = arith.constant 0 : index
    %27 = vector.load %arg4[%c0_10, %c0_11] : memref<64x32xbf16, #tpu.memory_space<vmem>>, vector<64x32xbf16>
    %cst_12 = arith.constant dense<0.000000e+00> : vector<32x32xf32>
    %28 = tpu.matmul %26, %27, %cst_12 {dimension_numbers = #tpu.dot_dimension_numbers<[1], [0], [0], [1], [0, 0, 1, 1], [], []>} : vector<32x64xbf16>, vector<64x32xbf16>, vector<32x32xf32> -> vector<32x32xf32>
    %c0_13 = arith.constant 0 : index
    %c0_14 = arith.constant 0 : index
    %29 = vector.load %arg5[%c0_13, %c0_14] : memref<1x32xf32, #tpu.memory_space<vmem>>, vector<1x32xf32>
    %30 = vector.broadcast %29 : vector<1x32xf32> to vector<32x32xf32>
    %31 = arith.addf %28, %30 : vector<32x32xf32>
    %c0_15 = arith.constant 0 : index
    %c0_16 = arith.constant 0 : index
    %32 = vector.load %arg6[%c0_15, %c0_16] : memref<1x32xf32, #tpu.memory_space<vmem>>, vector<1x32xf32>
    %c0_17 = arith.constant 0 : index
    %c0_18 = arith.constant 0 : index
    %33 = vector.load %arg7[%c0_17, %c0_18] : memref<1x32xf32, #tpu.memory_space<vmem>>, vector<1x32xf32>
    %cst_19 = arith.constant dense<0.000000e+00> : vector<32xf32>
    %34 = vector.multi_reduction <add>, %31, %cst_19 [1] : vector<32x32xf32> to vector<32xf32>
    %35 = vector.shape_cast %34 : vector<32xf32> to vector<32x1xf32>
    %cst_20 = arith.constant 3.200000e+01 : f32
    %36 = vector.broadcast %cst_20 : f32 to vector<32x1xf32>
    %37 = arith.divf %35, %36 : vector<32x1xf32>
    %38 = vector.broadcast %37 : vector<32x1xf32> to vector<32x32xf32>
    %39 = arith.subf %31, %38 : vector<32x32xf32>
    %40 = arith.mulf %39, %39 : vector<32x32xf32>
    %cst_21 = arith.constant dense<0.000000e+00> : vector<32xf32>
    %41 = vector.multi_reduction <add>, %40, %cst_21 [1] : vector<32x32xf32> to vector<32xf32>
    %42 = vector.shape_cast %41 : vector<32xf32> to vector<32x1xf32>
    %cst_22 = arith.constant 3.200000e+01 : f32
    %43 = vector.broadcast %cst_22 : f32 to vector<32x1xf32>
    %44 = arith.divf %42, %43 : vector<32x1xf32>
    %45 = vector.broadcast %37 : vector<32x1xf32> to vector<32x32xf32>
    %46 = arith.subf %31, %45 : vector<32x32xf32>
    %cst_23 = arith.constant 9.99999974E-6 : f32
    %47 = vector.broadcast %cst_23 : f32 to vector<32x1xf32>
    %48 = arith.addf %44, %47 : vector<32x1xf32>
    %49 = math.rsqrt %48 : vector<32x1xf32>
    %50 = vector.broadcast %49 : vector<32x1xf32> to vector<32x32xf32>
    %51 = arith.mulf %46, %50 : vector<32x32xf32>
    %52 = vector.broadcast %32 : vector<1x32xf32> to vector<32x32xf32>
    %53 = arith.mulf %51, %52 : vector<32x32xf32>
    %54 = vector.broadcast %33 : vector<1x32xf32> to vector<32x32xf32>
    %55 = arith.addf %53, %54 : vector<32x32xf32>
    %56 = vector.shape_cast %55 : vector<32x32xf32> to vector<2x16x32xf32>
    %c0_24 = arith.constant 0 : index
    %c0_25 = arith.constant 0 : index
    %c0_26 = arith.constant 0 : index
    %57 = vector.load %arg8[%c0_24, %c0_25, %c0_26] : memref<2x16x32xf32, #tpu.memory_space<vmem>>, vector<2x16x32xf32>
    tpu.vector_store %arg8[%c0_24, %c0_25, %c0_26], %56 {strides = array<i32>} : memref<2x16x32xf32, #tpu.memory_space<vmem>>, vector<2x16x32xf32>,
    return
  }
  func.func @transform_0(%arg0: i32) -> (i32, i32, i32) {
    %c0_i32 = arith.constant 0 : i32
    %c0_i32_0 = arith.constant 0 : i32
    %c0_i32_1 = arith.constant 0 : i32
    return %arg0, %c0_i32, %c0_i32_0 : i32, i32, i32
  }
  func.func @transform_1(%arg0: i32) -> (i32, i32) {
    %c0_i32 = arith.constant 0 : i32
    %c0_i32_0 = arith.constant 0 : i32
    %c0_i32_1 = arith.constant 0 : i32
    return %c0_i32, %c0_i32_0 : i32, i32
  }
  func.func @transform_2(%arg0: i32) -> (i32, i32) {
    %c0_i32 = arith.constant 0 : i32
    %c0_i32_0 = arith.constant 0 : i32
    %c0_i32_1 = arith.constant 0 : i32
    return %c0_i32, %c0_i32_0 : i32, i32
  }
  func.func @transform_3(%arg0: i32) -> (i32, i32) {
    %c0_i32 = arith.constant 0 : i32
    %c0_i32_0 = arith.constant 0 : i32
    %c0_i32_1 = arith.constant 0 : i32
    return %c0_i32, %c0_i32_0 : i32, i32
  }
  func.func @transform_4(%arg0: i32) -> (i32, i32) {
    %c0_i32 = arith.constant 0 : i32
    %c0_i32_0 = arith.constant 0 : i32
    %c0_i32_1 = arith.constant 0 : i32
    return %c0_i32, %c0_i32_0 : i32, i32
  }
  func.func @transform_5(%arg0: i32) -> (i32, i32) {
    %c0_i32 = arith.constant 0 : i32
    %c0_i32_0 = arith.constant 0 : i32
    %c0_i32_1 = arith.constant 0 : i32
    return %c0_i32, %c0_i32_0 : i32, i32
  }
  func.func @transform_6(%arg0: i32) -> (i32, i32) {
    %c0_i32 = arith.constant 0 : i32
    %c0_i32_0 = arith.constant 0 : i32
    %c0_i32_1 = arith.constant 0 : i32
    return %c0_i32, %c0_i32_0 : i32, i32
  }
  func.func @transform_7(%arg0: i32) -> (i32, i32, i32) {
    %c0_i32 = arith.constant 0 : i32
    %c0_i32_0 = arith.constant 0 : i32
    %c0_i32_1 = arith.constant 0 : i32
    return %arg0, %c0_i32, %c0_i32_0 : i32, i32, i32
  }
}

module attributes {stable_mosaic.version = 11 : i64} {
  func.func @transformer_kernel(%arg0: i32, %arg1: i32, %arg2: memref<2x32x32xf32, #tpu.memory_space<vmem>>, %arg3: memref<1x8x64xf32, #tpu.memory_space<vmem>>, %arg4: memref<1x32x32xbf16, #tpu.memory_space<vmem>>, %arg5: memref<1x32x32xbf16, #tpu.memory_space<vmem>>, %arg6: memref<1x32x32xbf16, #tpu.memory_space<vmem>>, %arg7: memref<1x32x32xbf16, #tpu.memory_space<vmem>>, %arg8: memref<1x32x64xbf16, #tpu.memory_space<vmem>>, %arg9: memref<1x64x32xbf16, #tpu.memory_space<vmem>>, %arg10: memref<2x32x32xf32, #tpu.memory_space<vmem>>, %arg11: memref<64x32xbf16, #tpu.memory_space<vmem>>, %arg12: memref<64x32xbf16, #tpu.memory_space<vmem>>, %arg13: memref<64x32xbf16, #tpu.memory_space<vmem>>, %arg14: memref<64x32xbf16, #tpu.memory_space<vmem>>) attributes {dimension_semantics = [#tpu.dimension_semantics<parallel>, #tpu.dimension_semantics<arbitrary>], iteration_bounds = array<i64: 1, 2>, scalar_prefetch = 0 : i64, scratch_operands = 4 : i64, tpu.core_type = #tpu.core_type<tc>, window_params = [{transform_indices = @transform_0, window_bounds = array<i64: 2, 32, 32>}, {transform_indices = @transform_1, window_bounds = array<i64: 1, 8, 64>}, {transform_indices = @transform_2, window_bounds = array<i64: 1, 32, 32>}, {transform_indices = @transform_3, window_bounds = array<i64: 1, 32, 32>}, {transform_indices = @transform_4, window_bounds = array<i64: 1, 32, 32>}, {transform_indices = @transform_5, window_bounds = array<i64: 1, 32, 32>}, {transform_indices = @transform_6, window_bounds = array<i64: 1, 32, 64>}, {transform_indices = @transform_7, window_bounds = array<i64: 1, 64, 32>}, {transform_indices = @transform_8, window_bounds = array<i64: 2, 32, 32>}]} {
    %c0_i32 = arith.constant 0 : i32
    %0 = arith.cmpi eq, %arg1, %c0_i32 : i32
    %1 = arith.extui %0 : i1 to i32
    %c0_i32_0 = arith.constant 0 : i32
    %2 = arith.cmpi ne, %1, %c0_i32_0 : i32
    scf.if %2 {
      %c0_61 = arith.constant 0 : index
      %c0_62 = arith.constant 0 : index
      %c0_63 = arith.constant 0 : index
      %118 = vector.load %arg2[%c0_61, %c0_62, %c0_63] : memref<2x32x32xf32, #tpu.memory_space<vmem>>, vector<2x32x32xf32>
      %c0_64 = arith.constant 0 : index
      %c0_65 = arith.constant 0 : index
      %c0_66 = arith.constant 0 : index
      %119 = vector.load %arg10[%c0_64, %c0_65, %c0_66] : memref<2x32x32xf32, #tpu.memory_space<vmem>>, vector<2x32x32xf32>
      tpu.vector_store %arg10[%c0_64, %c0_65, %c0_66], %118 {strides = array<i32>} : memref<2x32x32xf32, #tpu.memory_space<vmem>>, vector<2x32x32xf32>,
    } else {
    }
    %c0 = arith.constant 0 : index
    %c0_1 = arith.constant 0 : index
    %c0_2 = arith.constant 0 : index
    %3 = vector.load %arg10[%c0, %c0_1, %c0_2] : memref<2x32x32xf32, #tpu.memory_space<vmem>>, vector<2x32x32xf32>
    %4 = vector.shape_cast %3 : vector<2x32x32xf32> to vector<64x32xf32>
    %c0_3 = arith.constant 0 : index
    %c0_4 = arith.constant 0 : index
    %c0_5 = arith.constant 0 : index
    %5 = vector.load %arg3[%c0_3, %c0_4, %c0_5] : memref<1x8x64xf32, #tpu.memory_space<vmem>>, vector<1x8x64xf32>
    %6 = vector.shape_cast %5 : vector<1x8x64xf32> to vector<8x64xf32>
    %7 = vector.extract_strided_slice %6 {offsets = [0, 0], sizes = [1, 32], strides = [1, 1]} : vector<8x64xf32> to vector<1x32xf32>
    %8 = vector.extract_strided_slice %6 {offsets = [1, 0], sizes = [1, 32], strides = [1, 1]} : vector<8x64xf32> to vector<1x32xf32>
    %9 = vector.extract_strided_slice %6 {offsets = [2, 0], sizes = [1, 32], strides = [1, 1]} : vector<8x64xf32> to vector<1x32xf32>
    %10 = vector.extract_strided_slice %6 {offsets = [3, 0], sizes = [1, 32], strides = [1, 1]} : vector<8x64xf32> to vector<1x32xf32>
    %11 = vector.extract_strided_slice %6 {offsets = [4, 0], sizes = [1, 32], strides = [1, 1]} : vector<8x64xf32> to vector<1x32xf32>
    %12 = vector.extract_strided_slice %6 {offsets = [5, 0], sizes = [1, 32], strides = [1, 1]} : vector<8x64xf32> to vector<1x32xf32>
    %13 = vector.extract_strided_slice %6 {offsets = [6, 0], sizes = [1, 64], strides = [1, 1]} : vector<8x64xf32> to vector<1x64xf32>
    %cst = arith.constant dense<0.000000e+00> : vector<64xf32>
    %14 = vector.multi_reduction <add>, %4, %cst [1] : vector<64x32xf32> to vector<64xf32>
    %15 = vector.shape_cast %14 : vector<64xf32> to vector<64x1xf32>
    %cst_6 = arith.constant 3.200000e+01 : f32
    %16 = vector.broadcast %cst_6 : f32 to vector<64x1xf32>
    %17 = arith.divf %15, %16 : vector<64x1xf32>
    %18 = vector.broadcast %17 : vector<64x1xf32> to vector<64x32xf32>
    %19 = arith.subf %4, %18 : vector<64x32xf32>
    %20 = arith.mulf %19, %19 : vector<64x32xf32>
    %cst_7 = arith.constant dense<0.000000e+00> : vector<64xf32>
    %21 = vector.multi_reduction <add>, %20, %cst_7 [1] : vector<64x32xf32> to vector<64xf32>
    %22 = vector.shape_cast %21 : vector<64xf32> to vector<64x1xf32>
    %cst_8 = arith.constant 3.200000e+01 : f32
    %23 = vector.broadcast %cst_8 : f32 to vector<64x1xf32>
    %24 = arith.divf %22, %23 : vector<64x1xf32>
    %25 = vector.broadcast %17 : vector<64x1xf32> to vector<64x32xf32>
    %26 = arith.subf %4, %25 : vector<64x32xf32>
    %cst_9 = arith.constant 9.99999974E-6 : f32
    %27 = vector.broadcast %cst_9 : f32 to vector<64x1xf32>
    %28 = arith.addf %24, %27 : vector<64x1xf32>
    %29 = math.rsqrt %28 : vector<64x1xf32>
    %30 = vector.broadcast %29 : vector<64x1xf32> to vector<64x32xf32>
    %31 = arith.mulf %26, %30 : vector<64x32xf32>
    %32 = vector.broadcast %7 : vector<1x32xf32> to vector<64x32xf32>
    %33 = arith.mulf %31, %32 : vector<64x32xf32>
    %34 = vector.broadcast %8 : vector<1x32xf32> to vector<64x32xf32>
    %35 = arith.addf %33, %34 : vector<64x32xf32>
    %36 = arith.truncf %35 : vector<64x32xf32> to vector<64x32xbf16>
    %c0_10 = arith.constant 0 : index
    %c0_11 = arith.constant 0 : index
    %c0_12 = arith.constant 0 : index
    %37 = vector.load %arg4[%c0_10, %c0_11, %c0_12] : memref<1x32x32xbf16, #tpu.memory_space<vmem>>, vector<1x32x32xbf16>
    %38 = vector.shape_cast %37 : vector<1x32x32xbf16> to vector<32x32xbf16>
    %cst_13 = arith.constant dense<0.000000e+00> : vector<64x32xf32>
    %39 = tpu.matmul %36, %38, %cst_13 {dimension_numbers = #tpu.dot_dimension_numbers<[1], [0], [0], [1], [0, 0, 1, 1], [], []>} : vector<64x32xbf16>, vector<32x32xbf16>, vector<64x32xf32> -> vector<64x32xf32>
    %40 = arith.truncf %39 : vector<64x32xf32> to vector<64x32xbf16>
    %c0_14 = arith.constant 0 : index
    %c0_15 = arith.constant 0 : index
    %41 = vector.load %arg12[%c0_14, %c0_15] : memref<64x32xbf16, #tpu.memory_space<vmem>>, vector<64x32xbf16>
    tpu.vector_store %arg12[%c0_14, %c0_15], %40 {strides = array<i32>} : memref<64x32xbf16, #tpu.memory_space<vmem>>, vector<64x32xbf16>,
    %c0_16 = arith.constant 0 : index
    %c0_17 = arith.constant 0 : index
    %c0_18 = arith.constant 0 : index
    %42 = vector.load %arg5[%c0_16, %c0_17, %c0_18] : memref<1x32x32xbf16, #tpu.memory_space<vmem>>, vector<1x32x32xbf16>
    %43 = vector.shape_cast %42 : vector<1x32x32xbf16> to vector<32x32xbf16>
    %cst_19 = arith.constant dense<0.000000e+00> : vector<64x32xf32>
    %44 = tpu.matmul %36, %43, %cst_19 {dimension_numbers = #tpu.dot_dimension_numbers<[1], [0], [0], [1], [0, 0, 1, 1], [], []>} : vector<64x32xbf16>, vector<32x32xbf16>, vector<64x32xf32> -> vector<64x32xf32>
    %45 = arith.truncf %44 : vector<64x32xf32> to vector<64x32xbf16>
    %c0_20 = arith.constant 0 : index
    %c0_21 = arith.constant 0 : index
    %46 = vector.load %arg13[%c0_20, %c0_21] : memref<64x32xbf16, #tpu.memory_space<vmem>>, vector<64x32xbf16>
    tpu.vector_store %arg13[%c0_20, %c0_21], %45 {strides = array<i32>} : memref<64x32xbf16, #tpu.memory_space<vmem>>, vector<64x32xbf16>,
    %c0_22 = arith.constant 0 : index
    %c0_23 = arith.constant 0 : index
    %c0_24 = arith.constant 0 : index
    %47 = vector.load %arg6[%c0_22, %c0_23, %c0_24] : memref<1x32x32xbf16, #tpu.memory_space<vmem>>, vector<1x32x32xbf16>
    %48 = vector.shape_cast %47 : vector<1x32x32xbf16> to vector<32x32xbf16>
    %cst_25 = arith.constant dense<0.000000e+00> : vector<64x32xf32>
    %49 = tpu.matmul %36, %48, %cst_25 {dimension_numbers = #tpu.dot_dimension_numbers<[1], [0], [0], [1], [0, 0, 1, 1], [], []>} : vector<64x32xbf16>, vector<32x32xbf16>, vector<64x32xf32> -> vector<64x32xf32>
    %50 = arith.truncf %49 : vector<64x32xf32> to vector<64x32xbf16>
    %c0_26 = arith.constant 0 : index
    %c0_27 = arith.constant 0 : index
    %51 = vector.load %arg14[%c0_26, %c0_27] : memref<64x32xbf16, #tpu.memory_space<vmem>>, vector<64x32xbf16>
    tpu.vector_store %arg14[%c0_26, %c0_27], %50 {strides = array<i32>} : memref<64x32xbf16, #tpu.memory_space<vmem>>, vector<64x32xbf16>,
    %52 = tpu.iota {dimensions = array<i32: 1>} : vector<1x32xi32>
    %c17_i32 = arith.constant 17 : i32
    %53 = vector.broadcast %c17_i32 : i32 to vector<1x32xi32>
    %54 = arith.cmpi slt, %52, %53 : vector<1x32xi32>
    %cst_28 = arith.constant 0.000000e+00 : f32
    %cst_29 = arith.constant -1.000000e+30 : f32
    %55 = vector.broadcast %cst_28 : f32 to vector<1x32xf32>
    %56 = vector.broadcast %cst_29 : f32 to vector<1x32xf32>
    %57 = arith.select %54, %55, %56 : vector<1x32xi1>, vector<1x32xf32>
    %c0_i32_30 = arith.constant 0 : i32
    %c2_i32 = arith.constant 2 : i32
    %58 = arith.addi %c0_i32_30, %c2_i32 : i32
    %c1_i32 = arith.constant 1 : i32
    scf.for %arg15 = %c0_i32_30 to %58 step %c1_i32  : i32 {
      %c32_i32 = arith.constant 32 : i32
      %118 = arith.muli %arg15, %c32_i32 : i32
      %119 = tpu.assume_multiple %118, 16 : i32
      %120 = arith.index_cast %119 : i32 to index
      %c0_61 = arith.constant 0 : index
      %121 = vector.load %arg12[%120, %c0_61] : memref<64x32xbf16, #tpu.memory_space<vmem>>, vector<32x32xbf16>
      %122 = arith.index_cast %119 : i32 to index
      %c0_62 = arith.constant 0 : index
      %123 = vector.load %arg13[%122, %c0_62] : memref<64x32xbf16, #tpu.memory_space<vmem>>, vector<32x32xbf16>
      %124 = arith.index_cast %119 : i32 to index
      %c0_63 = arith.constant 0 : index
      %125 = vector.load %arg14[%124, %c0_63] : memref<64x32xbf16, #tpu.memory_space<vmem>>, vector<32x32xbf16>
      %126 = vector.extract_strided_slice %121 {offsets = [0, 0], sizes = [32, 8], strides = [1, 1]} : vector<32x32xbf16> to vector<32x8xbf16>
      %127 = vector.extract_strided_slice %123 {offsets = [0, 0], sizes = [32, 8], strides = [1, 1]} : vector<32x32xbf16> to vector<32x8xbf16>
      %128 = vector.extract_strided_slice %125 {offsets = [0, 0], sizes = [32, 8], strides = [1, 1]} : vector<32x32xbf16> to vector<32x8xbf16>
      %cst_64 = arith.constant dense<0.000000e+00> : vector<32x32xf32>
      %129 = tpu.matmul %126, %127, %cst_64 {dimension_numbers = #tpu.dot_dimension_numbers<[1], [1], [0], [0], [0, 0, 1, 0], [], []>} : vector<32x8xbf16>, vector<32x8xbf16>, vector<32x32xf32> -> vector<32x32xf32>
      %130 = vector.broadcast %57 : vector<1x32xf32> to vector<32x32xf32>
      %131 = arith.addf %129, %130 : vector<32x32xf32>
      %cst_65 = arith.constant dense<0xFF800000> : vector<32xf32>
      %132 = vector.multi_reduction <maximumf>, %131, %cst_65 [1] : vector<32x32xf32> to vector<32xf32>
      %133 = vector.shape_cast %132 : vector<32xf32> to vector<32x1xf32>
      %134 = vector.broadcast %133 : vector<32x1xf32> to vector<32x32xf32>
      %135 = arith.subf %131, %134 : vector<32x32xf32>
      %136 = math.exp %135 : vector<32x32xf32>
      %cst_66 = arith.constant dense<0.000000e+00> : vector<32xf32>
      %137 = vector.multi_reduction <add>, %136, %cst_66 [1] : vector<32x32xf32> to vector<32xf32>
      %138 = vector.shape_cast %137 : vector<32xf32> to vector<32x1xf32>
      %139 = tpu.reciprocal %138 {approx = true} : vector<32x1xf32> -> vector<32x1xf32>
      %140 = vector.broadcast %139 : vector<32x1xf32> to vector<32x32xf32>
      %141 = arith.mulf %136, %140 : vector<32x32xf32>
      %142 = arith.truncf %141 : vector<32x32xf32> to vector<32x32xbf16>
      %cst_67 = arith.constant dense<0.000000e+00> : vector<32x8xf32>
      %143 = tpu.matmul %142, %128, %cst_67 {dimension_numbers = #tpu.dot_dimension_numbers<[1], [0], [0], [1], [0, 0, 1, 1], [], []>} : vector<32x32xbf16>, vector<32x8xbf16>, vector<32x8xf32> -> vector<32x8xf32>
      %144 = arith.truncf %143 : vector<32x8xf32> to vector<32x8xbf16>
      %145 = vector.extract_strided_slice %121 {offsets = [0, 8], sizes = [32, 8], strides = [1, 1]} : vector<32x32xbf16> to vector<32x8xbf16>
      %146 = vector.extract_strided_slice %123 {offsets = [0, 8], sizes = [32, 8], strides = [1, 1]} : vector<32x32xbf16> to vector<32x8xbf16>
      %147 = vector.extract_strided_slice %125 {offsets = [0, 8], sizes = [32, 8], strides = [1, 1]} : vector<32x32xbf16> to vector<32x8xbf16>
      %cst_68 = arith.constant dense<0.000000e+00> : vector<32x32xf32>
      %148 = tpu.matmul %145, %146, %cst_68 {dimension_numbers = #tpu.dot_dimension_numbers<[1], [1], [0], [0], [0, 0, 1, 0], [], []>} : vector<32x8xbf16>, vector<32x8xbf16>, vector<32x32xf32> -> vector<32x32xf32>
      %149 = vector.broadcast %57 : vector<1x32xf32> to vector<32x32xf32>
      %150 = arith.addf %148, %149 : vector<32x32xf32>
      %cst_69 = arith.constant dense<0xFF800000> : vector<32xf32>
      %151 = vector.multi_reduction <maximumf>, %150, %cst_69 [1] : vector<32x32xf32> to vector<32xf32>
      %152 = vector.shape_cast %151 : vector<32xf32> to vector<32x1xf32>
      %153 = vector.broadcast %152 : vector<32x1xf32> to vector<32x32xf32>
      %154 = arith.subf %150, %153 : vector<32x32xf32>
      %155 = math.exp %154 : vector<32x32xf32>
      %cst_70 = arith.constant dense<0.000000e+00> : vector<32xf32>
      %156 = vector.multi_reduction <add>, %155, %cst_70 [1] : vector<32x32xf32> to vector<32xf32>
      %157 = vector.shape_cast %156 : vector<32xf32> to vector<32x1xf32>
      %158 = tpu.reciprocal %157 {approx = true} : vector<32x1xf32> -> vector<32x1xf32>
      %159 = vector.broadcast %158 : vector<32x1xf32> to vector<32x32xf32>
      %160 = arith.mulf %155, %159 : vector<32x32xf32>
      %161 = arith.truncf %160 : vector<32x32xf32> to vector<32x32xbf16>
      %cst_71 = arith.constant dense<0.000000e+00> : vector<32x8xf32>
      %162 = tpu.matmul %161, %147, %cst_71 {dimension_numbers = #tpu.dot_dimension_numbers<[1], [0], [0], [1], [0, 0, 1, 1], [], []>} : vector<32x32xbf16>, vector<32x8xbf16>, vector<32x8xf32> -> vector<32x8xf32>
      %163 = arith.truncf %162 : vector<32x8xf32> to vector<32x8xbf16>
      %164 = vector.extract_strided_slice %121 {offsets = [0, 16], sizes = [32, 8], strides = [1, 1]} : vector<32x32xbf16> to vector<32x8xbf16>
      %165 = vector.extract_strided_slice %123 {offsets = [0, 16], sizes = [32, 8], strides = [1, 1]} : vector<32x32xbf16> to vector<32x8xbf16>
      %166 = vector.extract_strided_slice %125 {offsets = [0, 16], sizes = [32, 8], strides = [1, 1]} : vector<32x32xbf16> to vector<32x8xbf16>
      %cst_72 = arith.constant dense<0.000000e+00> : vector<32x32xf32>
      %167 = tpu.matmul %164, %165, %cst_72 {dimension_numbers = #tpu.dot_dimension_numbers<[1], [1], [0], [0], [0, 0, 1, 0], [], []>} : vector<32x8xbf16>, vector<32x8xbf16>, vector<32x32xf32> -> vector<32x32xf32>
      %168 = vector.broadcast %57 : vector<1x32xf32> to vector<32x32xf32>
      %169 = arith.addf %167, %168 : vector<32x32xf32>
      %cst_73 = arith.constant dense<0xFF800000> : vector<32xf32>
      %170 = vector.multi_reduction <maximumf>, %169, %cst_73 [1] : vector<32x32xf32> to vector<32xf32>
      %171 = vector.shape_cast %170 : vector<32xf32> to vector<32x1xf32>
      %172 = vector.broadcast %171 : vector<32x1xf32> to vector<32x32xf32>
      %173 = arith.subf %169, %172 : vector<32x32xf32>
      %174 = math.exp %173 : vector<32x32xf32>
      %cst_74 = arith.constant dense<0.000000e+00> : vector<32xf32>
      %175 = vector.multi_reduction <add>, %174, %cst_74 [1] : vector<32x32xf32> to vector<32xf32>
      %176 = vector.shape_cast %175 : vector<32xf32> to vector<32x1xf32>
      %177 = tpu.reciprocal %176 {approx = true} : vector<32x1xf32> -> vector<32x1xf32>
      %178 = vector.broadcast %177 : vector<32x1xf32> to vector<32x32xf32>
      %179 = arith.mulf %174, %178 : vector<32x32xf32>
      %180 = arith.truncf %179 : vector<32x32xf32> to vector<32x32xbf16>
      %cst_75 = arith.constant dense<0.000000e+00> : vector<32x8xf32>
      %181 = tpu.matmul %180, %166, %cst_75 {dimension_numbers = #tpu.dot_dimension_numbers<[1], [0], [0], [1], [0, 0, 1, 1], [], []>} : vector<32x32xbf16>, vector<32x8xbf16>, vector<32x8xf32> -> vector<32x8xf32>
      %182 = arith.truncf %181 : vector<32x8xf32> to vector<32x8xbf16>
      %183 = vector.extract_strided_slice %121 {offsets = [0, 24], sizes = [32, 8], strides = [1, 1]} : vector<32x32xbf16> to vector<32x8xbf16>
      %184 = vector.extract_strided_slice %123 {offsets = [0, 24], sizes = [32, 8], strides = [1, 1]} : vector<32x32xbf16> to vector<32x8xbf16>
      %185 = vector.extract_strided_slice %125 {offsets = [0, 24], sizes = [32, 8], strides = [1, 1]} : vector<32x32xbf16> to vector<32x8xbf16>
      %cst_76 = arith.constant dense<0.000000e+00> : vector<32x32xf32>
      %186 = tpu.matmul %183, %184, %cst_76 {dimension_numbers = #tpu.dot_dimension_numbers<[1], [1], [0], [0], [0, 0, 1, 0], [], []>} : vector<32x8xbf16>, vector<32x8xbf16>, vector<32x32xf32> -> vector<32x32xf32>
      %187 = vector.broadcast %57 : vector<1x32xf32> to vector<32x32xf32>
      %188 = arith.addf %186, %187 : vector<32x32xf32>
      %cst_77 = arith.constant dense<0xFF800000> : vector<32xf32>
      %189 = vector.multi_reduction <maximumf>, %188, %cst_77 [1] : vector<32x32xf32> to vector<32xf32>
      %190 = vector.shape_cast %189 : vector<32xf32> to vector<32x1xf32>
      %191 = vector.broadcast %190 : vector<32x1xf32> to vector<32x32xf32>
      %192 = arith.subf %188, %191 : vector<32x32xf32>
      %193 = math.exp %192 : vector<32x32xf32>
      %cst_78 = arith.constant dense<0.000000e+00> : vector<32xf32>
      %194 = vector.multi_reduction <add>, %193, %cst_78 [1] : vector<32x32xf32> to vector<32xf32>
      %195 = vector.shape_cast %194 : vector<32xf32> to vector<32x1xf32>
      %196 = tpu.reciprocal %195 {approx = true} : vector<32x1xf32> -> vector<32x1xf32>
      %197 = vector.broadcast %196 : vector<32x1xf32> to vector<32x32xf32>
      %198 = arith.mulf %193, %197 : vector<32x32xf32>
      %199 = arith.truncf %198 : vector<32x32xf32> to vector<32x32xbf16>
      %cst_79 = arith.constant dense<0.000000e+00> : vector<32x8xf32>
      %200 = tpu.matmul %199, %185, %cst_79 {dimension_numbers = #tpu.dot_dimension_numbers<[1], [0], [0], [1], [0, 0, 1, 1], [], []>} : vector<32x32xbf16>, vector<32x8xbf16>, vector<32x8xf32> -> vector<32x8xf32>
      %201 = arith.truncf %200 : vector<32x8xf32> to vector<32x8xbf16>
      %202 = tpu.concatenate %144, %163, %182, %201 in 1 : vector<32x8xbf16>, vector<32x8xbf16>, vector<32x8xbf16>, vector<32x8xbf16> -> vector<32x32xbf16>
      %203 = arith.index_cast %119 : i32 to index
      %c0_80 = arith.constant 0 : index
      %204 = vector.load %arg11[%203, %c0_80] : memref<64x32xbf16, #tpu.memory_space<vmem>>, vector<32x32xbf16>
      tpu.vector_store %arg11[%203, %c0_80], %202 {strides = array<i32>} : memref<64x32xbf16, #tpu.memory_space<vmem>>, vector<32x32xbf16>,
    }
    %c2_i32_31 = arith.constant 2 : i32
    %c0_32 = arith.constant 0 : index
    %c0_33 = arith.constant 0 : index
    %c0_34 = arith.constant 0 : index
    %59 = vector.load %arg10[%c0_32, %c0_33, %c0_34] : memref<2x32x32xf32, #tpu.memory_space<vmem>>, vector<2x32x32xf32>
    %60 = vector.shape_cast %59 : vector<2x32x32xf32> to vector<64x32xf32>
    %c0_35 = arith.constant 0 : index
    %c0_36 = arith.constant 0 : index
    %61 = vector.load %arg11[%c0_35, %c0_36] : memref<64x32xbf16, #tpu.memory_space<vmem>>, vector<64x32xbf16>
    %c0_37 = arith.constant 0 : index
    %c0_38 = arith.constant 0 : index
    %c0_39 = arith.constant 0 : index
    %62 = vector.load %arg7[%c0_37, %c0_38, %c0_39] : memref<1x32x32xbf16, #tpu.memory_space<vmem>>, vector<1x32x32xbf16>
    %63 = vector.shape_cast %62 : vector<1x32x32xbf16> to vector<32x32xbf16>
    %cst_40 = arith.constant dense<0.000000e+00> : vector<64x32xf32>
    %64 = tpu.matmul %61, %63, %cst_40 {dimension_numbers = #tpu.dot_dimension_numbers<[1], [0], [0], [1], [0, 0, 1, 1], [], []>} : vector<64x32xbf16>, vector<32x32xbf16>, vector<64x32xf32> -> vector<64x32xf32>
    %65 = arith.addf %60, %64 : vector<64x32xf32>
    %66 = vector.broadcast %9 : vector<1x32xf32> to vector<64x32xf32>
    %67 = arith.addf %65, %66 : vector<64x32xf32>
    %cst_41 = arith.constant dense<0.000000e+00> : vector<64xf32>
    %68 = vector.multi_reduction <add>, %67, %cst_41 [1] : vector<64x32xf32> to vector<64xf32>
    %69 = vector.shape_cast %68 : vector<64xf32> to vector<64x1xf32>
    %cst_42 = arith.constant 3.200000e+01 : f32
    %70 = vector.broadcast %cst_42 : f32 to vector<64x1xf32>
    %71 = arith.divf %69, %70 : vector<64x1xf32>
    %72 = vector.broadcast %71 : vector<64x1xf32> to vector<64x32xf32>
    %73 = arith.subf %67, %72 : vector<64x32xf32>
    %74 = arith.mulf %73, %73 : vector<64x32xf32>
    %cst_43 = arith.constant dense<0.000000e+00> : vector<64xf32>
    %75 = vector.multi_reduction <add>, %74, %cst_43 [1] : vector<64x32xf32> to vector<64xf32>
    %76 = vector.shape_cast %75 : vector<64xf32> to vector<64x1xf32>
    %cst_44 = arith.constant 3.200000e+01 : f32
    %77 = vector.broadcast %cst_44 : f32 to vector<64x1xf32>
    %78 = arith.divf %76, %77 : vector<64x1xf32>
    %79 = vector.broadcast %71 : vector<64x1xf32> to vector<64x32xf32>
    %80 = arith.subf %67, %79 : vector<64x32xf32>
    %cst_45 = arith.constant 9.99999974E-6 : f32
    %81 = vector.broadcast %cst_45 : f32 to vector<64x1xf32>
    %82 = arith.addf %78, %81 : vector<64x1xf32>
    %83 = math.rsqrt %82 : vector<64x1xf32>
    %84 = vector.broadcast %83 : vector<64x1xf32> to vector<64x32xf32>
    %85 = arith.mulf %80, %84 : vector<64x32xf32>
    %86 = vector.broadcast %10 : vector<1x32xf32> to vector<64x32xf32>
    %87 = arith.mulf %85, %86 : vector<64x32xf32>
    %88 = vector.broadcast %11 : vector<1x32xf32> to vector<64x32xf32>
    %89 = arith.addf %87, %88 : vector<64x32xf32>
    %90 = arith.truncf %89 : vector<64x32xf32> to vector<64x32xbf16>
    %c0_46 = arith.constant 0 : index
    %c0_47 = arith.constant 0 : index
    %c0_48 = arith.constant 0 : index
    %91 = vector.load %arg8[%c0_46, %c0_47, %c0_48] : memref<1x32x64xbf16, #tpu.memory_space<vmem>>, vector<1x32x64xbf16>
    %92 = vector.shape_cast %91 : vector<1x32x64xbf16> to vector<32x64xbf16>
    %cst_49 = arith.constant dense<0.000000e+00> : vector<64x64xf32>
    %93 = tpu.matmul %90, %92, %cst_49 {dimension_numbers = #tpu.dot_dimension_numbers<[1], [0], [0], [1], [0, 0, 1, 1], [], []>} : vector<64x32xbf16>, vector<32x64xbf16>, vector<64x64xf32> -> vector<64x64xf32>
    %94 = vector.broadcast %13 : vector<1x64xf32> to vector<64x64xf32>
    %95 = arith.addf %93, %94 : vector<64x64xf32>
    %cst_50 = arith.constant 5.000000e-01 : f32
    %96 = vector.broadcast %cst_50 : f32 to vector<64x64xf32>
    %97 = arith.mulf %96, %95 : vector<64x64xf32>
    %98 = arith.mulf %95, %95 : vector<64x64xf32>
    %99 = arith.mulf %98, %95 : vector<64x64xf32>
    %cst_51 = arith.constant 4.471500e-02 : f32
    %100 = vector.broadcast %cst_51 : f32 to vector<64x64xf32>
    %101 = arith.mulf %100, %99 : vector<64x64xf32>
    %102 = arith.addf %95, %101 : vector<64x64xf32>
    %cst_52 = arith.constant 0.797884583 : f32
    %103 = vector.broadcast %cst_52 : f32 to vector<64x64xf32>
    %104 = arith.mulf %103, %102 : vector<64x64xf32>
    %105 = math.tanh %104 : vector<64x64xf32>
    %cst_53 = arith.constant 1.000000e+00 : f32
    %106 = vector.broadcast %cst_53 : f32 to vector<64x64xf32>
    %107 = arith.addf %106, %105 : vector<64x64xf32>
    %108 = arith.mulf %97, %107 : vector<64x64xf32>
    %109 = arith.truncf %108 : vector<64x64xf32> to vector<64x64xbf16>
    %c0_54 = arith.constant 0 : index
    %c0_55 = arith.constant 0 : index
    %c0_56 = arith.constant 0 : index
    %110 = vector.load %arg9[%c0_54, %c0_55, %c0_56] : memref<1x64x32xbf16, #tpu.memory_space<vmem>>, vector<1x64x32xbf16>
    %111 = vector.shape_cast %110 : vector<1x64x32xbf16> to vector<64x32xbf16>
    %cst_57 = arith.constant dense<0.000000e+00> : vector<64x32xf32>
    %112 = tpu.matmul %109, %111, %cst_57 {dimension_numbers = #tpu.dot_dimension_numbers<[1], [0], [0], [1], [0, 0, 1, 1], [], []>} : vector<64x64xbf16>, vector<64x32xbf16>, vector<64x32xf32> -> vector<64x32xf32>
    %113 = arith.addf %67, %112 : vector<64x32xf32>
    %114 = vector.broadcast %12 : vector<1x32xf32> to vector<64x32xf32>
    %115 = arith.addf %113, %114 : vector<64x32xf32>
    %116 = vector.shape_cast %115 : vector<64x32xf32> to vector<2x32x32xf32>
    %c0_58 = arith.constant 0 : index
    %c0_59 = arith.constant 0 : index
    %c0_60 = arith.constant 0 : index
    %117 = vector.load %arg10[%c0_58, %c0_59, %c0_60] : memref<2x32x32xf32, #tpu.memory_space<vmem>>, vector<2x32x32xf32>
    tpu.vector_store %arg10[%c0_58, %c0_59, %c0_60], %116 {strides = array<i32>} : memref<2x32x32xf32, #tpu.memory_space<vmem>>, vector<2x32x32xf32>,
    return
  }
  func.func @transform_0(%arg0: i32, %arg1: i32) -> (i32, i32, i32) {
    %c0_i32 = arith.constant 0 : i32
    %c0_i32_0 = arith.constant 0 : i32
    %c0_i32_1 = arith.constant 0 : i32
    return %arg0, %c0_i32, %c0_i32_0 : i32, i32, i32
  }
  func.func @transform_1(%arg0: i32, %arg1: i32) -> (i32, i32, i32) {
    %c0_i32 = arith.constant 0 : i32
    %c0_i32_0 = arith.constant 0 : i32
    %c0_i32_1 = arith.constant 0 : i32
    return %arg1, %c0_i32, %c0_i32_0 : i32, i32, i32
  }
  func.func @transform_2(%arg0: i32, %arg1: i32) -> (i32, i32, i32) {
    %c0_i32 = arith.constant 0 : i32
    %c0_i32_0 = arith.constant 0 : i32
    %c0_i32_1 = arith.constant 0 : i32
    return %arg1, %c0_i32, %c0_i32_0 : i32, i32, i32
  }
  func.func @transform_3(%arg0: i32, %arg1: i32) -> (i32, i32, i32) {
    %c0_i32 = arith.constant 0 : i32
    %c0_i32_0 = arith.constant 0 : i32
    %c0_i32_1 = arith.constant 0 : i32
    return %arg1, %c0_i32, %c0_i32_0 : i32, i32, i32
  }
  func.func @transform_4(%arg0: i32, %arg1: i32) -> (i32, i32, i32) {
    %c0_i32 = arith.constant 0 : i32
    %c0_i32_0 = arith.constant 0 : i32
    %c0_i32_1 = arith.constant 0 : i32
    return %arg1, %c0_i32, %c0_i32_0 : i32, i32, i32
  }
  func.func @transform_5(%arg0: i32, %arg1: i32) -> (i32, i32, i32) {
    %c0_i32 = arith.constant 0 : i32
    %c0_i32_0 = arith.constant 0 : i32
    %c0_i32_1 = arith.constant 0 : i32
    return %arg1, %c0_i32, %c0_i32_0 : i32, i32, i32
  }
  func.func @transform_6(%arg0: i32, %arg1: i32) -> (i32, i32, i32) {
    %c0_i32 = arith.constant 0 : i32
    %c0_i32_0 = arith.constant 0 : i32
    %c0_i32_1 = arith.constant 0 : i32
    return %arg1, %c0_i32, %c0_i32_0 : i32, i32, i32
  }
  func.func @transform_7(%arg0: i32, %arg1: i32) -> (i32, i32, i32) {
    %c0_i32 = arith.constant 0 : i32
    %c0_i32_0 = arith.constant 0 : i32
    %c0_i32_1 = arith.constant 0 : i32
    return %arg1, %c0_i32, %c0_i32_0 : i32, i32, i32
  }
  func.func @transform_8(%arg0: i32, %arg1: i32) -> (i32, i32, i32) {
    %c0_i32 = arith.constant 0 : i32
    %c0_i32_0 = arith.constant 0 : i32
    %c0_i32_1 = arith.constant 0 : i32
    return %arg0, %c0_i32, %c0_i32_0 : i32, i32, i32
  }
}

module attributes {stable_mosaic.version = 11 : i64} {
  func.func @head_kernel(%arg0: i32, %arg1: memref<2x32xf32, #tpu.memory_space<vmem>>, %arg2: memref<1x32xf32, #tpu.memory_space<vmem>>, %arg3: memref<1x32xf32, #tpu.memory_space<vmem>>, %arg4: memref<32x128xbf16, #tpu.memory_space<vmem>>, %arg5: memref<1x128xf32, #tpu.memory_space<vmem>>, %arg6: memref<2x128xf32, #tpu.memory_space<vmem>>) attributes {dimension_semantics = [#tpu.dimension_semantics<parallel>], iteration_bounds = array<i64: 1>, scalar_prefetch = 0 : i64, scratch_operands = 0 : i64, tpu.core_type = #tpu.core_type<tc>, window_params = [{transform_indices = @transform_0, window_bounds = array<i64: 2, 32>}, {pipeline_mode = #tpu.pipeline_mode<synchronous>, transform_indices = @transform_1, window_bounds = array<i64: 1, 32>}, {pipeline_mode = #tpu.pipeline_mode<synchronous>, transform_indices = @transform_2, window_bounds = array<i64: 1, 32>}, {pipeline_mode = #tpu.pipeline_mode<synchronous>, transform_indices = @transform_3, window_bounds = array<i64: 32, 128>}, {pipeline_mode = #tpu.pipeline_mode<synchronous>, transform_indices = @transform_4, window_bounds = array<i64: 1, 128>}, {transform_indices = @transform_5, window_bounds = array<i64: 2, 128>}]} {
    %c0 = arith.constant 0 : index
    %c0_0 = arith.constant 0 : index
    %0 = vector.load %arg1[%c0, %c0_0] : memref<2x32xf32, #tpu.memory_space<vmem>>, vector<2x32xf32>
    %c0_1 = arith.constant 0 : index
    %c0_2 = arith.constant 0 : index
    %1 = vector.load %arg2[%c0_1, %c0_2] : memref<1x32xf32, #tpu.memory_space<vmem>>, vector<1x32xf32>
    %c0_3 = arith.constant 0 : index
    %c0_4 = arith.constant 0 : index
    %2 = vector.load %arg3[%c0_3, %c0_4] : memref<1x32xf32, #tpu.memory_space<vmem>>, vector<1x32xf32>
    %cst = arith.constant dense<0.000000e+00> : vector<2xf32>
    %3 = vector.multi_reduction <add>, %0, %cst [1] : vector<2x32xf32> to vector<2xf32>
    %4 = vector.shape_cast %3 : vector<2xf32> to vector<2x1xf32>
    %cst_5 = arith.constant 3.200000e+01 : f32
    %5 = vector.broadcast %cst_5 : f32 to vector<2x1xf32>
    %6 = arith.divf %4, %5 : vector<2x1xf32>
    %7 = vector.broadcast %6 : vector<2x1xf32> to vector<2x32xf32>
    %8 = arith.subf %0, %7 : vector<2x32xf32>
    %9 = arith.mulf %8, %8 : vector<2x32xf32>
    %cst_6 = arith.constant dense<0.000000e+00> : vector<2xf32>
    %10 = vector.multi_reduction <add>, %9, %cst_6 [1] : vector<2x32xf32> to vector<2xf32>
    %11 = vector.shape_cast %10 : vector<2xf32> to vector<2x1xf32>
    %cst_7 = arith.constant 3.200000e+01 : f32
    %12 = vector.broadcast %cst_7 : f32 to vector<2x1xf32>
    %13 = arith.divf %11, %12 : vector<2x1xf32>
    %14 = vector.broadcast %6 : vector<2x1xf32> to vector<2x32xf32>
    %15 = arith.subf %0, %14 : vector<2x32xf32>
    %cst_8 = arith.constant 9.99999974E-6 : f32
    %16 = vector.broadcast %cst_8 : f32 to vector<2x1xf32>
    %17 = arith.addf %13, %16 : vector<2x1xf32>
    %18 = math.rsqrt %17 : vector<2x1xf32>
    %19 = vector.broadcast %18 : vector<2x1xf32> to vector<2x32xf32>
    %20 = arith.mulf %15, %19 : vector<2x32xf32>
    %21 = vector.broadcast %1 : vector<1x32xf32> to vector<2x32xf32>
    %22 = arith.mulf %20, %21 : vector<2x32xf32>
    %23 = vector.broadcast %2 : vector<1x32xf32> to vector<2x32xf32>
    %24 = arith.addf %22, %23 : vector<2x32xf32>
    %25 = arith.truncf %24 : vector<2x32xf32> to vector<2x32xbf16>
    %c0_9 = arith.constant 0 : index
    %c0_10 = arith.constant 0 : index
    %26 = vector.load %arg4[%c0_9, %c0_10] : memref<32x128xbf16, #tpu.memory_space<vmem>>, vector<32x128xbf16>
    %cst_11 = arith.constant dense<0.000000e+00> : vector<2x128xf32>
    %27 = tpu.matmul %25, %26, %cst_11 {dimension_numbers = #tpu.dot_dimension_numbers<[1], [0], [0], [1], [0, 0, 1, 1], [], []>} : vector<2x32xbf16>, vector<32x128xbf16>, vector<2x128xf32> -> vector<2x128xf32>
    %c0_12 = arith.constant 0 : index
    %c0_13 = arith.constant 0 : index
    %28 = vector.load %arg5[%c0_12, %c0_13] : memref<1x128xf32, #tpu.memory_space<vmem>>, vector<1x128xf32>
    %29 = vector.broadcast %28 : vector<1x128xf32> to vector<2x128xf32>
    %30 = arith.addf %27, %29 : vector<2x128xf32>
    %cst_14 = arith.constant dense<0xFF800000> : vector<2xf32>
    %31 = vector.multi_reduction <maximumf>, %30, %cst_14 [1] : vector<2x128xf32> to vector<2xf32>
    %32 = vector.shape_cast %31 : vector<2xf32> to vector<2x1xf32>
    %33 = vector.broadcast %32 : vector<2x1xf32> to vector<2x128xf32>
    %34 = arith.subf %30, %33 : vector<2x128xf32>
    %35 = math.exp %34 : vector<2x128xf32>
    %cst_15 = arith.constant dense<0.000000e+00> : vector<2xf32>
    %36 = vector.multi_reduction <add>, %35, %cst_15 [1] : vector<2x128xf32> to vector<2xf32>
    %37 = vector.shape_cast %36 : vector<2xf32> to vector<2x1xf32>
    %38 = vector.broadcast %37 : vector<2x1xf32> to vector<2x128xf32>
    %39 = arith.divf %35, %38 : vector<2x128xf32>
    %c0_16 = arith.constant 0 : index
    %c0_17 = arith.constant 0 : index
    %40 = vector.load %arg6[%c0_16, %c0_17] : memref<2x128xf32, #tpu.memory_space<vmem>>, vector<2x128xf32>
    tpu.vector_store %arg6[%c0_16, %c0_17], %39 {strides = array<i32>} : memref<2x128xf32, #tpu.memory_space<vmem>>, vector<2x128xf32>,
    return
  }
  func.func @transform_0(%arg0: i32) -> (i32, i32) {
    %c0_i32 = arith.constant 0 : i32
    %c0_i32_0 = arith.constant 0 : i32
    return %arg0, %c0_i32 : i32, i32
  }
  func.func @transform_1(%arg0: i32) -> (i32, i32) {
    %c0_i32 = arith.constant 0 : i32
    %c0_i32_0 = arith.constant 0 : i32
    %c0_i32_1 = arith.constant 0 : i32
    return %c0_i32, %c0_i32_0 : i32, i32
  }
  func.func @transform_2(%arg0: i32) -> (i32, i32) {
    %c0_i32 = arith.constant 0 : i32
    %c0_i32_0 = arith.constant 0 : i32
    %c0_i32_1 = arith.constant 0 : i32
    return %c0_i32, %c0_i32_0 : i32, i32
  }
  func.func @transform_3(%arg0: i32) -> (i32, i32) {
    %c0_i32 = arith.constant 0 : i32
    %c0_i32_0 = arith.constant 0 : i32
    %c0_i32_1 = arith.constant 0 : i32
    return %c0_i32, %c0_i32_0 : i32, i32
  }
  func.func @transform_4(%arg0: i32) -> (i32, i32) {
    %c0_i32 = arith.constant 0 : i32
    %c0_i32_0 = arith.constant 0 : i32
    %c0_i32_1 = arith.constant 0 : i32
    return %c0_i32, %c0_i32_0 : i32, i32
  }
  func.func @transform_5(%arg0: i32) -> (i32, i32) {
    %c0_i32 = arith.constant 0 : i32
    %c0_i32_0 = arith.constant 0 : i32
    return %arg0, %c0_i32 : i32, i32
  }
}

</mosaic_0001>

<llo_original>
// kernel: vit_forward.5
$region0: #{vit_forward.5}
  #allocation0 [shape = 'u32[]', space=smem, size = 0x4, offset = 0x4, fixed_abs, tag = 'smem constant byte address 0x4 - core index']
  #allocation1 [shape = 'u32[144,128]{1,0:T(1,128)}', space=vmem, size = 0x12000, scoped, tag = 'internal scratch']
  %s0 = inlined_call_operand.vmem [shape: f32[2,32], index: 0, kind: input, shape index: {}]
  %s1 = inlined_call_operand.vmem [shape: f32[1,32], index: 1, kind: input, shape index: {}]
  %s2 = inlined_call_operand.vmem [shape: f32[1,32], index: 2, kind: input, shape index: {}]
  %s3 = inlined_call_operand.vmem [shape: bf16[32,128], index: 3, kind: input, shape index: {}]
  %s4 = inlined_call_operand.vmem [shape: f32[1,128], index: 4, kind: input, shape index: {}]
  %s5 = inlined_call_operand.hbm [shape: f32[2,128], index: 5, kind: output, shape index: {}]
  %s6 = sld [smem:[#allocation0]]
  $region30: #{vit_forward.5} parent=0
    _
  %s8 = ssub.s32 1, %s6
  %s9 = scalar_select 0, %s8, %s6
  $region1: #{vit_forward.5} parent=0
    #allocation2 [shape = 'u8[1024]{0}', space=vmem, size = 0x400, scoped, tag = 'output window, operand 0, single buffered']
    #allocation3 [shape = 's32[1]{0}', space=sflag, size = 0x4, scoped, tag = 'scoped memory for vit_forward.5']
    %10 = vsyncpa [#allocation3], 0
    // Predicated region
    $region2: #{vit_forward.5} parent=1 // pred_check
      _
    $region3: #{vit_forward.5} parent=1 // pred_check_branch
      %12 = sbr.rel (0) target = $region5
    $region4: #{vit_forward.5} parent=1 // pred_region
      _
    $region5: #{vit_forward.5} parent=1 // pred_fallthru
      _
    // Predicated region
    $region6: #{vit_forward.5} parent=1 // pred_check
      _
    $region7: #{vit_forward.5} parent=1 // pred_check_branch
      %14 = sbr.rel (0) target = $region9
    $region8: #{vit_forward.5} parent=1 // pred_region
      _
    $region9: #{vit_forward.5} parent=1 // pred_fallthru
      _
    // Predicated region
    $region10: #{vit_forward.5} parent=1 // pred_check
      _
    $region11: #{vit_forward.5} parent=1 // pred_check_branch
      %16 = sbr.rel (0) target = $region13
    $region12: #{vit_forward.5} parent=1 // pred_region
      _
    $region13: #{vit_forward.5} parent=1 // pred_fallthru
      _
    // Predicated region
    $region14: #{vit_forward.5} parent=1 // pred_check
      _
    $region15: #{vit_forward.5} parent=1 // pred_check_branch
      %18 = sbr.rel (0) target = $region17
    $region16: #{vit_forward.5} parent=1 // pred_region
      _
    $region17: #{vit_forward.5} parent=1 // pred_fallthru
      _
    // Predicated region
    $region18: #{vit_forward.5} parent=1 // pred_check
      _
    $region19: #{vit_forward.5} parent=1 // pred_check_branch
      %20 = sbr.rel (0) target = $region21
    $region20: #{vit_forward.5} parent=1 // pred_region
      _
    $region21: #{vit_forward.5} parent=1 // pred_fallthru
      _
    %v22 = vld [vmem:[%s0] sm:$0x3]
    %v23 = vld [vmem:[%s1] sm:$0x1]
    %v24 = vld [vmem:[%s2] sm:$0x1]
    %vm25 = vcmask 254976
    %v26 = vsel %vm25, %v22, 0.0
    %27 = vadd.xlane.f32.xlu0 %v26
    %v28 = vpop.xlane.xlu0 %27
    %v29 = vrcp.pop 32.0
    %v30 = vmul.f32 %v28, %v29
    %v31 = vsub.f32 %v22, %v30
    %v32 = vmul.f32 %v31, %v31
    %v33 = vsel %vm25, %v32, 0.0
    %34 = vadd.xlane.f32.xlu0 %v33
    %v35 = vpop.xlane.xlu0 %34
    %v36 = vmul.f32 %v35, %v29
    %v37 = vadd.f32 %v36, 1e-05
    %v38 = vrsqrt.pop %v37
    %v39 = vmul.f32 %v31, %v38
    %v41 = vlaneseq
    %v42 = vshrl.u32 %v41, 7
    %v43 = vsub.s32 0, %v42
    %v44 = vrot.slane %v23, %v43
    %v46 = vmul.f32 %v39, %v44
    %v48 = vlaneseq
    %v49 = vshrl.u32 %v48, 7
    %v50 = vsub.s32 0, %v49
    %v51 = vrot.slane %v24, %v50
    %v53 = vadd.f32 %v46, %v51
    %v54 = vpack.c.bf16 %v53, %v53
    %v55 = vld [vmem:[%s3] sm:$0xf]
    %v56 = vld [vmem:[%s3 + $0x4] sm:$0xf]
    %v57 = vld [vmem:[%s3 + $0x8] sm:$0xf]
    %v58 = vld [vmem:[%s3 + $0xc] sm:$0xf]
    %v59 = vld [vmem:[%s4] sm:$0x1]
    %v61 = vlaneseq
    %v62 = vshrl.u32 %v61, 7
    %v63 = vsub.s32 0, %v62
    %v64 = vrot.slane %v59, %v63
    %v70 = vunpack.c.l.b16 %v55
    %v71 = vunpack.c.l.b16 %v56
    %v72 = vunpack.c.l.b16 %v57
    %v73 = vunpack.c.l.b16 %v58
    %v74 = vpack.c.b16 %v71, %v70
    %v75 = vpack.c.b16 %v73, %v72
    %vm78 = vcmask 261120
    %v80 = vsel %vm78, %v54, 0
    %82 = vmatprep.subr.bf16.mxu0 0
    %83 = vmatpush1.bf16.msra.mxu0 %v74
    %84 = vmatprep.subr.bf16.mxu0 0
    %85 = vmatpush1.bf16.msra.mxu0 %v75
    %86 = vmatprep.subr.bf16.mxu0 0
    %87 = vmatpush1.bf16.msra.mxu0 0
    %88 = vmatprep.subr.bf16.mxu0 0
    %89 = vmatpush1.bf16.msra.mxu0 0
    %90 = vmatprep.subr.bf16.mxu0 0
    %91 = vmatpush1.bf16.msra.mxu0 0
    %92 = vmatprep.subr.bf16.mxu0 0
    %93 = vmatpush1.bf16.msra.mxu0 0
    %94 = vmatprep.subr.bf16.mxu0 0
    %95 = vmatpush1.bf16.msra.mxu0 0
    %96 = vmatprep.subr.bf16.mxu0 0
    %97 = vmatpush1.bf16.msra.mxu0 0
    %98 = vmatprep.subr.bf16.mxu0 0
    %99 = vmatpush1.bf16.msra.mxu0 0
    %100 = vmatprep.subr.bf16.mxu0 0
    %101 = vmatpush1.bf16.msra.mxu0 0
    %102 = vmatprep.subr.bf16.mxu0 0
    %103 = vmatpush1.bf16.msra.mxu0 0
    %104 = vmatprep.subr.bf16.mxu0 0
    %105 = vmatpush1.bf16.msra.mxu0 0
    %106 = vmatprep.subr.bf16.mxu0 0
    %107 = vmatpush1.bf16.msra.mxu0 0
    %108 = vmatprep.subr.bf16.mxu0 0
    %109 = vmatpush1.bf16.msra.mxu0 0
    %110 = vmatprep.subr.bf16.mxu0 0
    %111 = vmatpush1.bf16.msra.mxu0 0
    %112 = vmatprep.subr.bf16.mxu0 0
    %113 = vmatpush1.bf16.msra.mxu0 0
    %114 = vmatprep.mubr.bf16.mxu0 0
    %115 = vmatmul.mubr.bf16.gmra.mrb[0].mxu0 %v80
    %v116 = vpop.f32.mrb[0].mxu0
    %v117 = vadd.f32 %v64, %v116
    %v118 = vpop.f32.mrb[0].mxu0
    %v119 = vpop.f32.mrb[0].mxu0
    %v120 = vpop.f32.mrb[0].mxu0
    %121 = vdwg.mxu0
    %vm122 = vcmask 1041408
    %v123 = vsel %vm122, %v117, -inf
    %124 = vmax.xlane.f32.xlu0 %v123
    %v125 = vpop.xlane.xlu0 %124
    %v126 = vsub.f32 %v117, %v125
    %v127 = vmul.f32 %v126, 1.442695
    %v128 = vpow.pop %v127
    %v129 = vsel %vm122, %v128, 0.0
    %130 = vadd.xlane.f32.xlu0 %v129
    %v131 = vpop.xlane.xlu0 %130
    %v132 = vrcp.pop %v131
    %v133 = vmul.f32 %v128, %v132
    %134 = vst [vmem:[#allocation2] sm:$0x3] %v133
    // Predicated region
    $region22: #{vit_forward.5} parent=1 // pred_check
      _
    $region23: #{vit_forward.5} parent=1 // pred_check_branch
      %136 = sbr.rel (0) target = $region25
    $region24: #{vit_forward.5} parent=1 // pred_region
      %s138 = ssub.s32 32, 32
      %139 = vsyncadd [#allocation3], %s138
      %s141 = sshll.u32 [#allocation2], 4
      %s142 = int_to_ptr.vmem [resolvable:$true] %s141
      %144 = dma.vmem_to_hbm [thread:$0]  %s142, 32, %s5, [#allocation3]
    $region25: #{vit_forward.5} parent=1 // pred_fallthru
      _
    // Predicated region
    $region26: #{vit_forward.5} parent=1 // pred_check
      _
    $region27: #{vit_forward.5} parent=1 // pred_check_branch
      %146 = sbr.rel (0) target = $region29
    $region28: #{vit_forward.5} parent=1 // pred_region
      %147 = dma.done [#allocation3], 32
    $region29: #{vit_forward.5} parent=1 // pred_fallthru
      _
    %148 = vsyncpa [#allocation3], 1

// kernel: vit_forward.3
$region0: #{vit_forward.3}
  #allocation0 [shape = 'u32[]', space=smem, size = 0x4, offset = 0x4, fixed_abs, tag = 'smem constant byte address 0x4 - core index']
  #allocation1 [shape = 'u32[144,128]{1,0:T(1,128)}', space=vmem, size = 0x12000, scoped, tag = 'internal scratch']
  %s0 = inlined_call_operand.vmem [shape: f32[2,16,64], index: 0, kind: input, shape index: {}]
  %s1 = inlined_call_operand.vmem [shape: f32[1,64], index: 1, kind: input, shape index: {}]
  %s2 = inlined_call_operand.vmem [shape: f32[1,64], index: 2, kind: input, shape index: {}]
  %s3 = inlined_call_operand.vmem [shape: bf16[64,32], index: 3, kind: input, shape index: {}]
  %s4 = inlined_call_operand.vmem [shape: f32[1,32], index: 4, kind: input, shape index: {}]
  %s5 = inlined_call_operand.vmem [shape: f32[1,32], index: 5, kind: input, shape index: {}]
  %s6 = inlined_call_operand.vmem [shape: f32[1,32], index: 6, kind: input, shape index: {}]
  %s7 = inlined_call_operand.vmem [shape: f32[2,16,32], index: 7, kind: output, shape index: {}]
  %s8 = sld [smem:[#allocation0]]
  $region38: #{vit_forward.3} parent=0
    _
  %s10 = ssub.s32 1, %s8
  %s11 = scalar_select 0, %s10, %s8
  // Predicated region
  $region2: #{vit_forward.3} parent=0 // pred_check
    _
  $region3: #{vit_forward.3} parent=0 // pred_check_branch
    %13 = sbr.rel (0) target = $region5
  $region4: #{vit_forward.3} parent=0 // pred_region
    _
  $region5: #{vit_forward.3} parent=0 // pred_fallthru
    _
  // Predicated region
  $region6: #{vit_forward.3} parent=0 // pred_check
    _
  $region7: #{vit_forward.3} parent=0 // pred_check_branch
    %15 = sbr.rel (0) target = $region9
  $region8: #{vit_forward.3} parent=0 // pred_region
    _
  $region9: #{vit_forward.3} parent=0 // pred_fallthru
    _
  // Predicated region
  $region10: #{vit_forward.3} parent=0 // pred_check
    _
  $region11: #{vit_forward.3} parent=0 // pred_check_branch
    %17 = sbr.rel (0) target = $region13
  $region12: #{vit_forward.3} parent=0 // pred_region
    _
  $region13: #{vit_forward.3} parent=0 // pred_fallthru
    _
  // Predicated region
  $region14: #{vit_forward.3} parent=0 // pred_check
    _
  $region15: #{vit_forward.3} parent=0 // pred_check_branch
    %19 = sbr.rel (0) target = $region17
  $region16: #{vit_forward.3} parent=0 // pred_region
    _
  $region17: #{vit_forward.3} parent=0 // pred_fallthru
    _
  // Predicated region
  $region18: #{vit_forward.3} parent=0 // pred_check
    _
  $region19: #{vit_forward.3} parent=0 // pred_check_branch
    %21 = sbr.rel (0) target = $region21
  $region20: #{vit_forward.3} parent=0 // pred_region
    _
  $region21: #{vit_forward.3} parent=0 // pred_fallthru
    _
  // Predicated region
  $region22: #{vit_forward.3} parent=0 // pred_check
    _
  $region23: #{vit_forward.3} parent=0 // pred_check_branch
    %23 = sbr.rel (0) target = $region25
  $region24: #{vit_forward.3} parent=0 // pred_region
    _
  $region25: #{vit_forward.3} parent=0 // pred_fallthru
    _
  // Predicated region
  $region26: #{vit_forward.3} parent=0 // pred_check
    _
  $region27: #{vit_forward.3} parent=0 // pred_check_branch
    %25 = sbr.rel (0) target = $region29
  $region28: #{vit_forward.3} parent=0 // pred_region
    _
  $region29: #{vit_forward.3} parent=0 // pred_fallthru
    _
  %v27 = vld [vmem:[%s0] sm:$0xff]
  %v28 = vld [vmem:[%s0 + $0x8] sm:$0xff]
  %v29 = vld [vmem:[%s0 + $0x10] sm:$0xff]
  %v30 = vld [vmem:[%s0 + $0x18] sm:$0xff]
  %v31 = vld [vmem:[%s1] sm:$0x1]
  %v32 = vld [vmem:[%s2] sm:$0x1]
  %vm33 = vcmask 523264
  %v34 = vsel %vm33, %v27, 0.0
  %35 = vadd.xlane.f32.xlu0 %v34
  %v36 = vpop.xlane.xlu0 %35
  %v37 = vsel %vm33, %v28, 0.0
  %38 = vadd.xlane.f32.xlu0 %v37
  %v39 = vpop.xlane.xlu0 %38
  %v40 = vsel %vm33, %v29, 0.0
  %41 = vadd.xlane.f32.xlu0 %v40
  %v42 = vpop.xlane.xlu0 %41
  %v43 = vsel %vm33, %v30, 0.0
  %44 = vadd.xlane.f32.xlu0 %v43
  %v45 = vpop.xlane.xlu0 %44
  %v46 = vrcp.pop 64.0
  %v47 = vmul.f32 %v36, %v46
  %v48 = vmul.f32 %v39, %v46
  %v49 = vmul.f32 %v42, %v46
  %v50 = vmul.f32 %v45, %v46
  %v51 = vsub.f32 %v27, %v47
  %v52 = vsub.f32 %v28, %v48
  %v53 = vsub.f32 %v29, %v49
  %v54 = vsub.f32 %v30, %v50
  %v55 = vmul.f32 %v51, %v51
  %v56 = vmul.f32 %v52, %v52
  %v57 = vmul.f32 %v53, %v53
  %v58 = vmul.f32 %v54, %v54
  %v59 = vsel %vm33, %v55, 0.0
  %60 = vadd.xlane.f32.xlu0 %v59
  %v61 = vpop.xlane.xlu0 %60
  %v62 = vsel %vm33, %v56, 0.0
  %63 = vadd.xlane.f32.xlu0 %v62
  %v64 = vpop.xlane.xlu0 %63
  %v65 = vsel %vm33, %v57, 0.0
  %66 = vadd.xlane.f32.xlu0 %v65
  %v67 = vpop.xlane.xlu0 %66
  %v68 = vsel %vm33, %v58, 0.0
  %69 = vadd.xlane.f32.xlu0 %v68
  %v70 = vpop.xlane.xlu0 %69
  %v71 = vmul.f32 %v61, %v46
  %v72 = vmul.f32 %v64, %v46
  %v73 = vmul.f32 %v67, %v46
  %v74 = vmul.f32 %v70, %v46
  %v75 = vadd.f32 %v71, 1e-05
  %v76 = vadd.f32 %v72, 1e-05
  %v77 = vadd.f32 %v73, 1e-05
  %v78 = vadd.f32 %v74, 1e-05
  %v79 = vrsqrt.pop %v75
  %v80 = vrsqrt.pop %v76
  %v81 = vrsqrt.pop %v77
  %v82 = vrsqrt.pop %v78
  %v83 = vmul.f32 %v51, %v79
  %v84 = vmul.f32 %v52, %v80
  %v85 = vmul.f32 %v53, %v81
  %v86 = vmul.f32 %v54, %v82
  %v88 = vlaneseq
  %v89 = vshrl.u32 %v88, 7
  %v90 = vsub.s32 0, %v89
  %v91 = vrot.slane %v31, %v90
  %v93 = vmul.f32 %v83, %v91
  %v94 = vmul.f32 %v84, %v91
  %v95 = vmul.f32 %v85, %v91
  %v96 = vmul.f32 %v86, %v91
  %v98 = vlaneseq
  %v99 = vshrl.u32 %v98, 7
  %v100 = vsub.s32 0, %v99
  %v101 = vrot.slane %v32, %v100
  %v103 = vadd.f32 %v93, %v101
  %v104 = vadd.f32 %v94, %v101
  %v105 = vadd.f32 %v95, %v101
  %v106 = vadd.f32 %v96, %v101
  %v107 = vpack.c.bf16 %v104, %v103
  %v108 = vpack.c.bf16 %v106, %v105
  %v109 = vld [vmem:[%s3] sm:$0xf]
  %v110 = vld [vmem:[%s3 + $0x4] sm:$0xf]
  %v111 = vld [vmem:[%s3 + $0x8] sm:$0xf]
  %v112 = vld [vmem:[%s3 + $0xc] sm:$0xf]
  %v113 = vld [vmem:[%s3 + $0x10] sm:$0xf]
  %v114 = vld [vmem:[%s3 + $0x14] sm:$0xf]
  %v115 = vld [vmem:[%s3 + $0x18] sm:$0xf]
  %v116 = vld [vmem:[%s3 + $0x1c] sm:$0xf]
  %v117 = vld [vmem:[%s4] sm:$0x1]
  %v119 = vlaneseq
  %v120 = vshrl.u32 %v119, 7
  %v121 = vsub.s32 0, %v120
  %v122 = vrot.slane %v117, %v121
  %v132 = vunpack.c.l.b16 %v109
  %v133 = vunpack.c.l.b16 %v110
  %v134 = vunpack.c.l.b16 %v111
  %v135 = vunpack.c.l.b16 %v112
  %v136 = vunpack.c.l.b16 %v113
  %v137 = vunpack.c.l.b16 %v114
  %v138 = vunpack.c.l.b16 %v115
  %v139 = vunpack.c.l.b16 %v116
  %v140 = vpack.c.b16 %v133, %v132
  %v141 = vpack.c.b16 %v135, %v134
  %v142 = vpack.c.b16 %v137, %v136
  %v143 = vpack.c.b16 %v139, %v138
  %v149 = vsel %vm33, %v107, 0
  %v152 = vsel %vm33, %v108, 0
  %154 = vmatprep.subr.bf16.mxu0 0
  %155 = vmatpush1.bf16.msra.mxu0 %v140
  %156 = vmatprep.subr.bf16.mxu0 0
  %157 = vmatpush1.bf16.msra.mxu0 %v141
  %158 = vmatprep.subr.bf16.mxu0 0
  %159 = vmatpush1.bf16.msra.mxu0 %v142
  %160 = vmatprep.subr.bf16.mxu0 0
  %161 = vmatpush1.bf16.msra.mxu0 %v143
  %162 = vmatprep.subr.bf16.mxu0 0
  %163 = vmatpush1.bf16.msra.mxu0 0
  %164 = vmatprep.subr.bf16.mxu0 0
  %165 = vmatpush1.bf16.msra.mxu0 0
  %166 = vmatprep.subr.bf16.mxu0 0
  %167 = vmatpush1.bf16.msra.mxu0 0
  %168 = vmatprep.subr.bf16.mxu0 0
  %169 = vmatpush1.bf16.msra.mxu0 0
  %170 = vmatprep.subr.bf16.mxu0 0
  %171 = vmatpush1.bf16.msra.mxu0 0
  %172 = vmatprep.subr.bf16.mxu0 0
  %173 = vmatpush1.bf16.msra.mxu0 0
  %174 = vmatprep.subr.bf16.mxu0 0
  %175 = vmatpush1.bf16.msra.mxu0 0
  %176 = vmatprep.subr.bf16.mxu0 0
  %177 = vmatpush1.bf16.msra.mxu0 0
  %178 = vmatprep.subr.bf16.mxu0 0
  %179 = vmatpush1.bf16.msra.mxu0 0
  %180 = vmatprep.subr.bf16.mxu0 0
  %181 = vmatpush1.bf16.msra.mxu0 0
  %182 = vmatprep.subr.bf16.mxu0 0
  %183 = vmatpush1.bf16.msra.mxu0 0
  %184 = vmatprep.subr.bf16.mxu0 0
  %185 = vmatpush1.bf16.msra.mxu0 0
  %186 = vmatprep.mubr.bf16.mxu0 0
  %187 = vmatmul.mubr.bf16.gmra.mrb[0].mxu0 %v149
  %v188 = vpop.f32.mrb[0].mxu0
  %v189 = vadd.f32 %v122, %v188
  %v190 = vpop.f32.mrb[0].mxu0
  %v191 = vpop.f32.mrb[0].mxu0
  %v192 = vadd.f32 %v122, %v191
  %v193 = vpop.f32.mrb[0].mxu0
  %194 = vmatprep.mubr.bf16.mxu0 0
  %195 = vmatmul.mubr.bf16.gmra.mrb[0].mxu0 %v152
  %v196 = vpop.f32.mrb[0].mxu0
  %v197 = vadd.f32 %v122, %v196
  %v198 = vpop.f32.mrb[0].mxu0
  %v199 = vpop.f32.mrb[0].mxu0
  %v200 = vadd.f32 %v122, %v199
  %v201 = vpop.f32.mrb[0].mxu0
  %202 = vdwg.mxu0
  %v203 = vld [vmem:[%s5] sm:$0x1]
  %v204 = vld [vmem:[%s6] sm:$0x1]
  %vm205 = vcmask 261120
  %v206 = vsel %vm205, %v189, 0.0
  %207 = vadd.xlane.f32.xlu0 %v206
  %v208 = vpop.xlane.xlu0 %207
  %v209 = vsel %vm205, %v192, 0.0
  %210 = vadd.xlane.f32.xlu0 %v209
  %v211 = vpop.xlane.xlu0 %210
  %v212 = vsel %vm205, %v197, 0.0
  %213 = vadd.xlane.f32.xlu0 %v212
  %v214 = vpop.xlane.xlu0 %213
  %v215 = vsel %vm205, %v200, 0.0
  %216 = vadd.xlane.f32.xlu0 %v215
  %v217 = vpop.xlane.xlu0 %216
  %v218 = vrcp.pop 32.0
  %v219 = vmul.f32 %v208, %v218
  %v220 = vmul.f32 %v211, %v218
  %v221 = vmul.f32 %v214, %v218
  %v222 = vmul.f32 %v217, %v218
  %v223 = vsub.f32 %v189, %v219
  %v224 = vsub.f32 %v192, %v220
  %v225 = vsub.f32 %v197, %v221
  %v226 = vsub.f32 %v200, %v222
  %v227 = vmul.f32 %v223, %v223
  %v228 = vmul.f32 %v224, %v224
  %v229 = vmul.f32 %v225, %v225
  %v230 = vmul.f32 %v226, %v226
  %v231 = vsel %vm205, %v227, 0.0
  %232 = vadd.xlane.f32.xlu0 %v231
  %v233 = vpop.xlane.xlu0 %232
  %v234 = vsel %vm205, %v228, 0.0
  %235 = vadd.xlane.f32.xlu0 %v234
  %v236 = vpop.xlane.xlu0 %235
  %v237 = vsel %vm205, %v229, 0.0
  %238 = vadd.xlane.f32.xlu0 %v237
  %v239 = vpop.xlane.xlu0 %238
  %v240 = vsel %vm205, %v230, 0.0
  %241 = vadd.xlane.f32.xlu0 %v240
  %v242 = vpop.xlane.xlu0 %241
  %v243 = vmul.f32 %v233, %v218
  %v244 = vmul.f32 %v236, %v218
  %v245 = vmul.f32 %v239, %v218
  %v246 = vmul.f32 %v242, %v218
  %v247 = vadd.f32 %v243, 1e-05
  %v248 = vadd.f32 %v244, 1e-05
  %v249 = vadd.f32 %v245, 1e-05
  %v250 = vadd.f32 %v246, 1e-05
  %v251 = vrsqrt.pop %v247
  %v252 = vrsqrt.pop %v248
  %v253 = vrsqrt.pop %v249
  %v254 = vrsqrt.pop %v250
  %v255 = vmul.f32 %v223, %v251
  %v256 = vmul.f32 %v224, %v252
  %v257 = vmul.f32 %v225, %v253
  %v258 = vmul.f32 %v226, %v254
  %v260 = vlaneseq
  %v261 = vshrl.u32 %v260, 7
  %v262 = vsub.s32 0, %v261
  %v263 = vrot.slane %v203, %v262
  %v265 = vmul.f32 %v255, %v263
  %v266 = vmul.f32 %v256, %v263
  %v267 = vmul.f32 %v257, %v263
  %v268 = vmul.f32 %v258, %v263
  %v270 = vlaneseq
  %v271 = vshrl.u32 %v270, 7
  %v272 = vsub.s32 0, %v271
  %v273 = vrot.slane %v204, %v272
  %v275 = vadd.f32 %v265, %v273
  %v276 = vadd.f32 %v266, %v273
  %v277 = vadd.f32 %v267, %v273
  %v278 = vadd.f32 %v268, %v273
  %279 = vst.msk [vmem:[%s7] sm:$0xff] %vm205, %v275
  %280 = vst.msk [vmem:[%s7 + $0x8] sm:$0xff] %vm205, %v276
  %281 = vst.msk [vmem:[%s7 + $0x10] sm:$0xff] %vm205, %v277
  %282 = vst.msk [vmem:[%s7 + $0x18] sm:$0xff] %vm205, %v278
  // Predicated region
  $region30: #{vit_forward.3} parent=0 // pred_check
    _
  $region31: #{vit_forward.3} parent=0 // pred_check_branch
    %284 = sbr.rel (0) target = $region33
  $region32: #{vit_forward.3} parent=0 // pred_region
    _
  $region33: #{vit_forward.3} parent=0 // pred_fallthru
    _
  // Predicated region
  $region34: #{vit_forward.3} parent=0 // pred_check
    _
  $region35: #{vit_forward.3} parent=0 // pred_check_branch
    %286 = sbr.rel (0) target = $region37
  $region36: #{vit_forward.3} parent=0 // pred_region
    _
  $region37: #{vit_forward.3} parent=0 // pred_fallthru
    _

// kernel: vit_forward.4
$region0: #{vit_forward.4}
  #allocation0 [shape = 'u32[]', space=smem, size = 0x4, offset = 0x4, fixed_abs, tag = 'smem constant byte address 0x4 - core index']
  #allocation1 [shape = 'u32[144,128]{1,0:T(1,128)}', space=vmem, size = 0x12000, scoped, tag = 'internal scratch']
  #allocation2 [shape = 'bf16[64,32]{1,0:T(16,128)(2,1)}', space=vmem, size = 0x4000, scoped, tag = 'scratch operand']
  #allocation3 [shape = 'bf16[64,32]{1,0:T(16,128)(2,1)}', space=vmem, size = 0x4000, scoped, tag = 'scratch operand']
  #allocation4 [shape = 'bf16[64,32]{1,0:T(16,128)(2,1)}', space=vmem, size = 0x4000, scoped, tag = 'scratch operand']
  #allocation5 [shape = 'bf16[64,32]{1,0:T(16,128)(2,1)}', space=vmem, size = 0x4000, scoped, tag = 'scratch operand']
  %s0 = inlined_call_operand.vmem [shape: f32[2,32,32], index: 0, kind: input, shape index: {}]
  %s1 = inlined_call_operand.vmem [shape: f32[2,8,64], index: 1, kind: input, shape index: {}]
  %s2 = inlined_call_operand.vmem [shape: bf16[2,32,32], index: 2, kind: input, shape index: {}]
  %s3 = inlined_call_operand.vmem [shape: bf16[2,32,32], index: 3, kind: input, shape index: {}]
  %s4 = inlined_call_operand.vmem [shape: bf16[2,32,32], index: 4, kind: input, shape index: {}]
  %s5 = inlined_call_operand.vmem [shape: bf16[2,32,32], index: 5, kind: input, shape index: {}]
  %s6 = inlined_call_operand.vmem [shape: bf16[2,32,64], index: 6, kind: input, shape index: {}]
  %s7 = inlined_call_operand.vmem [shape: bf16[2,64,32], index: 7, kind: input, shape index: {}]
  %s8 = inlined_call_operand.vmem [shape: f32[2,32,32], index: 8, kind: output, shape index: {}]
  %s9 = sld [smem:[#allocation0]]
  $region76: #{vit_forward.4} parent=0
    _
  %s11 = ssub.s32 1, %s9
  %s12 = scalar_select 0, %s11, %s9
  loop: start=0, step=1, limit=4
  $region2: #{vit_forward.4} parent=0 // loop_pre_header
    _
  $region3: #{vit_forward.4} parent=0 // loop_header
    %s14 = sphi 0, %s18
    %p15 = scmp.ge.s32.totalorder %s14, 4
    %s21 = sphi 0, %s33
    %s22 = sphi 0, %s29
    %s23 = sphi 0, %s21
    %s24 = sphi 0, %s22
    %s25 = sphi 0, %s23
    %s26 = sphi 0, %s24
    %s36 = sphi 0, %s38
    %s39 = sphi 0, %s36
    %s40 = sphi 0, %s39
    %s56 = sphi 0, %s40
    %s62 = sphi 0, %s64
    %s65 = sphi 0, %s62
    %s66 = sphi 0, %s65
    %s82 = sphi 0, %s66
    %s88 = sphi 0, %s90
    %s91 = sphi 0, %s88
    %s92 = sphi 0, %s91
    %s108 = sphi 0, %s92
    %s114 = sphi 0, %s116
    %s117 = sphi 0, %s114
    %s118 = sphi 0, %s117
    %s134 = sphi 0, %s118
    %s140 = sphi 0, %s142
    %s143 = sphi 0, %s140
    %s144 = sphi 0, %s143
    %s160 = sphi 0, %s144
    %s166 = sphi 0, %s168
    %s169 = sphi 0, %s166
    %s170 = sphi 0, %s169
    %s186 = sphi 0, %s170
    %s192 = sphi 0, %s194
    %s195 = sphi 0, %s192
    %s196 = sphi 0, %s195
    %s212 = sphi 0, %s196
    %s218 = sphi 0, %s220
    %s221 = sphi 0, %s218
    %s222 = sphi 0, %s221
    %s238 = sphi 0, %s222
    %s244 = sphi 0, %s246
    %s247 = sphi 0, %s244
    %s248 = sphi 0, %s247
    %s264 = sphi 0, %s248
  $region4: #{vit_forward.4} parent=0 // loop_header_branch
    %17 = sbr.rel (%p15) target = $region8
  $region5: #{vit_forward.4} parent=0 // loop_body
    %s19 = ssub.s32 %s14, 1
    %s20 = ssub.s32 %s14, 2
    %s27 = sadd.s32 1, %s22
    %p28 = scmp.ge.s32.totalorder %s27, 2
    %s29 = scalar_select %p28, 0, %s27
    %s30 = sadd.s32 1, %s21
    %s31 = scalar_select %p28, %s30, %s21
    %p32 = scmp.ge.s32.totalorder %s31, 1
    %s33 = scalar_select %p32, 0, %s31
    %s34 = ssub.s32 %s21, %s33
    %p35 = scmp.eq.s32.totalorder %s34, 0
    %s37 = sadd.s32 %s36, 1
    %s38 = scalar_select %p35, %s36, %s37
    %p41 = pneg %p35
    %p42 = scmp.eq.s32.totalorder %s14, 1
    %p43 = por %p41, %p42
    %p44 = scmp.ne.s32.totalorder %s36, %s39
    %p45 = scmp.eq.s32.totalorder %s14, 0
    %p46 = por %p44, %p45
    %p47 = scmp.ne.s32.totalorder %s36, %s39
    %p48 = scmp.eq.s32.totalorder %s19, 1
    %p49 = por %p47, %p48
    %p50 = scmp.ne.s32.totalorder %s39, %s40
    %p51 = scmp.eq.s32.totalorder %s19, 0
    %p52 = por %p50, %p51
    %p53 = scmp.ne.s32.totalorder %s39, %s40
    %p54 = scmp.eq.s32.totalorder %s20, 1
    %p55 = por %p53, %p54
    %p57 = scmp.ne.s32.totalorder %s40, %s56
    %p58 = scmp.eq.s32.totalorder %s20, 0
    %p59 = por %p57, %p58
    %s60 = ssub.s32 %s22, %s29
    %p61 = scmp.eq.s32.totalorder %s60, 0
    %s63 = sadd.s32 %s62, 1
    %s64 = scalar_select %p61, %s62, %s63
    %p67 = pneg %p61
    %p68 = scmp.eq.s32.totalorder %s14, 1
    %p69 = por %p67, %p68
    %p70 = scmp.ne.s32.totalorder %s62, %s65
    %p71 = scmp.eq.s32.totalorder %s14, 0
    %p72 = por %p70, %p71
    %p73 = scmp.ne.s32.totalorder %s62, %s65
    %p74 = scmp.eq.s32.totalorder %s19, 1
    %p75 = por %p73, %p74
    %p76 = scmp.ne.s32.totalorder %s65, %s66
    %p77 = scmp.eq.s32.totalorder %s19, 0
    %p78 = por %p76, %p77
    %p79 = scmp.ne.s32.totalorder %s65, %s66
    %p80 = scmp.eq.s32.totalorder %s20, 1
    %p81 = por %p79, %p80
    %p83 = scmp.ne.s32.totalorder %s66, %s82
    %p84 = scmp.eq.s32.totalorder %s20, 0
    %p85 = por %p83, %p84
    %s86 = ssub.s32 %s22, %s29
    %p87 = scmp.eq.s32.totalorder %s86, 0
    %s89 = sadd.s32 %s88, 1
    %s90 = scalar_select %p87, %s88, %s89
    %p93 = pneg %p87
    %p94 = scmp.eq.s32.totalorder %s14, 1
    %p95 = por %p93, %p94
    %p96 = scmp.ne.s32.totalorder %s88, %s91
    %p97 = scmp.eq.s32.totalorder %s14, 0
    %p98 = por %p96, %p97
    %p99 = scmp.ne.s32.totalorder %s88, %s91
    %p100 = scmp.eq.s32.totalorder %s19, 1
    %p101 = por %p99, %p100
    %p102 = scmp.ne.s32.totalorder %s91, %s92
    %p103 = scmp.eq.s32.totalorder %s19, 0
    %p104 = por %p102, %p103
    %p105 = scmp.ne.s32.totalorder %s91, %s92
    %p106 = scmp.eq.s32.totalorder %s20, 1
    %p107 = por %p105, %p106
    %p109 = scmp.ne.s32.totalorder %s92, %s108
    %p110 = scmp.eq.s32.totalorder %s20, 0
    %p111 = por %p109, %p110
    %s112 = ssub.s32 %s22, %s29
    %p113 = scmp.eq.s32.totalorder %s112, 0
    %s115 = sadd.s32 %s114, 1
    %s116 = scalar_select %p113, %s114, %s115
    %p119 = pneg %p113
    %p120 = scmp.eq.s32.totalorder %s14, 1
    %p121 = por %p119, %p120
    %p122 = scmp.ne.s32.totalorder %s114, %s117
    %p123 = scmp.eq.s32.totalorder %s14, 0
    %p124 = por %p122, %p123
    %p125 = scmp.ne.s32.totalorder %s114, %s117
    %p126 = scmp.eq.s32.totalorder %s19, 1
    %p127 = por %p125, %p126
    %p128 = scmp.ne.s32.totalorder %s117, %s118
    %p129 = scmp.eq.s32.totalorder %s19, 0
    %p130 = por %p128, %p129
    %p131 = scmp.ne.s32.totalorder %s117, %s118
    %p132 = scmp.eq.s32.totalorder %s20, 1
    %p133 = por %p131, %p132
    %p135 = scmp.ne.s32.totalorder %s118, %s134
    %p136 = scmp.eq.s32.totalorder %s20, 0
    %p137 = por %p135, %p136
    %s138 = ssub.s32 %s22, %s29
    %p139 = scmp.eq.s32.totalorder %s138, 0
    %s141 = sadd.s32 %s140, 1
    %s142 = scalar_select %p139, %s140, %s141
    %p145 = pneg %p139
    %p146 = scmp.eq.s32.totalorder %s14, 1
    %p147 = por %p145, %p146
    %p148 = scmp.ne.s32.totalorder %s140, %s143
    %p149 = scmp.eq.s32.totalorder %s14, 0
    %p150 = por %p148, %p149
    %p151 = scmp.ne.s32.totalorder %s140, %s143
    %p152 = scmp.eq.s32.totalorder %s19, 1
    %p153 = por %p151, %p152
    %p154 = scmp.ne.s32.totalorder %s143, %s144
    %p155 = scmp.eq.s32.totalorder %s19, 0
    %p156 = por %p154, %p155
    %p157 = scmp.ne.s32.totalorder %s143, %s144
    %p158 = scmp.eq.s32.totalorder %s20, 1
    %p159 = por %p157, %p158
    %p161 = scmp.ne.s32.totalorder %s144, %s160
    %p162 = scmp.eq.s32.totalorder %s20, 0
    %p163 = por %p161, %p162
    %s164 = ssub.s32 %s22, %s29
    %p165 = scmp.eq.s32.totalorder %s164, 0
    %s167 = sadd.s32 %s166, 1
    %s168 = scalar_select %p165, %s166, %s167
    %p171 = pneg %p165
    %p172 = scmp.eq.s32.totalorder %s14, 1
    %p173 = por %p171, %p172
    %p174 = scmp.ne.s32.totalorder %s166, %s169
    %p175 = scmp.eq.s32.totalorder %s14, 0
    %p176 = por %p174, %p175
    %p177 = scmp.ne.s32.totalorder %s166, %s169
    %p178 = scmp.eq.s32.totalorder %s19, 1
    %p179 = por %p177, %p178
    %p180 = scmp.ne.s32.totalorder %s169, %s170
    %p181 = scmp.eq.s32.totalorder %s19, 0
    %p182 = por %p180, %p181
    %p183 = scmp.ne.s32.totalorder %s169, %s170
    %p184 = scmp.eq.s32.totalorder %s20, 1
    %p185 = por %p183, %p184
    %p187 = scmp.ne.s32.totalorder %s170, %s186
    %p188 = scmp.eq.s32.totalorder %s20, 0
    %p189 = por %p187, %p188
    %s190 = ssub.s32 %s22, %s29
    %p191 = scmp.eq.s32.totalorder %s190, 0
    %s193 = sadd.s32 %s192, 1
    %s194 = scalar_select %p191, %s192, %s193
    %p197 = pneg %p191
    %p198 = scmp.eq.s32.totalorder %s14, 1
    %p199 = por %p197, %p198
    %p200 = scmp.ne.s32.totalorder %s192, %s195
    %p201 = scmp.eq.s32.totalorder %s14, 0
    %p202 = por %p200, %p201
    %p203 = scmp.ne.s32.totalorder %s192, %s195
    %p204 = scmp.eq.s32.totalorder %s19, 1
    %p205 = por %p203, %p204
    %p206 = scmp.ne.s32.totalorder %s195, %s196
    %p207 = scmp.eq.s32.totalorder %s19, 0
    %p208 = por %p206, %p207
    %p209 = scmp.ne.s32.totalorder %s195, %s196
    %p210 = scmp.eq.s32.totalorder %s20, 1
    %p211 = por %p209, %p210
    %p213 = scmp.ne.s32.totalorder %s196, %s212
    %p214 = scmp.eq.s32.totalorder %s20, 0
    %p215 = por %p213, %p214
    %s216 = ssub.s32 %s22, %s29
    %p217 = scmp.eq.s32.totalorder %s216, 0
    %s219 = sadd.s32 %s218, 1
    %s220 = scalar_select %p217, %s218, %s219
    %p223 = pneg %p217
    %p224 = scmp.eq.s32.totalorder %s14, 1
    %p225 = por %p223, %p224
    %p226 = scmp.ne.s32.totalorder %s218, %s221
    %p227 = scmp.eq.s32.totalorder %s14, 0
    %p228 = por %p226, %p227
    %p229 = scmp.ne.s32.totalorder %s218, %s221
    %p230 = scmp.eq.s32.totalorder %s19, 1
    %p231 = por %p229, %p230
    %p232 = scmp.ne.s32.totalorder %s221, %s222
    %p233 = scmp.eq.s32.totalorder %s19, 0
    %p234 = por %p232, %p233
    %p235 = scmp.ne.s32.totalorder %s221, %s222
    %p236 = scmp.eq.s32.totalorder %s20, 1
    %p237 = por %p235, %p236
    %p239 = scmp.ne.s32.totalorder %s222, %s238
    %p240 = scmp.eq.s32.totalorder %s20, 0
    %p241 = por %p239, %p240
    %s242 = ssub.s32 %s21, %s33
    %p243 = scmp.eq.s32.totalorder %s242, 0
    %s245 = sadd.s32 %s244, 1
    %s246 = scalar_select %p243, %s244, %s245
    %p249 = pneg %p243
    %p250 = scmp.eq.s32.totalorder %s14, 1
    %p251 = por %p249, %p250
    %p252 = scmp.ne.s32.totalorder %s244, %s247
    %p253 = scmp.eq.s32.totalorder %s14, 0
    %p254 = por %p252, %p253
    %p255 = scmp.ne.s32.totalorder %s244, %s247
    %p256 = scmp.eq.s32.totalorder %s19, 1
    %p257 = por %p255, %p256
    %p258 = scmp.ne.s32.totalorder %s247, %s248
    %p259 = scmp.eq.s32.totalorder %s19, 0
    %p260 = por %p258, %p259
    %p261 = scmp.ne.s32.totalorder %s247, %s248
    %p262 = scmp.eq.s32.totalorder %s20, 1
    %p263 = por %p261, %p262
    %p265 = scmp.ne.s32.totalorder %s248, %s264
    %p266 = scmp.eq.s32.totalorder %s20, 0
    %p267 = por %p265, %p266
    %p268 = scmp.le.s32.totalorder 1, %s14
    %p269 = scmp.lt.s32.totalorder %s14, 3
    %p270 = pnand %p268, %p269
    %p271 = pneg %p270
    // Predicated region
    $region9: #{vit_forward.4} parent=5 // pred_check
      _
    $region10: #{vit_forward.4} parent=5 // pred_check_branch
      %273 = sbr.rel (%p270) target = $region12
    $region11: #{vit_forward.4} parent=5 // pred_region
      %s274 = ssub.s32 %s14, 1
      // Predicated region
      $region13: #{vit_forward.4} parent=11 // pred_check
        %p275 = pneg %p52
      $region14: #{vit_forward.4} parent=11 // pred_check_branch
        %277 = sbr.rel (%p275) target = $region16
      $region15: #{vit_forward.4} parent=11 // pred_region
        %s278 = smul.u32 2, %s23
        %p279 = scmp.lt.s32.totalorder %s278, 1
        %s280 = scalar_select %p279, %s278, 1
        %s281 = smul.addr %s280, 4
        %s282 = smul.addr %s281, 8
        %s283 = scalar_lea.vmem %s0, %s282
        %s284 = smul.u32 2, %s23
      $region16: #{vit_forward.4} parent=11 // pred_fallthru
        _
    $region12: #{vit_forward.4} parent=5 // pred_fallthru
      _
    %p285 = scmp.lt.s32.totalorder %s14, 2
    // Predicated region
    $region17: #{vit_forward.4} parent=5 // pred_check
      %p286 = pneg %p285
    $region18: #{vit_forward.4} parent=5 // pred_check_branch
      %288 = sbr.rel (%p286) target = $region20
    $region19: #{vit_forward.4} parent=5 // pred_region
      // Predicated region
      $region21: #{vit_forward.4} parent=19 // pred_check
        %p289 = pneg %p72
      $region22: #{vit_forward.4} parent=19 // pred_check_branch
        %291 = sbr.rel (%p289) target = $region24
      $region23: #{vit_forward.4} parent=19 // pred_region
        %p292 = scmp.lt.s32.totalorder %s22, 1
        %s293 = scalar_select %p292, %s22, 1
        %s294 = smul.addr %s293, 8
        %s295 = scalar_lea.vmem %s1, %s294
      $region24: #{vit_forward.4} parent=19 // pred_fallthru
        _
      // Predicated region
      $region25: #{vit_forward.4} parent=19 // pred_check
        %p296 = pneg %p98
      $region26: #{vit_forward.4} parent=19 // pred_check_branch
        %298 = sbr.rel (%p296) target = $region28
      $region27: #{vit_forward.4} parent=19 // pred_region
        %p299 = scmp.lt.s32.totalorder %s22, 1
        %s300 = scalar_select %p299, %s22, 1
        %s301 = smul.addr %s300, 4
        %s302 = smul.addr %s301, 4
        %s303 = scalar_lea.vmem %s2, %s302
      $region28: #{vit_forward.4} parent=19 // pred_fallthru
        _
      // Predicated region
      $region29: #{vit_forward.4} parent=19 // pred_check
        %p304 = pneg %p124
      $region30: #{vit_forward.4} parent=19 // pred_check_branch
        %306 = sbr.rel (%p304) target = $region32
      $region31: #{vit_forward.4} parent=19 // pred_region
        %p307 = scmp.lt.s32.totalorder %s22, 1
        %s308 = scalar_select %p307, %s22, 1
        %s309 = smul.addr %s308, 4
        %s310 = smul.addr %s309, 4
        %s311 = scalar_lea.vmem %s3, %s310
      $region32: #{vit_forward.4} parent=19 // pred_fallthru
        _
      // Predicated region
      $region33: #{vit_forward.4} parent=19 // pred_check
        %p312 = pneg %p150
      $region34: #{vit_forward.4} parent=19 // pred_check_branch
        %314 = sbr.rel (%p312) target = $region36
      $region35: #{vit_forward.4} parent=19 // pred_region
        %p315 = scmp.lt.s32.totalorder %s22, 1
        %s316 = scalar_select %p315, %s22, 1
        %s317 = smul.addr %s316, 4
        %s318 = smul.addr %s317, 4
        %s319 = scalar_lea.vmem %s4, %s318
      $region36: #{vit_forward.4} parent=19 // pred_fallthru
        _
      // Predicated region
      $region37: #{vit_forward.4} parent=19 // pred_check
        %p320 = pneg %p176
      $region38: #{vit_forward.4} parent=19 // pred_check_branch
        %322 = sbr.rel (%p320) target = $region40
      $region39: #{vit_forward.4} parent=19 // pred_region
        %p323 = scmp.lt.s32.totalorder %s22, 1
        %s324 = scalar_select %p323, %s22, 1
        %s325 = smul.addr %s324, 4
        %s326 = smul.addr %s325, 4
        %s327 = scalar_lea.vmem %s5, %s326
      $region40: #{vit_forward.4} parent=19 // pred_fallthru
        _
      // Predicated region
      $region41: #{vit_forward.4} parent=19 // pred_check
        %p328 = pneg %p202
      $region42: #{vit_forward.4} parent=19 // pred_check_branch
        %330 = sbr.rel (%p328) target = $region44
      $region43: #{vit_forward.4} parent=19 // pred_region
        %p331 = scmp.lt.s32.totalorder %s22, 1
        %s332 = scalar_select %p331, %s22, 1
        %s333 = smul.addr %s332, 4
        %s334 = smul.addr %s333, 4
        %s335 = scalar_lea.vmem %s6, %s334
      $region44: #{vit_forward.4} parent=19 // pred_fallthru
        _
      // Predicated region
      $region45: #{vit_forward.4} parent=19 // pred_check
        %p336 = pneg %p228
      $region46: #{vit_forward.4} parent=19 // pred_check_branch
        %338 = sbr.rel (%p336) target = $region48
      $region47: #{vit_forward.4} parent=19 // pred_region
        %p339 = scmp.lt.s32.totalorder %s22, 1
        %s340 = scalar_select %p339, %s22, 1
        %s341 = smul.addr %s340, 8
        %s342 = smul.addr %s341, 4
        %s343 = scalar_lea.vmem %s7, %s342
      $region48: #{vit_forward.4} parent=19 // pred_fallthru
        _
    $region20: #{vit_forward.4} parent=5 // pred_fallthru
      _
    %p344 = scmp.le.s32.totalorder 1, %s14
    %p345 = scmp.lt.s32.totalorder %s14, 3
    %p346 = pnand %p344, %p345
    %p347 = pneg %p346
    // Predicated region
    $region49: #{vit_forward.4} parent=5 // pred_check
      _
    $region50: #{vit_forward.4} parent=5 // pred_check_branch
      %349 = sbr.rel (%p346) target = $region52
    $region51: #{vit_forward.4} parent=5 // pred_region
      %s350 = ssub.s32 %s14, 1
      %s351 = smul.u32 2, %s23
      %p352 = scmp.lt.s32.totalorder %s351, 1
      %s353 = scalar_select %p352, %s351, 1
      %s354 = smul.addr %s353, 4
      %s355 = smul.addr %s354, 8
      %s356 = scalar_lea.vmem %s0, %s355
      %p357 = pneg %p52
      %p358 = pneg %p49
      %p359 = scmp.lt.s32.totalorder %s24, 1
      %s360 = scalar_select %p359, %s24, 1
      %s361 = smul.addr %s360, 8
      %s362 = scalar_lea.vmem %s1, %s361
      %p363 = pneg %p78
      %p364 = pneg %p75
      %p365 = scmp.lt.s32.totalorder %s24, 1
      %s366 = scalar_select %p365, %s24, 1
      %s367 = smul.addr %s366, 4
      %s368 = smul.addr %s367, 4
      %s369 = scalar_lea.vmem %s2, %s368
      %p370 = pneg %p104
      %p371 = pneg %p101
      %p372 = scmp.lt.s32.totalorder %s24, 1
      %s373 = scalar_select %p372, %s24, 1
      %s374 = smul.addr %s373, 4
      %s375 = smul.addr %s374, 4
      %s376 = scalar_lea.vmem %s3, %s375
      %p377 = pneg %p130
      %p378 = pneg %p127
      %p379 = scmp.lt.s32.totalorder %s24, 1
      %s380 = scalar_select %p379, %s24, 1
      %s381 = smul.addr %s380, 4
      %s382 = smul.addr %s381, 4
      %s383 = scalar_lea.vmem %s4, %s382
      %p384 = pneg %p156
      %p385 = pneg %p153
      %p386 = scmp.lt.s32.totalorder %s24, 1
      %s387 = scalar_select %p386, %s24, 1
      %s388 = smul.addr %s387, 4
      %s389 = smul.addr %s388, 4
      %s390 = scalar_lea.vmem %s5, %s389
      %p391 = pneg %p182
      %p392 = pneg %p179
      %p393 = scmp.lt.s32.totalorder %s24, 1
      %s394 = scalar_select %p393, %s24, 1
      %s395 = smul.addr %s394, 4
      %s396 = smul.addr %s395, 4
      %s397 = scalar_lea.vmem %s6, %s396
      %p398 = pneg %p208
      %p399 = pneg %p205
      %p400 = scmp.lt.s32.totalorder %s24, 1
      %s401 = scalar_select %p400, %s24, 1
      %s402 = smul.addr %s401, 8
      %s403 = smul.addr %s402, 4
      %s404 = scalar_lea.vmem %s7, %s403
      %p405 = pneg %p234
      %p406 = pneg %p231
      %p407 = pneg %p260
      %p408 = pneg %p257
      %s409 = smul.u32 2, %s23
      %p410 = scmp.lt.s32.totalorder %s409, 1
      %s411 = scalar_select %p410, %s409, 1
      %s412 = smul.addr %s411, 4
      %s413 = smul.addr %s412, 8
      %s414 = scalar_lea.vmem %s8, %s413
      %s415 = smul.u32 2, %s23
      %p416 = scmp.lt.s32.totalorder %s415, 1
      %s417 = scalar_select %p416, %s415, 1
      %s418 = smul.addr %s417, 4
      %s419 = smul.addr %s418, 8
      %s420 = scalar_lea.vmem %s0, %s419
      %s421 = smul.u32 2, %s23
      %p422 = scmp.lt.s32.totalorder %s24, 1
      %s423 = scalar_select %p422, %s24, 1
      %s424 = smul.addr %s423, 8
      %s425 = scalar_lea.vmem %s1, %s424
      %p426 = scmp.lt.s32.totalorder %s24, 1
      %s427 = scalar_select %p426, %s24, 1
      %s428 = smul.addr %s427, 4
      %s429 = smul.addr %s428, 4
      %s430 = scalar_lea.vmem %s2, %s429
      %p431 = scmp.lt.s32.totalorder %s24, 1
      %s432 = scalar_select %p431, %s24, 1
      %s433 = smul.addr %s432, 4
      %s434 = smul.addr %s433, 4
      %s435 = scalar_lea.vmem %s3, %s434
      %p436 = scmp.lt.s32.totalorder %s24, 1
      %s437 = scalar_select %p436, %s24, 1
      %s438 = smul.addr %s437, 4
      %s439 = smul.addr %s438, 4
      %s440 = scalar_lea.vmem %s4, %s439
      %p441 = scmp.lt.s32.totalorder %s24, 1
      %s442 = scalar_select %p441, %s24, 1
      %s443 = smul.addr %s442, 4
      %s444 = smul.addr %s443, 4
      %s445 = scalar_lea.vmem %s5, %s444
      %p446 = scmp.lt.s32.totalorder %s24, 1
      %s447 = scalar_select %p446, %s24, 1
      %s448 = smul.addr %s447, 4
      %s449 = smul.addr %s448, 4
      %s450 = scalar_lea.vmem %s6, %s449
      %p451 = scmp.lt.s32.totalorder %s24, 1
      %s452 = scalar_select %p451, %s24, 1
      %s453 = smul.addr %s452, 8
      %s454 = smul.addr %s453, 4
      %s455 = scalar_lea.vmem %s7, %s454
      %s456 = smul.u32 2, %s23
      %p457 = scmp.lt.s32.totalorder %s456, 1
      %s458 = scalar_select %p457, %s456, 1
      %s459 = smul.addr %s458, 4
      %s460 = smul.addr %s459, 8
      %s461 = scalar_lea.vmem %s8, %s460
      %s462 = smul.u32 2, %s23
      %p464 = scmp.eq.s32.totalorder %s24, 0
      // Predicated region
      $region53: #{vit_forward.4} parent=51 // pred_check
        %p465 = pneg %p464
      $region54: #{vit_forward.4} parent=51 // pred_check_branch
        %467 = sbr.rel (%p465) target = $region56
      $region55: #{vit_forward.4} parent=51 // pred_region
        %v468 = vld [vmem:[%s420] sm:$0xff]
        %v469 = vld [vmem:[%s420 + $0x8] sm:$0xff]
        %v470 = vld [vmem:[%s420 + $0x10] sm:$0xff]
        %v471 = vld [vmem:[%s420 + $0x18] sm:$0xff]
        %v472 = vld [vmem:[%s420 + $0x20] sm:$0xff]
        %v473 = vld [vmem:[%s420 + $0x28] sm:$0xff]
        %v474 = vld [vmem:[%s420 + $0x30] sm:$0xff]
        %v475 = vld [vmem:[%s420 + $0x38] sm:$0xff]
        %vm476 = vcmask 261120
        %477 = vst.msk [vmem:[%s461] sm:$0xff] %vm476, %v468
        %478 = vst.msk [vmem:[%s461 + $0x8] sm:$0xff] %vm476, %v469
        %479 = vst.msk [vmem:[%s461 + $0x10] sm:$0xff] %vm476, %v470
        %480 = vst.msk [vmem:[%s461 + $0x18] sm:$0xff] %vm476, %v471
        %481 = vst.msk [vmem:[%s461 + $0x20] sm:$0xff] %vm476, %v472
        %482 = vst.msk [vmem:[%s461 + $0x28] sm:$0xff] %vm476, %v473
        %483 = vst.msk [vmem:[%s461 + $0x30] sm:$0xff] %vm476, %v474
        %484 = vst.msk [vmem:[%s461 + $0x38] sm:$0xff] %vm476, %v475
      $region56: #{vit_forward.4} parent=51 // pred_fallthru
        _
      %v485 = vld [vmem:[%s461] sm:$0xff]
      %v486 = vld [vmem:[%s461 + $0x8] sm:$0xff]
      %v487 = vld [vmem:[%s461 + $0x10] sm:$0xff]
      %v488 = vld [vmem:[%s461 + $0x18] sm:$0xff]
      %v489 = vld [vmem:[%s461 + $0x20] sm:$0xff]
      %v490 = vld [vmem:[%s461 + $0x28] sm:$0xff]
      %v491 = vld [vmem:[%s461 + $0x30] sm:$0xff]
      %v492 = vld [vmem:[%s461 + $0x38] sm:$0xff]
      %v493 = vld [vmem:[%s425] sm:$0xff]
      %vm494 = vcmask 261120
      %v495 = vsel %vm494, %v485, 0.0
      %496 = vadd.xlane.f32.xlu0 %v495
      %v497 = vpop.xlane.xlu0 %496
      %v498 = vsel %vm494, %v486, 0.0
      %499 = vadd.xlane.f32.xlu0 %v498
      %v500 = vpop.xlane.xlu0 %499
      %v501 = vsel %vm494, %v487, 0.0
      %502 = vadd.xlane.f32.xlu0 %v501
      %v503 = vpop.xlane.xlu0 %502
      %v504 = vsel %vm494, %v488, 0.0
      %505 = vadd.xlane.f32.xlu0 %v504
      %v506 = vpop.xlane.xlu0 %505
      %v507 = vsel %vm494, %v489, 0.0
      %508 = vadd.xlane.f32.xlu0 %v507
      %v509 = vpop.xlane.xlu0 %508
      %v510 = vsel %vm494, %v490, 0.0
      %511 = vadd.xlane.f32.xlu0 %v510
      %v512 = vpop.xlane.xlu0 %511
      %v513 = vsel %vm494, %v491, 0.0
      %514 = vadd.xlane.f32.xlu0 %v513
      %v515 = vpop.xlane.xlu0 %514
      %v516 = vsel %vm494, %v492, 0.0
      %517 = vadd.xlane.f32.xlu0 %v516
      %v518 = vpop.xlane.xlu0 %517
      %v519 = vrcp.pop 32.0
      %v520 = vmul.f32 %v497, %v519
      %v521 = vmul.f32 %v500, %v519
      %v522 = vmul.f32 %v503, %v519
      %v523 = vmul.f32 %v506, %v519
      %v524 = vmul.f32 %v509, %v519
      %v525 = vmul.f32 %v512, %v519
      %v526 = vmul.f32 %v515, %v519
      %v527 = vmul.f32 %v518, %v519
      %v528 = vsub.f32 %v485, %v520
      %v529 = vsub.f32 %v486, %v521
      %v530 = vsub.f32 %v487, %v522
      %v531 = vsub.f32 %v488, %v523
      %v532 = vsub.f32 %v489, %v524
      %v533 = vsub.f32 %v490, %v525
      %v534 = vsub.f32 %v491, %v526
      %v535 = vsub.f32 %v492, %v527
      %v536 = vmul.f32 %v528, %v528
      %v537 = vmul.f32 %v529, %v529
      %v538 = vmul.f32 %v530, %v530
      %v539 = vmul.f32 %v531, %v531
      %v540 = vmul.f32 %v532, %v532
      %v541 = vmul.f32 %v533, %v533
      %v542 = vmul.f32 %v534, %v534
      %v543 = vmul.f32 %v535, %v535
      %v544 = vsel %vm494, %v536, 0.0
      %545 = vadd.xlane.f32.xlu0 %v544
      %v546 = vpop.xlane.xlu0 %545
      %v547 = vsel %vm494, %v537, 0.0
      %548 = vadd.xlane.f32.xlu0 %v547
      %v549 = vpop.xlane.xlu0 %548
      %v550 = vsel %vm494, %v538, 0.0
      %551 = vadd.xlane.f32.xlu0 %v550
      %v552 = vpop.xlane.xlu0 %551
      %v553 = vsel %vm494, %v539, 0.0
      %554 = vadd.xlane.f32.xlu0 %v553
      %v555 = vpop.xlane.xlu0 %554
      %v556 = vsel %vm494, %v540, 0.0
      %557 = vadd.xlane.f32.xlu0 %v556
      %v558 = vpop.xlane.xlu0 %557
      %v559 = vsel %vm494, %v541, 0.0
      %560 = vadd.xlane.f32.xlu0 %v559
      %v561 = vpop.xlane.xlu0 %560
      %v562 = vsel %vm494, %v542, 0.0
      %563 = vadd.xlane.f32.xlu0 %v562
      %v564 = vpop.xlane.xlu0 %563
      %v565 = vsel %vm494, %v543, 0.0
      %566 = vadd.xlane.f32.xlu0 %v565
      %v567 = vpop.xlane.xlu0 %566
      %v568 = vmul.f32 %v546, %v519
      %v569 = vmul.f32 %v549, %v519
      %v570 = vmul.f32 %v552, %v519
      %v571 = vmul.f32 %v555, %v519
      %v572 = vmul.f32 %v558, %v519
      %v573 = vmul.f32 %v561, %v519
      %v574 = vmul.f32 %v564, %v519
      %v575 = vmul.f32 %v567, %v519
      %v576 = vadd.f32 %v568, 1e-05
      %v577 = vadd.f32 %v569, 1e-05
      %v578 = vadd.f32 %v570, 1e-05
      %v579 = vadd.f32 %v571, 1e-05
      %v580 = vadd.f32 %v572, 1e-05
      %v581 = vadd.f32 %v573, 1e-05
      %v582 = vadd.f32 %v574, 1e-05
      %v583 = vadd.f32 %v575, 1e-05
      %v584 = vrsqrt.pop %v576
      %v585 = vrsqrt.pop %v577
      %v586 = vrsqrt.pop %v578
      %v587 = vrsqrt.pop %v579
      %v588 = vrsqrt.pop %v580
      %v589 = vrsqrt.pop %v581
      %v590 = vrsqrt.pop %v582
      %v591 = vrsqrt.pop %v583
      %v592 = vmul.f32 %v528, %v584
      %v593 = vmul.f32 %v529, %v585
      %v594 = vmul.f32 %v530, %v586
      %v595 = vmul.f32 %v531, %v587
      %v596 = vmul.f32 %v532, %v588
      %v597 = vmul.f32 %v533, %v589
      %v598 = vmul.f32 %v534, %v590
      %v599 = vmul.f32 %v535, %v591
      %v600 = vlaneseq
      %v601 = vshrl.u32 %v600, 7
      %v602 = vsub.s32 0, %v601
      %v603 = vrot.slane %v493, %v602
      %v604 = vmul.f32 %v592, %v603
      %v605 = vmul.f32 %v593, %v603
      %v606 = vmul.f32 %v594, %v603
      %v607 = vmul.f32 %v595, %v603
      %v608 = vmul.f32 %v596, %v603
      %v609 = vmul.f32 %v597, %v603
      %v610 = vmul.f32 %v598, %v603
      %v611 = vmul.f32 %v599, %v603
      %v612 = vlaneseq
      %v613 = vshrl.u32 %v612, 7
      %v614 = vsub.s32 1, %v613
      %v615 = vrot.slane %v493, %v614
      %v616 = vadd.f32 %v604, %v615
      %v617 = vadd.f32 %v605, %v615
      %v618 = vadd.f32 %v606, %v615
      %v619 = vadd.f32 %v607, %v615
      %v620 = vadd.f32 %v608, %v615
      %v621 = vadd.f32 %v609, %v615
      %v622 = vadd.f32 %v610, %v615
      %v623 = vadd.f32 %v611, %v615
      %v624 = vpack.c.bf16 %v617, %v616
      %v625 = vpack.c.bf16 %v619, %v618
      %v626 = vpack.c.bf16 %v621, %v620
      %v627 = vpack.c.bf16 %v623, %v622
      %v628 = vld [vmem:[%s430] sm:$0xf]
      %v629 = vld [vmem:[%s430 + $0x4] sm:$0xf]
      %v630 = vld [vmem:[%s430 + $0x8] sm:$0xf]
      %v631 = vld [vmem:[%s430 + $0xc] sm:$0xf]
      %v636 = vunpack.c.l.b16 %v628
      %v637 = vunpack.c.l.b16 %v629
      %v638 = vunpack.c.l.b16 %v630
      %v639 = vunpack.c.l.b16 %v631
      %v640 = vpack.c.b16 %v637, %v636
      %v641 = vpack.c.b16 %v639, %v638
      %v645 = vsel %vm494, %v624, 0
      %v648 = vsel %vm494, %v625, 0
      %v651 = vsel %vm494, %v626, 0
      %v654 = vsel %vm494, %v627, 0
      %656 = vmatprep.subr.bf16.mxu0 0
      %657 = vmatpush1.bf16.msra.mxu0 %v640
      %658 = vmatprep.subr.bf16.mxu0 0
      %659 = vmatpush1.bf16.msra.mxu0 %v641
      %660 = vmatprep.subr.bf16.mxu0 0
      %661 = vmatpush1.bf16.msra.mxu0 0
      %662 = vmatprep.subr.bf16.mxu0 0
      %663 = vmatpush1.bf16.msra.mxu0 0
      %664 = vmatprep.subr.bf16.mxu0 0
      %665 = vmatpush1.bf16.msra.mxu0 0
      %666 = vmatprep.subr.bf16.mxu0 0
      %667 = vmatpush1.bf16.msra.mxu0 0
      %668 = vmatprep.subr.bf16.mxu0 0
      %669 = vmatpush1.bf16.msra.mxu0 0
      %670 = vmatprep.subr.bf16.mxu0 0
      %671 = vmatpush1.bf16.msra.mxu0 0
      %672 = vmatprep.subr.bf16.mxu0 0
      %673 = vmatpush1.bf16.msra.mxu0 0
      %674 = vmatprep.subr.bf16.mxu0 0
      %675 = vmatpush1.bf16.msra.mxu0 0
      %676 = vmatprep.subr.bf16.mxu0 0
      %677 = vmatpush1.bf16.msra.mxu0 0
      %678 = vmatprep.subr.bf16.mxu0 0
      %679 = vmatpush1.bf16.msra.mxu0 0
      %680 = vmatprep.subr.bf16.mxu0 0
      %681 = vmatpush1.bf16.msra.mxu0 0
      %682 = vmatprep.subr.bf16.mxu0 0
      %683 = vmatpush1.bf16.msra.mxu0 0
      %684 = vmatprep.subr.bf16.mxu0 0
      %685 = vmatpush1.bf16.msra.mxu0 0
      %686 = vmatprep.subr.bf16.mxu0 0
      %687 = vmatpush1.bf16.msra.mxu0 0
      %688 = vmatprep.mubr.bf16.mxu0 0
      %689 = vmatmul.mubr.bf16.gmra.mrb[0].mxu0 %v645
      %v690 = vpop.f32.mrb[0].mxu0
      %v691 = vadd.f32 0.0, %v690
      %v692 = vpop.f32.mrb[0].mxu0
      %v693 = vpop.f32.mrb[0].mxu0
      %v694 = vadd.f32 0.0, %v693
      %v695 = vpop.f32.mrb[0].mxu0
      %696 = vmatprep.mubr.bf16.mxu0 0
      %697 = vmatmul.mubr.bf16.gmra.mrb[0].mxu0 %v648
      %v698 = vpop.f32.mrb[0].mxu0
      %v699 = vadd.f32 0.0, %v698
      %v700 = vpop.f32.mrb[0].mxu0
      %v701 = vpop.f32.mrb[0].mxu0
      %v702 = vadd.f32 0.0, %v701
      %v703 = vpop.f32.mrb[0].mxu0
      %704 = vmatprep.mubr.bf16.mxu0 0
      %705 = vmatmul.mubr.bf16.gmra.mrb[0].mxu0 %v651
      %v706 = vpop.f32.mrb[0].mxu0
      %v707 = vadd.f32 0.0, %v706
      %v708 = vpop.f32.mrb[0].mxu0
      %v709 = vpop.f32.mrb[0].mxu0
      %v710 = vadd.f32 0.0, %v709
      %v711 = vpop.f32.mrb[0].mxu0
      %712 = vmatprep.mubr.bf16.mxu0 0
      %713 = vmatmul.mubr.bf16.gmra.mrb[0].mxu0 %v654
      %v714 = vpop.f32.mrb[0].mxu0
      %v715 = vadd.f32 0.0, %v714
      %v716 = vpop.f32.mrb[0].mxu0
      %v717 = vpop.f32.mrb[0].mxu0
      %v718 = vadd.f32 0.0, %v717
      %v719 = vpop.f32.mrb[0].mxu0
      %720 = vdwg.mxu0
      %v721 = vpack.c.bf16 %v694, %v691
      %v722 = vpack.c.bf16 %v702, %v699
      %v723 = vpack.c.bf16 %v710, %v707
      %v724 = vpack.c.bf16 %v718, %v715
      %725 = vst.msk [vmem:[#allocation3] sm:$0xff] %vm494, %v721
      %726 = vst.msk [vmem:[#allocation3 + $0x8] sm:$0xff] %vm494, %v722
      %727 = vst.msk [vmem:[#allocation3 + $0x10] sm:$0xff] %vm494, %v723
      %728 = vst.msk [vmem:[#allocation3 + $0x18] sm:$0xff] %vm494, %v724
      %v729 = vld [vmem:[%s435] sm:$0xf]
      %v730 = vld [vmem:[%s435 + $0x4] sm:$0xf]
      %v731 = vld [vmem:[%s435 + $0x8] sm:$0xf]
      %v732 = vld [vmem:[%s435 + $0xc] sm:$0xf]
      %v737 = vunpack.c.l.b16 %v729
      %v738 = vunpack.c.l.b16 %v730
      %v739 = vunpack.c.l.b16 %v731
      %v740 = vunpack.c.l.b16 %v732
      %v741 = vpack.c.b16 %v738, %v737
      %v742 = vpack.c.b16 %v740, %v739
      %745 = vmatprep.subr.bf16.mxu0 0
      %746 = vmatpush1.bf16.msra.mxu0 %v741
      %747 = vmatprep.subr.bf16.mxu0 0
      %748 = vmatpush1.bf16.msra.mxu0 %v742
      %749 = vmatprep.subr.bf16.mxu0 0
      %750 = vmatpush1.bf16.msra.mxu0 0
      %751 = vmatprep.subr.bf16.mxu0 0
      %752 = vmatpush1.bf16.msra.mxu0 0
      %753 = vmatprep.subr.bf16.mxu0 0
      %754 = vmatpush1.bf16.msra.mxu0 0
      %755 = vmatprep.subr.bf16.mxu0 0
      %756 = vmatpush1.bf16.msra.mxu0 0
      %757 = vmatprep.subr.bf16.mxu0 0
      %758 = vmatpush1.bf16.msra.mxu0 0
      %759 = vmatprep.subr.bf16.mxu0 0
      %760 = vmatpush1.bf16.msra.mxu0 0
      %761 = vmatprep.subr.bf16.mxu0 0
      %762 = vmatpush1.bf16.msra.mxu0 0
      %763 = vmatprep.subr.bf16.mxu0 0
      %764 = vmatpush1.bf16.msra.mxu0 0
      %765 = vmatprep.subr.bf16.mxu0 0
      %766 = vmatpush1.bf16.msra.mxu0 0
      %767 = vmatprep.subr.bf16.mxu0 0
      %768 = vmatpush1.bf16.msra.mxu0 0
      %769 = vmatprep.subr.bf16.mxu0 0
      %770 = vmatpush1.bf16.msra.mxu0 0
      %771 = vmatprep.subr.bf16.mxu0 0
      %772 = vmatpush1.bf16.msra.mxu0 0
      %773 = vmatprep.subr.bf16.mxu0 0
      %774 = vmatpush1.bf16.msra.mxu0 0
      %775 = vmatprep.subr.bf16.mxu0 0
      %776 = vmatpush1.bf16.msra.mxu0 0
      %777 = vmatprep.mubr.bf16.mxu0 0
      %778 = vmatmul.mubr.bf16.gmra.mrb[0].mxu0 %v645
      %v779 = vpop.f32.mrb[0].mxu0
      %v780 = vadd.f32 0.0, %v779
      %v781 = vpop.f32.mrb[0].mxu0
      %v782 = vpop.f32.mrb[0].mxu0
      %v783 = vadd.f32 0.0, %v782
      %v784 = vpop.f32.mrb[0].mxu0
      %785 = vmatprep.mubr.bf16.mxu0 0
      %786 = vmatmul.mubr.bf16.gmra.mrb[0].mxu0 %v648
      %v787 = vpop.f32.mrb[0].mxu0
      %v788 = vadd.f32 0.0, %v787
      %v789 = vpop.f32.mrb[0].mxu0
      %v790 = vpop.f32.mrb[0].mxu0
      %v791 = vadd.f32 0.0, %v790
      %v792 = vpop.f32.mrb[0].mxu0
      %793 = vmatprep.mubr.bf16.mxu0 0
      %794 = vmatmul.mubr.bf16.gmra.mrb[0].mxu0 %v651
      %v795 = vpop.f32.mrb[0].mxu0
      %v796 = vadd.f32 0.0, %v795
      %v797 = vpop.f32.mrb[0].mxu0
      %v798 = vpop.f32.mrb[0].mxu0
      %v799 = vadd.f32 0.0, %v798
      %v800 = vpop.f32.mrb[0].mxu0
      %801 = vmatprep.mubr.bf16.mxu0 0
      %802 = vmatmul.mubr.bf16.gmra.mrb[0].mxu0 %v654
      %v803 = vpop.f32.mrb[0].mxu0
      %v804 = vadd.f32 0.0, %v803
      %v805 = vpop.f32.mrb[0].mxu0
      %v806 = vpop.f32.mrb[0].mxu0
      %v807 = vadd.f32 0.0, %v806
      %v808 = vpop.f32.mrb[0].mxu0
      %809 = vdwg.mxu0
      %v810 = vpack.c.bf16 %v783, %v780
      %v811 = vpack.c.bf16 %v791, %v788
      %v812 = vpack.c.bf16 %v799, %v796
      %v813 = vpack.c.bf16 %v807, %v804
      %814 = vst.msk [vmem:[#allocation4] sm:$0xff] %vm494, %v810
      %815 = vst.msk [vmem:[#allocation4 + $0x8] sm:$0xff] %vm494, %v811
      %816 = vst.msk [vmem:[#allocation4 + $0x10] sm:$0xff] %vm494, %v812
      %817 = vst.msk [vmem:[#allocation4 + $0x18] sm:$0xff] %vm494, %v813
      %v818 = vld [vmem:[%s440] sm:$0xf]
      %v819 = vld [vmem:[%s440 + $0x4] sm:$0xf]
      %v820 = vld [vmem:[%s440 + $0x8] sm:$0xf]
      %v821 = vld [vmem:[%s440 + $0xc] sm:$0xf]
      %v826 = vunpack.c.l.b16 %v818
      %v827 = vunpack.c.l.b16 %v819
      %v828 = vunpack.c.l.b16 %v820
      %v829 = vunpack.c.l.b16 %v821
      %v830 = vpack.c.b16 %v827, %v826
      %v831 = vpack.c.b16 %v829, %v828
      %834 = vmatprep.subr.bf16.mxu0 0
      %835 = vmatpush1.bf16.msra.mxu0 %v830
      %836 = vmatprep.subr.bf16.mxu0 0
      %837 = vmatpush1.bf16.msra.mxu0 %v831
      %838 = vmatprep.subr.bf16.mxu0 0
      %839 = vmatpush1.bf16.msra.mxu0 0
      %840 = vmatprep.subr.bf16.mxu0 0
      %841 = vmatpush1.bf16.msra.mxu0 0
      %842 = vmatprep.subr.bf16.mxu0 0
      %843 = vmatpush1.bf16.msra.mxu0 0
      %844 = vmatprep.subr.bf16.mxu0 0
      %845 = vmatpush1.bf16.msra.mxu0 0
      %846 = vmatprep.subr.bf16.mxu0 0
      %847 = vmatpush1.bf16.msra.mxu0 0
      %848 = vmatprep.subr.bf16.mxu0 0
      %849 = vmatpush1.bf16.msra.mxu0 0
      %850 = vmatprep.subr.bf16.mxu0 0
      %851 = vmatpush1.bf16.msra.mxu0 0
      %852 = vmatprep.subr.bf16.mxu0 0
      %853 = vmatpush1.bf16.msra.mxu0 0
      %854 = vmatprep.subr.bf16.mxu0 0
      %855 = vmatpush1.bf16.msra.mxu0 0
      %856 = vmatprep.subr.bf16.mxu0 0
      %857 = vmatpush1.bf16.msra.mxu0 0
      %858 = vmatprep.subr.bf16.mxu0 0
      %859 = vmatpush1.bf16.msra.mxu0 0
      %860 = vmatprep.subr.bf16.mxu0 0
      %861 = vmatpush1.bf16.msra.mxu0 0
      %862 = vmatprep.subr.bf16.mxu0 0
      %863 = vmatpush1.bf16.msra.mxu0 0
      %864 = vmatprep.subr.bf16.mxu0 0
      %865 = vmatpush1.bf16.msra.mxu0 0
      %866 = vmatprep.mubr.bf16.mxu0 0
      %867 = vmatmul.mubr.bf16.gmra.mrb[0].mxu0 %v645
      %v868 = vpop.f32.mrb[0].mxu0
      %v869 = vadd.f32 0.0, %v868
      %v870 = vpop.f32.mrb[0].mxu0
      %v871 = vpop.f32.mrb[0].mxu0
      %v872 = vadd.f32 0.0, %v871
      %v873 = vpop.f32.mrb[0].mxu0
      %874 = vmatprep.mubr.bf16.mxu0 0
      %875 = vmatmul.mubr.bf16.gmra.mrb[0].mxu0 %v648
      %v876 = vpop.f32.mrb[0].mxu0
      %v877 = vadd.f32 0.0, %v876
      %v878 = vpop.f32.mrb[0].mxu0
      %v879 = vpop.f32.mrb[0].mxu0
      %v880 = vadd.f32 0.0, %v879
      %v881 = vpop.f32.mrb[0].mxu0
      %882 = vmatprep.mubr.bf16.mxu0 0
      %883 = vmatmul.mubr.bf16.gmra.mrb[0].mxu0 %v651
      %v884 = vpop.f32.mrb[0].mxu0
      %v885 = vadd.f32 0.0, %v884
      %v886 = vpop.f32.mrb[0].mxu0
      %v887 = vpop.f32.mrb[0].mxu0
      %v888 = vadd.f32 0.0, %v887
      %v889 = vpop.f32.mrb[0].mxu0
      %890 = vmatprep.mubr.bf16.mxu0 0
      %891 = vmatmul.mubr.bf16.gmra.mrb[0].mxu0 %v654
      %v892 = vpop.f32.mrb[0].mxu0
      %v893 = vadd.f32 0.0, %v892
      %v894 = vpop.f32.mrb[0].mxu0
      %v895 = vpop.f32.mrb[0].mxu0
      %v896 = vadd.f32 0.0, %v895
      %v897 = vpop.f32.mrb[0].mxu0
      %898 = vdwg.mxu0
      %v899 = vpack.c.bf16 %v872, %v869
      %v900 = vpack.c.bf16 %v880, %v877
      %v901 = vpack.c.bf16 %v888, %v885
      %v902 = vpack.c.bf16 %v896, %v893
      %903 = vst.msk [vmem:[#allocation5] sm:$0xff] %vm494, %v899
      %904 = vst.msk [vmem:[#allocation5 + $0x8] sm:$0xff] %vm494, %v900
      %905 = vst.msk [vmem:[#allocation5 + $0x10] sm:$0xff] %vm494, %v901
      %906 = vst.msk [vmem:[#allocation5 + $0x18] sm:$0xff] %vm494, %v902
      %v907 = vlaneseq
      %v908 = vand.u32 %v907, 127
      %vm909 = vcmp.lt.s32.totalorder %v908, 17
      %v910 = vsel %vm909, 0.0, -1e+30
      loop: start=0, step=1, limit=2
      $region57: #{vit_forward.4} parent=51 // loop_pre_header
        _
      $region58: #{vit_forward.4} parent=51 // loop_header
        %s912 = sphi 0, %s916
        %p913 = scmp.ge.s32.totalorder %s912, 2
      $region59: #{vit_forward.4} parent=51 // loop_header_branch
        %915 = sbr.rel (%p913) target = $region63
      $region60: #{vit_forward.4} parent=51 // loop_body
        %s917 = smul.u32 %s912, 32
        %s918 = sshra.s32 %s917, 4
        %s919 = sand.u32 %s917, 15
        %s920 = smul.addr %s918, 8
        %s921 = scalar_lea.vmem [#allocation3], %s920
        %v922 = vld [vmem:[%s921] sm:$0xff]
        %v923 = vld [vmem:[%s921 + $0x8] sm:$0xff]
        %s924 = smul.addr %s918, 8
        %s925 = scalar_lea.vmem [#allocation4], %s924
        %v926 = vld [vmem:[%s925] sm:$0xff]
        %v927 = vld [vmem:[%s925 + $0x8] sm:$0xff]
        %s928 = smul.addr %s918, 8
        %s929 = scalar_lea.vmem [#allocation5], %s928
        %v930 = vld [vmem:[%s929] sm:$0xff]
        %v931 = vld [vmem:[%s929 + $0x8] sm:$0xff]
        %vm932 = vcmask 64512
        %v934 = vsel %vm932, %v922, 0
        %v937 = vsel %vm932, %v923, 0
        %v940 = vsel %vm932, %v926, 0
        %v943 = vsel %vm932, %v927, 0
        %945 = vmatprep.subr.bf16.mxu0 0
        %946 = vmatpush1.bf16.xpose.msra.mxu0 %v940
        %947 = vmatprep.subr.bf16.mxu0 0
        %948 = vmatpush1.bf16.xpose.msra.mxu0 %v943
        %949 = vmatprep.subr.bf16.mxu0 0
        %950 = vmatpush1.bf16.xpose.msra.mxu0 0
        %951 = vmatprep.subr.bf16.mxu0 0
        %952 = vmatpush1.bf16.xpose.msra.mxu0 0
        %953 = vmatprep.subr.bf16.mxu0 0
        %954 = vmatpush1.bf16.xpose.msra.mxu0 0
        %955 = vmatprep.subr.bf16.mxu0 0
        %956 = vmatpush1.bf16.xpose.msra.mxu0 0
        %957 = vmatprep.subr.bf16.mxu0 0
        %958 = vmatpush1.bf16.xpose.msra.mxu0 0
        %959 = vmatprep.subr.bf16.mxu0 0
        %960 = vmatpush1.bf16.xpose.msra.mxu0 0
        %961 = vmatprep.subr.bf16.mxu0 0
        %962 = vmatpush1.bf16.xpose.msra.mxu0 0
        %963 = vmatprep.subr.bf16.mxu0 0
        %964 = vmatpush1.bf16.xpose.msra.mxu0 0
        %965 = vmatprep.subr.bf16.mxu0 0
        %966 = vmatpush1.bf16.xpose.msra.mxu0 0
        %967 = vmatprep.subr.bf16.mxu0 0
        %968 = vmatpush1.bf16.xpose.msra.mxu0 0
        %969 = vmatprep.subr.bf16.mxu0 0
        %970 = vmatpush1.bf16.xpose.msra.mxu0 0
        %971 = vmatprep.subr.bf16.mxu0 0
        %972 = vmatpush1.bf16.xpose.msra.mxu0 0
        %973 = vmatprep.subr.bf16.mxu0 0
        %974 = vmatpush1.bf16.xpose.msra.mxu0 0
        %975 = vmatprep.subr.bf16.mxu0 0
        %976 = vmatpush1.bf16.xpose.msra.mxu0 0
        %977 = vmatprep.mubr.bf16.mxu0 0
        %978 = vmatmul.mubr.bf16.gmra.mrb[0].mxu0 %v934
        %v979 = vpop.f32.mrb[0].mxu0
        %v980 = vadd.f32 %v910, %v979
        %v981 = vpop.f32.mrb[0].mxu0
        %v982 = vpop.f32.mrb[0].mxu0
        %v983 = vadd.f32 %v910, %v982
        %v984 = vpop.f32.mrb[0].mxu0
        %985 = vmatprep.mubr.bf16.mxu0 0
        %986 = vmatmul.mubr.bf16.gmra.mrb[0].mxu0 %v937
        %v987 = vpop.f32.mrb[0].mxu0
        %v988 = vadd.f32 %v910, %v987
        %v989 = vpop.f32.mrb[0].mxu0
        %v990 = vpop.f32.mrb[0].mxu0
        %v991 = vadd.f32 %v910, %v990
        %v992 = vpop.f32.mrb[0].mxu0
        %993 = vdwg.mxu0
        %v994 = vsel %vm494, %v980, -inf
        %995 = vmax.xlane.f32.xlu0 %v994
        %v996 = vpop.xlane.xlu0 %995
        %v997 = vsel %vm494, %v983, -inf
        %998 = vmax.xlane.f32.xlu0 %v997
        %v999 = vpop.xlane.xlu0 %998
        %v1000 = vsel %vm494, %v988, -inf
        %1001 = vmax.xlane.f32.xlu0 %v1000
        %v1002 = vpop.xlane.xlu0 %1001
        %v1003 = vsel %vm494, %v991, -inf
        %1004 = vmax.xlane.f32.xlu0 %v1003
        %v1005 = vpop.xlane.xlu0 %1004
        %v1006 = vsub.f32 %v980, %v996
        %v1007 = vsub.f32 %v983, %v999
        %v1008 = vsub.f32 %v988, %v1002
        %v1009 = vsub.f32 %v991, %v1005
        %v1010 = vmul.f32 %v1006, 1.442695
        %v1011 = vpow.pop %v1010
        %v1012 = vmul.f32 %v1007, 1.442695
        %v1013 = vpow.pop %v1012
        %v1014 = vmul.f32 %v1008, 1.442695
        %v1015 = vpow.pop %v1014
        %v1016 = vmul.f32 %v1009, 1.442695
        %v1017 = vpow.pop %v1016
        %v1018 = vsel %vm494, %v1011, 0.0
        %1019 = vadd.xlane.f32.xlu0 %v1018
        %v1020 = vpop.xlane.xlu0 %1019
        %v1021 = vsel %vm494, %v1013, 0.0
        %1022 = vadd.xlane.f32.xlu0 %v1021
        %v1023 = vpop.xlane.xlu0 %1022
        %v1024 = vsel %vm494, %v1015, 0.0
        %1025 = vadd.xlane.f32.xlu0 %v1024
        %v1026 = vpop.xlane.xlu0 %1025
        %v1027 = vsel %vm494, %v1017, 0.0
        %1028 = vadd.xlane.f32.xlu0 %v1027
        %v1029 = vpop.xlane.xlu0 %1028
        %v1030 = vrcp.pop %v1020
        %v1031 = vrcp.pop %v1023
        %v1032 = vrcp.pop %v1026
        %v1033 = vrcp.pop %v1029
        %v1034 = vmul.f32 %v1011, %v1030
        %v1035 = vmul.f32 %v1013, %v1031
        %v1036 = vmul.f32 %v1015, %v1032
        %v1037 = vmul.f32 %v1017, %v1033
        %v1038 = vpack.c.bf16 %v1035, %v1034
        %v1039 = vpack.c.bf16 %v1037, %v1036
        %v1041 = vsel %vm494, %v1038, 0
        %v1044 = vsel %vm494, %v1039, 0
        %1046 = vmatprep.subr.bf16.mxu0 0
        %1047 = vmatpush1.bf16.msra.mxu0 %v930
        %1048 = vmatprep.subr.bf16.mxu0 0
        %1049 = vmatpush1.bf16.msra.mxu0 %v931
        %1050 = vmatprep.subr.bf16.mxu0 0
        %1051 = vmatpush1.bf16.msra.mxu0 0
        %1052 = vmatprep.subr.bf16.mxu0 0
        %1053 = vmatpush1.bf16.msra.mxu0 0
        %1054 = vmatprep.subr.bf16.mxu0 0
        %1055 = vmatpush1.bf16.msra.mxu0 0
        %1056 = vmatprep.subr.bf16.mxu0 0
        %1057 = vmatpush1.bf16.msra.mxu0 0
        %1058 = vmatprep.subr.bf16.mxu0 0
        %1059 = vmatpush1.bf16.msra.mxu0 0
        %1060 = vmatprep.subr.bf16.mxu0 0
        %1061 = vmatpush1.bf16.msra.mxu0 0
        %1062 = vmatprep.subr.bf16.mxu0 0
        %1063 = vmatpush1.bf16.msra.mxu0 0
        %1064 = vmatprep.subr.bf16.mxu0 0
        %1065 = vmatpush1.bf16.msra.mxu0 0
        %1066 = vmatprep.subr.bf16.mxu0 0
        %1067 = vmatpush1.bf16.msra.mxu0 0
        %1068 = vmatprep.subr.bf16.mxu0 0
        %1069 = vmatpush1.bf16.msra.mxu0 0
        %1070 = vmatprep.subr.bf16.mxu0 0
        %1071 = vmatpush1.bf16.msra.mxu0 0
        %1072 = vmatprep.subr.bf16.mxu0 0
        %1073 = vmatpush1.bf16.msra.mxu0 0
        %1074 = vmatprep.subr.bf16.mxu0 0
        %1075 = vmatpush1.bf16.msra.mxu0 0
        %1076 = vmatprep.subr.bf16.mxu0 0
        %1077 = vmatpush1.bf16.msra.mxu0 0
        %1078 = vmatprep.mubr.bf16.mxu0 0
        %1079 = vmatmul.mubr.bf16.gmra.mrb[0].mxu0 %v1041
        %v1080 = vpop.f32.mrb[0].mxu0
        %v1081 = vadd.f32 0.0, %v1080
        %v1082 = vpop.f32.mrb[0].mxu0
        %v1083 = vpop.f32.mrb[0].mxu0
        %v1084 = vadd.f32 0.0, %v1083
        %v1085 = vpop.f32.mrb[0].mxu0
        %1086 = vmatprep.mubr.bf16.mxu0 0
        %1087 = vmatmul.mubr.bf16.gmra.mrb[0].mxu0 %v1044
        %v1088 = vpop.f32.mrb[0].mxu0
        %v1089 = vadd.f32 0.0, %v1088
        %v1090 = vpop.f32.mrb[0].mxu0
        %v1091 = vpop.f32.mrb[0].mxu0
        %v1092 = vadd.f32 0.0, %v1091
        %v1093 = vpop.f32.mrb[0].mxu0
        %1094 = vdwg.mxu0
        %v1095 = vpack.c.bf16 %v1084, %v1081
        %v1096 = vpack.c.bf16 %v1092, %v1089
        %1099 = vrot.lane.b32.xlu0 %v922, 120
        %v1100 = vpop.permute.xlu0 %1099
        %1101 = vrot.lane.b32.xlu0 %v923, 120
        %v1102 = vpop.permute.xlu0 %1101
        %1105 = vrot.lane.b32.xlu0 %v926, 120
        %v1106 = vpop.permute.xlu0 %1105
        %1107 = vrot.lane.b32.xlu0 %v927, 120
        %v1108 = vpop.permute.xlu0 %1107
        %v1110 = vsel %vm932, %v1100, 0
        %v1113 = vsel %vm932, %v1102, 0
        %v1116 = vsel %vm932, %v1106, 0
        %v1119 = vsel %vm932, %v1108, 0
        %1121 = vmatprep.subr.bf16.mxu0 0
        %1122 = vmatpush1.bf16.xpose.msra.mxu0 %v1116
        %1123 = vmatprep.subr.bf16.mxu0 0
        %1124 = vmatpush1.bf16.xpose.msra.mxu0 %v1119
        %1125 = vmatprep.subr.bf16.mxu0 0
        %1126 = vmatpush1.bf16.xpose.msra.mxu0 0
        %1127 = vmatprep.subr.bf16.mxu0 0
        %1128 = vmatpush1.bf16.xpose.msra.mxu0 0
        %1129 = vmatprep.subr.bf16.mxu0 0
        %1130 = vmatpush1.bf16.xpose.msra.mxu0 0
        %1131 = vmatprep.subr.bf16.mxu0 0
        %1132 = vmatpush1.bf16.xpose.msra.mxu0 0
        %1133 = vmatprep.subr.bf16.mxu0 0
        %1134 = vmatpush1.bf16.xpose.msra.mxu0 0
        %1135 = vmatprep.subr.bf16.mxu0 0
        %1136 = vmatpush1.bf16.xpose.msra.mxu0 0
        %1137 = vmatprep.subr.bf16.mxu0 0
        %1138 = vmatpush1.bf16.xpose.msra.mxu0 0
        %1139 = vmatprep.subr.bf16.mxu0 0
        %1140 = vmatpush1.bf16.xpose.msra.mxu0 0
        %1141 = vmatprep.subr.bf16.mxu0 0
        %1142 = vmatpush1.bf16.xpose.msra.mxu0 0
        %1143 = vmatprep.subr.bf16.mxu0 0
        %1144 = vmatpush1.bf16.xpose.msra.mxu0 0
        %1145 = vmatprep.subr.bf16.mxu0 0
        %1146 = vmatpush1.bf16.xpose.msra.mxu0 0
        %1147 = vmatprep.subr.bf16.mxu0 0
        %1148 = vmatpush1.bf16.xpose.msra.mxu0 0
        %1149 = vmatprep.subr.bf16.mxu0 0
        %1150 = vmatpush1.bf16.xpose.msra.mxu0 0
        %1151 = vmatprep.subr.bf16.mxu0 0
        %1152 = vmatpush1.bf16.xpose.msra.mxu0 0
        %1153 = vmatprep.mubr.bf16.mxu0 0
        %1154 = vmatmul.mubr.bf16.gmra.mrb[0].mxu0 %v1110
        %v1155 = vpop.f32.mrb[0].mxu0
        %v1156 = vadd.f32 %v910, %v1155
        %v1157 = vpop.f32.mrb[0].mxu0
        %v1158 = vpop.f32.mrb[0].mxu0
        %v1159 = vadd.f32 %v910, %v1158
        %v1160 = vpop.f32.mrb[0].mxu0
        %1161 = vmatprep.mubr.bf16.mxu0 0
        %1162 = vmatmul.mubr.bf16.gmra.mrb[0].mxu0 %v1113
        %v1163 = vpop.f32.mrb[0].mxu0
        %v1164 = vadd.f32 %v910, %v1163
        %v1165 = vpop.f32.mrb[0].mxu0
        %v1166 = vpop.f32.mrb[0].mxu0
        %v1167 = vadd.f32 %v910, %v1166
        %v1168 = vpop.f32.mrb[0].mxu0
        %1169 = vdwg.mxu0
        %v1170 = vsel %vm494, %v1156, -inf
        %1171 = vmax.xlane.f32.xlu0 %v1170
        %v1172 = vpop.xlane.xlu0 %1171
        %v1173 = vsel %vm494, %v1159, -inf
        %1174 = vmax.xlane.f32.xlu0 %v1173
        %v1175 = vpop.xlane.xlu0 %1174
        %v1176 = vsel %vm494, %v1164, -inf
        %1177 = vmax.xlane.f32.xlu0 %v1176
        %v1178 = vpop.xlane.xlu0 %1177
        %v1179 = vsel %vm494, %v1167, -inf
        %1180 = vmax.xlane.f32.xlu0 %v1179
        %v1181 = vpop.xlane.xlu0 %1180
        %v1182 = vsub.f32 %v1156, %v1172
        %v1183 = vsub.f32 %v1159, %v1175
        %v1184 = vsub.f32 %v1164, %v1178
        %v1185 = vsub.f32 %v1167, %v1181
        %v1186 = vmul.f32 %v1182, 1.442695
        %v1187 = vpow.pop %v1186
        %v1188 = vmul.f32 %v1183, 1.442695
        %v1189 = vpow.pop %v1188
        %v1190 = vmul.f32 %v1184, 1.442695
        %v1191 = vpow.pop %v1190
        %v1192 = vmul.f32 %v1185, 1.442695
        %v1193 = vpow.pop %v1192
        %v1194 = vsel %vm494, %v1187, 0.0
        %1195 = vadd.xlane.f32.xlu0 %v1194
        %v1196 = vpop.xlane.xlu0 %1195
        %v1197 = vsel %vm494, %v1189, 0.0
        %1198 = vadd.xlane.f32.xlu0 %v1197
        %v1199 = vpop.xlane.xlu0 %1198
        %v1200 = vsel %vm494, %v1191, 0.0
        %1201 = vadd.xlane.f32.xlu0 %v1200
        %v1202 = vpop.xlane.xlu0 %1201
        %v1203 = vsel %vm494, %v1193, 0.0
        %1204 = vadd.xlane.f32.xlu0 %v1203
        %v1205 = vpop.xlane.xlu0 %1204
        %v1206 = vrcp.pop %v1196
        %v1207 = vrcp.pop %v1199
        %v1208 = vrcp.pop %v1202
        %v1209 = vrcp.pop %v1205
        %v1210 = vmul.f32 %v1187, %v1206
        %v1211 = vmul.f32 %v1189, %v1207
        %v1212 = vmul.f32 %v1191, %v1208
        %v1213 = vmul.f32 %v1193, %v1209
        %v1214 = vpack.c.bf16 %v1211, %v1210
        %v1215 = vpack.c.bf16 %v1213, %v1212
        %1218 = vrot.lane.b32.xlu0 %v930, 120
        %v1219 = vpop.permute.xlu0 %1218
        %1220 = vrot.lane.b32.xlu0 %v931, 120
        %v1221 = vpop.permute.xlu0 %1220
        %v1225 = vsel %vm494, %v1214, 0
        %v1228 = vsel %vm494, %v1215, 0
        %1230 = vmatprep.subr.bf16.mxu0 0
        %1231 = vmatpush1.bf16.msra.mxu0 %v1219
        %1232 = vmatprep.subr.bf16.mxu0 0
        %1233 = vmatpush1.bf16.msra.mxu0 %v1221
        %1234 = vmatprep.subr.bf16.mxu0 0
        %1235 = vmatpush1.bf16.msra.mxu0 0
        %1236 = vmatprep.subr.bf16.mxu0 0
        %1237 = vmatpush1.bf16.msra.mxu0 0
        %1238 = vmatprep.subr.bf16.mxu0 0
        %1239 = vmatpush1.bf16.msra.mxu0 0
        %1240 = vmatprep.subr.bf16.mxu0 0
        %1241 = vmatpush1.bf16.msra.mxu0 0
        %1242 = vmatprep.subr.bf16.mxu0 0
        %1243 = vmatpush1.bf16.msra.mxu0 0
        %1244 = vmatprep.subr.bf16.mxu0 0
        %1245 = vmatpush1.bf16.msra.mxu0 0
        %1246 = vmatprep.subr.bf16.mxu0 0
        %1247 = vmatpush1.bf16.msra.mxu0 0
        %1248 = vmatprep.subr.bf16.mxu0 0
        %1249 = vmatpush1.bf16.msra.mxu0 0
        %1250 = vmatprep.subr.bf16.mxu0 0
        %1251 = vmatpush1.bf16.msra.mxu0 0
        %1252 = vmatprep.subr.bf16.mxu0 0
        %1253 = vmatpush1.bf16.msra.mxu0 0
        %1254 = vmatprep.subr.bf16.mxu0 0
        %1255 = vmatpush1.bf16.msra.mxu0 0
        %1256 = vmatprep.subr.bf16.mxu0 0
        %1257 = vmatpush1.bf16.msra.mxu0 0
        %1258 = vmatprep.subr.bf16.mxu0 0
        %1259 = vmatpush1.bf16.msra.mxu0 0
        %1260 = vmatprep.subr.bf16.mxu0 0
        %1261 = vmatpush1.bf16.msra.mxu0 0
        %1262 = vmatprep.mubr.bf16.mxu0 0
        %1263 = vmatmul.mubr.bf16.gmra.mrb[0].mxu0 %v1225
        %v1264 = vpop.f32.mrb[0].mxu0
        %v1265 = vadd.f32 0.0, %v1264
        %v1266 = vpop.f32.mrb[0].mxu0
        %v1267 = vpop.f32.mrb[0].mxu0
        %v1268 = vadd.f32 0.0, %v1267
        %v1269 = vpop.f32.mrb[0].mxu0
        %1270 = vmatprep.mubr.bf16.mxu0 0
        %1271 = vmatmul.mubr.bf16.gmra.mrb[0].mxu0 %v1228
        %v1272 = vpop.f32.mrb[0].mxu0
        %v1273 = vadd.f32 0.0, %v1272
        %v1274 = vpop.f32.mrb[0].mxu0
        %v1275 = vpop.f32.mrb[0].mxu0
        %v1276 = vadd.f32 0.0, %v1275
        %v1277 = vpop.f32.mrb[0].mxu0
        %1278 = vdwg.mxu0
        %v1279 = vpack.c.bf16 %v1268, %v1265
        %v1280 = vpack.c.bf16 %v1276, %v1273
        %1281 = vrot.lane.b32.xlu0 %v922, 112
        %v1282 = vpop.permute.xlu0 %1281
        %1283 = vrot.lane.b32.xlu0 %v923, 112
        %v1284 = vpop.permute.xlu0 %1283
        %1285 = vrot.lane.b32.xlu0 %v926, 112
        %v1286 = vpop.permute.xlu0 %1285
        %1287 = vrot.lane.b32.xlu0 %v927, 112
        %v1288 = vpop.permute.xlu0 %1287
        %v1290 = vsel %vm932, %v1282, 0
        %v1293 = vsel %vm932, %v1284, 0
        %v1296 = vsel %vm932, %v1286, 0
        %v1299 = vsel %vm932, %v1288, 0
        %1301 = vmatprep.subr.bf16.mxu0 0
        %1302 = vmatpush1.bf16.xpose.msra.mxu0 %v1296
        %1303 = vmatprep.subr.bf16.mxu0 0
        %1304 = vmatpush1.bf16.xpose.msra.mxu0 %v1299
        %1305 = vmatprep.subr.bf16.mxu0 0
        %1306 = vmatpush1.bf16.xpose.msra.mxu0 0
        %1307 = vmatprep.subr.bf16.mxu0 0
        %1308 = vmatpush1.bf16.xpose.msra.mxu0 0
        %1309 = vmatprep.subr.bf16.mxu0 0
        %1310 = vmatpush1.bf16.xpose.msra.mxu0 0
        %1311 = vmatprep.subr.bf16.mxu0 0
        %1312 = vmatpush1.bf16.xpose.msra.mxu0 0
        %1313 = vmatprep.subr.bf16.mxu0 0
        %1314 = vmatpush1.bf16.xpose.msra.mxu0 0
        %1315 = vmatprep.subr.bf16.mxu0 0
        %1316 = vmatpush1.bf16.xpose.msra.mxu0 0
        %1317 = vmatprep.subr.bf16.mxu0 0
        %1318 = vmatpush1.bf16.xpose.msra.mxu0 0
        %1319 = vmatprep.subr.bf16.mxu0 0
        %1320 = vmatpush1.bf16.xpose.msra.mxu0 0
        %1321 = vmatprep.subr.bf16.mxu0 0
        %1322 = vmatpush1.bf16.xpose.msra.mxu0 0
        %1323 = vmatprep.subr.bf16.mxu0 0
        %1324 = vmatpush1.bf16.xpose.msra.mxu0 0
        %1325 = vmatprep.subr.bf16.mxu0 0
        %1326 = vmatpush1.bf16.xpose.msra.mxu0 0
        %1327 = vmatprep.subr.bf16.mxu0 0
        %1328 = vmatpush1.bf16.xpose.msra.mxu0 0
        %1329 = vmatprep.subr.bf16.mxu0 0
        %1330 = vmatpush1.bf16.xpose.msra.mxu0 0
        %1331 = vmatprep.subr.bf16.mxu0 0
        %1332 = vmatpush1.bf16.xpose.msra.mxu0 0
        %1333 = vmatprep.mubr.bf16.mxu0 0
        %1334 = vmatmul.mubr.bf16.gmra.mrb[0].mxu0 %v1290
        %v1335 = vpop.f32.mrb[0].mxu0
        %v1336 = vadd.f32 %v910, %v1335
        %v1337 = vpop.f32.mrb[0].mxu0
        %v1338 = vpop.f32.mrb[0].mxu0
        %v1339 = vadd.f32 %v910, %v1338
        %v1340 = vpop.f32.mrb[0].mxu0
        %1341 = vmatprep.mubr.bf16.mxu0 0
        %1342 = vmatmul.mubr.bf16.gmra.mrb[0].mxu0 %v1293
        %v1343 = vpop.f32.mrb[0].mxu0
        %v1344 = vadd.f32 %v910, %v1343
        %v1345 = vpop.f32.mrb[0].mxu0
        %v1346 = vpop.f32.mrb[0].mxu0
        %v1347 = vadd.f32 %v910, %v1346
        %v1348 = vpop.f32.mrb[0].mxu0
        %1349 = vdwg.mxu0
        %v1350 = vsel %vm494, %v1336, -inf
        %1351 = vmax.xlane.f32.xlu0 %v1350
        %v1352 = vpop.xlane.xlu0 %1351
        %v1353 = vsel %vm494, %v1339, -inf
        %1354 = vmax.xlane.f32.xlu0 %v1353
        %v1355 = vpop.xlane.xlu0 %1354
        %v1356 = vsel %vm494, %v1344, -inf
        %1357 = vmax.xlane.f32.xlu0 %v1356
        %v1358 = vpop.xlane.xlu0 %1357
        %v1359 = vsel %vm494, %v1347, -inf
        %1360 = vmax.xlane.f32.xlu0 %v1359
        %v1361 = vpop.xlane.xlu0 %1360
        %v1362 = vsub.f32 %v1336, %v1352
        %v1363 = vsub.f32 %v1339, %v1355
        %v1364 = vsub.f32 %v1344, %v1358
        %v1365 = vsub.f32 %v1347, %v1361
        %v1366 = vmul.f32 %v1362, 1.442695
        %v1367 = vpow.pop %v1366
        %v1368 = vmul.f32 %v1363, 1.442695
        %v1369 = vpow.pop %v1368
        %v1370 = vmul.f32 %v1364, 1.442695
        %v1371 = vpow.pop %v1370
        %v1372 = vmul.f32 %v1365, 1.442695
        %v1373 = vpow.pop %v1372
        %v1374 = vsel %vm494, %v1367, 0.0
        %1375 = vadd.xlane.f32.xlu0 %v1374
        %v1376 = vpop.xlane.xlu0 %1375
        %v1377 = vsel %vm494, %v1369, 0.0
        %1378 = vadd.xlane.f32.xlu0 %v1377
        %v1379 = vpop.xlane.xlu0 %1378
        %v1380 = vsel %vm494, %v1371, 0.0
        %1381 = vadd.xlane.f32.xlu0 %v1380
        %v1382 = vpop.xlane.xlu0 %1381
        %v1383 = vsel %vm494, %v1373, 0.0
        %1384 = vadd.xlane.f32.xlu0 %v1383
        %v1385 = vpop.xlane.xlu0 %1384
        %v1386 = vrcp.pop %v1376
        %v1387 = vrcp.pop %v1379
        %v1388 = vrcp.pop %v1382
        %v1389 = vrcp.pop %v1385
        %v1390 = vmul.f32 %v1367, %v1386
        %v1391 = vmul.f32 %v1369, %v1387
        %v1392 = vmul.f32 %v1371, %v1388
        %v1393 = vmul.f32 %v1373, %v1389
        %v1394 = vpack.c.bf16 %v1391, %v1390
        %v1395 = vpack.c.bf16 %v1393, %v1392
        %1396 = vrot.lane.b32.xlu0 %v930, 112
        %v1397 = vpop.permute.xlu0 %1396
        %1398 = vrot.lane.b32.xlu0 %v931, 112
        %v1399 = vpop.permute.xlu0 %1398
        %v1403 = vsel %vm494, %v1394, 0
        %v1406 = vsel %vm494, %v1395, 0
        %1408 = vmatprep.subr.bf16.mxu0 0
        %1409 = vmatpush1.bf16.msra.mxu0 %v1397
        %1410 = vmatprep.subr.bf16.mxu0 0
        %1411 = vmatpush1.bf16.msra.mxu0 %v1399
        %1412 = vmatprep.subr.bf16.mxu0 0
        %1413 = vmatpush1.bf16.msra.mxu0 0
        %1414 = vmatprep.subr.bf16.mxu0 0
        %1415 = vmatpush1.bf16.msra.mxu0 0
        %1416 = vmatprep.subr.bf16.mxu0 0
        %1417 = vmatpush1.bf16.msra.mxu0 0
        %1418 = vmatprep.subr.bf16.mxu0 0
        %1419 = vmatpush1.bf16.msra.mxu0 0
        %1420 = vmatprep.subr.bf16.mxu0 0
        %1421 = vmatpush1.bf16.msra.mxu0 0
        %1422 = vmatprep.subr.bf16.mxu0 0
        %1423 = vmatpush1.bf16.msra.mxu0 0
        %1424 = vmatprep.subr.bf16.mxu0 0
        %1425 = vmatpush1.bf16.msra.mxu0 0
        %1426 = vmatprep.subr.bf16.mxu0 0
        %1427 = vmatpush1.bf16.msra.mxu0 0
        %1428 = vmatprep.subr.bf16.mxu0 0
        %1429 = vmatpush1.bf16.msra.mxu0 0
        %1430 = vmatprep.subr.bf16.mxu0 0
        %1431 = vmatpush1.bf16.msra.mxu0 0
        %1432 = vmatprep.subr.bf16.mxu0 0
        %1433 = vmatpush1.bf16.msra.mxu0 0
        %1434 = vmatprep.subr.bf16.mxu0 0
        %1435 = vmatpush1.bf16.msra.mxu0 0
        %1436 = vmatprep.subr.bf16.mxu0 0
        %1437 = vmatpush1.bf16.msra.mxu0 0
        %1438 = vmatprep.subr.bf16.mxu0 0
        %1439 = vmatpush1.bf16.msra.mxu0 0
        %1440 = vmatprep.mubr.bf16.mxu0 0
        %1441 = vmatmul.mubr.bf16.gmra.mrb[0].mxu0 %v1403
        %v1442 = vpop.f32.mrb[0].mxu0
        %v1443 = vadd.f32 0.0, %v1442
        %v1444 = vpop.f32.mrb[0].mxu0
        %v1445 = vpop.f32.mrb[0].mxu0
        %v1446 = vadd.f32 0.0, %v1445
        %v1447 = vpop.f32.mrb[0].mxu0
        %1448 = vmatprep.mubr.bf16.mxu0 0
        %1449 = vmatmul.mubr.bf16.gmra.mrb[0].mxu0 %v1406
        %v1450 = vpop.f32.mrb[0].mxu0
        %v1451 = vadd.f32 0.0, %v1450
        %v1452 = vpop.f32.mrb[0].mxu0
        %v1453 = vpop.f32.mrb[0].mxu0
        %v1454 = vadd.f32 0.0, %v1453
        %v1455 = vpop.f32.mrb[0].mxu0
        %1456 = vdwg.mxu0
        %v1457 = vpack.c.bf16 %v1446, %v1443
        %v1458 = vpack.c.bf16 %v1454, %v1451
        %1459 = vrot.lane.b32.xlu0 %v922, 104
        %v1460 = vpop.permute.xlu0 %1459
        %1461 = vrot.lane.b32.xlu0 %v923, 104
        %v1462 = vpop.permute.xlu0 %1461
        %1463 = vrot.lane.b32.xlu0 %v926, 104
        %v1464 = vpop.permute.xlu0 %1463
        %1465 = vrot.lane.b32.xlu0 %v927, 104
        %v1466 = vpop.permute.xlu0 %1465
        %v1468 = vsel %vm932, %v1460, 0
        %v1471 = vsel %vm932, %v1462, 0
        %v1474 = vsel %vm932, %v1464, 0
        %v1477 = vsel %vm932, %v1466, 0
        %1479 = vmatprep.subr.bf16.mxu0 0
        %1480 = vmatpush1.bf16.xpose.msra.mxu0 %v1474
        %1481 = vmatprep.subr.bf16.mxu0 0
        %1482 = vmatpush1.bf16.xpose.msra.mxu0 %v1477
        %1483 = vmatprep.subr.bf16.mxu0 0
        %1484 = vmatpush1.bf16.xpose.msra.mxu0 0
        %1485 = vmatprep.subr.bf16.mxu0 0
        %1486 = vmatpush1.bf16.xpose.msra.mxu0 0
        %1487 = vmatprep.subr.bf16.mxu0 0
        %1488 = vmatpush1.bf16.xpose.msra.mxu0 0
        %1489 = vmatprep.subr.bf16.mxu0 0
        %1490 = vmatpush1.bf16.xpose.msra.mxu0 0
        %1491 = vmatprep.subr.bf16.mxu0 0
        %1492 = vmatpush1.bf16.xpose.msra.mxu0 0
        %1493 = vmatprep.subr.bf16.mxu0 0
        %1494 = vmatpush1.bf16.xpose.msra.mxu0 0
        %1495 = vmatprep.subr.bf16.mxu0 0
        %1496 = vmatpush1.bf16.xpose.msra.mxu0 0
        %1497 = vmatprep.subr.bf16.mxu0 0
        %1498 = vmatpush1.bf16.xpose.msra.mxu0 0
        %1499 = vmatprep.subr.bf16.mxu0 0
        %1500 = vmatpush1.bf16.xpose.msra.mxu0 0
        %1501 = vmatprep.subr.bf16.mxu0 0
        %1502 = vmatpush1.bf16.xpose.msra.mxu0 0
        %1503 = vmatprep.subr.bf16.mxu0 0
        %1504 = vmatpush1.bf16.xpose.msra.mxu0 0
        %1505 = vmatprep.subr.bf16.mxu0 0
        %1506 = vmatpush1.bf16.xpose.msra.mxu0 0
        %1507 = vmatprep.subr.bf16.mxu0 0
        %1508 = vmatpush1.bf16.xpose.msra.mxu0 0
        %1509 = vmatprep.subr.bf16.mxu0 0
        %1510 = vmatpush1.bf16.xpose.msra.mxu0 0
        %1511 = vmatprep.mubr.bf16.mxu0 0
        %1512 = vmatmul.mubr.bf16.gmra.mrb[0].mxu0 %v1468
        %v1513 = vpop.f32.mrb[0].mxu0
        %v1514 = vadd.f32 %v910, %v1513
        %v1515 = vpop.f32.mrb[0].mxu0
        %v1516 = vpop.f32.mrb[0].mxu0
        %v1517 = vadd.f32 %v910, %v1516
        %v1518 = vpop.f32.mrb[0].mxu0
        %1519 = vmatprep.mubr.bf16.mxu0 0
        %1520 = vmatmul.mubr.bf16.gmra.mrb[0].mxu0 %v1471
        %v1521 = vpop.f32.mrb[0].mxu0
        %v1522 = vadd.f32 %v910, %v1521
        %v1523 = vpop.f32.mrb[0].mxu0
        %v1524 = vpop.f32.mrb[0].mxu0
        %v1525 = vadd.f32 %v910, %v1524
        %v1526 = vpop.f32.mrb[0].mxu0
        %1527 = vdwg.mxu0
        %v1528 = vsel %vm494, %v1514, -inf
        %1529 = vmax.xlane.f32.xlu0 %v1528
        %v1530 = vpop.xlane.xlu0 %1529
        %v1531 = vsel %vm494, %v1517, -inf
        %1532 = vmax.xlane.f32.xlu0 %v1531
        %v1533 = vpop.xlane.xlu0 %1532
        %v1534 = vsel %vm494, %v1522, -inf
        %1535 = vmax.xlane.f32.xlu0 %v1534
        %v1536 = vpop.xlane.xlu0 %1535
        %v1537 = vsel %vm494, %v1525, -inf
        %1538 = vmax.xlane.f32.xlu0 %v1537
        %v1539 = vpop.xlane.xlu0 %1538
        %v1540 = vsub.f32 %v1514, %v1530
        %v1541 = vsub.f32 %v1517, %v1533
        %v1542 = vsub.f32 %v1522, %v1536
        %v1543 = vsub.f32 %v1525, %v1539
        %v1544 = vmul.f32 %v1540, 1.442695
        %v1545 = vpow.pop %v1544
        %v1546 = vmul.f32 %v1541, 1.442695
        %v1547 = vpow.pop %v1546
        %v1548 = vmul.f32 %v1542, 1.442695
        %v1549 = vpow.pop %v1548
        %v1550 = vmul.f32 %v1543, 1.442695
        %v1551 = vpow.pop %v1550
        %v1552 = vsel %vm494, %v1545, 0.0
        %1553 = vadd.xlane.f32.xlu0 %v1552
        %v1554 = vpop.xlane.xlu0 %1553
        %v1555 = vsel %vm494, %v1547, 0.0
        %1556 = vadd.xlane.f32.xlu0 %v1555
        %v1557 = vpop.xlane.xlu0 %1556
        %v1558 = vsel %vm494, %v1549, 0.0
        %1559 = vadd.xlane.f32.xlu0 %v1558
        %v1560 = vpop.xlane.xlu0 %1559
        %v1561 = vsel %vm494, %v1551, 0.0
        %1562 = vadd.xlane.f32.xlu0 %v1561
        %v1563 = vpop.xlane.xlu0 %1562
        %v1564 = vrcp.pop %v1554
        %v1565 = vrcp.pop %v1557
        %v1566 = vrcp.pop %v1560
        %v1567 = vrcp.pop %v1563
        %v1568 = vmul.f32 %v1545, %v1564
        %v1569 = vmul.f32 %v1547, %v1565
        %v1570 = vmul.f32 %v1549, %v1566
        %v1571 = vmul.f32 %v1551, %v1567
        %v1572 = vpack.c.bf16 %v1569, %v1568
        %v1573 = vpack.c.bf16 %v1571, %v1570
        %1574 = vrot.lane.b32.xlu0 %v930, 104
        %v1575 = vpop.permute.xlu0 %1574
        %1576 = vrot.lane.b32.xlu0 %v931, 104
        %v1577 = vpop.permute.xlu0 %1576
        %v1581 = vsel %vm494, %v1572, 0
        %v1584 = vsel %vm494, %v1573, 0
        %1586 = vmatprep.subr.bf16.mxu0 0
        %1587 = vmatpush1.bf16.msra.mxu0 %v1575
        %1588 = vmatprep.subr.bf16.mxu0 0
        %1589 = vmatpush1.bf16.msra.mxu0 %v1577
        %1590 = vmatprep.subr.bf16.mxu0 0
        %1591 = vmatpush1.bf16.msra.mxu0 0
        %1592 = vmatprep.subr.bf16.mxu0 0
        %1593 = vmatpush1.bf16.msra.mxu0 0
        %1594 = vmatprep.subr.bf16.mxu0 0
        %1595 = vmatpush1.bf16.msra.mxu0 0
        %1596 = vmatprep.subr.bf16.mxu0 0
        %1597 = vmatpush1.bf16.msra.mxu0 0
        %1598 = vmatprep.subr.bf16.mxu0 0
        %1599 = vmatpush1.bf16.msra.mxu0 0
        %1600 = vmatprep.subr.bf16.mxu0 0
        %1601 = vmatpush1.bf16.msra.mxu0 0
        %1602 = vmatprep.subr.bf16.mxu0 0
        %1603 = vmatpush1.bf16.msra.mxu0 0
        %1604 = vmatprep.subr.bf16.mxu0 0
        %1605 = vmatpush1.bf16.msra.mxu0 0
        %1606 = vmatprep.subr.bf16.mxu0 0
        %1607 = vmatpush1.bf16.msra.mxu0 0
        %1608 = vmatprep.subr.bf16.mxu0 0
        %1609 = vmatpush1.bf16.msra.mxu0 0
        %1610 = vmatprep.subr.bf16.mxu0 0
        %1611 = vmatpush1.bf16.msra.mxu0 0
        %1612 = vmatprep.subr.bf16.mxu0 0
        %1613 = vmatpush1.bf16.msra.mxu0 0
        %1614 = vmatprep.subr.bf16.mxu0 0
        %1615 = vmatpush1.bf16.msra.mxu0 0
        %1616 = vmatprep.subr.bf16.mxu0 0
        %1617 = vmatpush1.bf16.msra.mxu0 0
        %1618 = vmatprep.mubr.bf16.mxu0 0
        %1619 = vmatmul.mubr.bf16.gmra.mrb[0].mxu0 %v1581
        %v1620 = vpop.f32.mrb[0].mxu0
        %v1621 = vadd.f32 0.0, %v1620
        %v1622 = vpop.f32.mrb[0].mxu0
        %v1623 = vpop.f32.mrb[0].mxu0
        %v1624 = vadd.f32 0.0, %v1623
        %v1625 = vpop.f32.mrb[0].mxu0
        %1626 = vmatprep.mubr.bf16.mxu0 0
        %1627 = vmatmul.mubr.bf16.gmra.mrb[0].mxu0 %v1584
        %v1628 = vpop.f32.mrb[0].mxu0
        %v1629 = vadd.f32 0.0, %v1628
        %v1630 = vpop.f32.mrb[0].mxu0
        %v1631 = vpop.f32.mrb[0].mxu0
        %v1632 = vadd.f32 0.0, %v1631
        %v1633 = vpop.f32.mrb[0].mxu0
        %1634 = vdwg.mxu0
        %v1635 = vpack.c.bf16 %v1624, %v1621
        %v1636 = vpack.c.bf16 %v1632, %v1629
        %1639 = vrot.lane.b32.xlu0 %v1279, 8
        %v1640 = vpop.permute.xlu0 %1639
        %1641 = vrot.lane.b32.xlu0 %v1280, 8
        %v1642 = vpop.permute.xlu0 %1641
        %1645 = vrot.lane.b32.xlu0 %v1457, 16
        %v1646 = vpop.permute.xlu0 %1645
        %1647 = vrot.lane.b32.xlu0 %v1458, 16
        %v1648 = vpop.permute.xlu0 %1647
        %1651 = vrot.lane.b32.xlu0 %v1635, 24
        %v1652 = vpop.permute.xlu0 %1651
        %1653 = vrot.lane.b32.xlu0 %v1636, 24
        %v1654 = vpop.permute.xlu0 %1653
        %v1657 = vsel %vm932, %v1095, %v1640
        %v1660 = vsel %vm932, %v1096, %v1642
        %vm1661 = vcmask 130048
        %v1663 = vsel %vm1661, %v1657, %v1646
        %v1665 = vsel %vm1661, %v1660, %v1648
        %vm1666 = vcmask 195584
        %v1668 = vsel %vm1666, %v1663, %v1652
        %v1671 = vsel %vm1666, %v1665, %v1654
        %s1673 = smul.addr %s918, 8
        %s1674 = scalar_lea.vmem [#allocation2], %s1673
        %1675 = vst.msk [vmem:[%s1674] sm:$0xff] %vm494, %v1668
        %1676 = vst.msk [vmem:[%s1674 + $0x8] sm:$0xff] %vm494, %v1671
      $region61: #{vit_forward.4} parent=51 // loop_footer
        %s916 = sadd.s32 1, %s912
      $region62: #{vit_forward.4} parent=51 // loop_footer_branch
        %911 = sbr.rel target = $region58
      $region63: #{vit_forward.4} parent=51 // loop_exit
        _
      %v1677 = vld [vmem:[%s461] sm:$0xff]
      %v1678 = vld [vmem:[%s461 + $0x8] sm:$0xff]
      %v1679 = vld [vmem:[%s461 + $0x10] sm:$0xff]
      %v1680 = vld [vmem:[%s461 + $0x18] sm:$0xff]
      %v1681 = vld [vmem:[%s461 + $0x20] sm:$0xff]
      %v1682 = vld [vmem:[%s461 + $0x28] sm:$0xff]
      %v1683 = vld [vmem:[%s461 + $0x30] sm:$0xff]
      %v1684 = vld [vmem:[%s461 + $0x38] sm:$0xff]
      %v1685 = vld [vmem:[#allocation2] sm:$0xff]
      %v1686 = vld [vmem:[#allocation2 + $0x8] sm:$0xff]
      %v1687 = vld [vmem:[#allocation2 + $0x10] sm:$0xff]
      %v1688 = vld [vmem:[#allocation2 + $0x18] sm:$0xff]
      %v1689 = vld [vmem:[%s445] sm:$0xf]
      %v1690 = vld [vmem:[%s445 + $0x4] sm:$0xf]
      %v1691 = vld [vmem:[%s445 + $0x8] sm:$0xf]
      %v1692 = vld [vmem:[%s445 + $0xc] sm:$0xf]
      %v1697 = vunpack.c.l.b16 %v1689
      %v1698 = vunpack.c.l.b16 %v1690
      %v1699 = vunpack.c.l.b16 %v1691
      %v1700 = vunpack.c.l.b16 %v1692
      %v1701 = vpack.c.b16 %v1698, %v1697
      %v1702 = vpack.c.b16 %v1700, %v1699
      %v1706 = vsel %vm494, %v1685, 0
      %v1709 = vsel %vm494, %v1686, 0
      %v1712 = vsel %vm494, %v1687, 0
      %v1715 = vsel %vm494, %v1688, 0
      %1717 = vmatprep.subr.bf16.mxu0 0
      %1718 = vmatpush1.bf16.msra.mxu0 %v1701
      %1719 = vmatprep.subr.bf16.mxu0 0
      %1720 = vmatpush1.bf16.msra.mxu0 %v1702
      %1721 = vmatprep.subr.bf16.mxu0 0
      %1722 = vmatpush1.bf16.msra.mxu0 0
      %1723 = vmatprep.subr.bf16.mxu0 0
      %1724 = vmatpush1.bf16.msra.mxu0 0
      %1725 = vmatprep.subr.bf16.mxu0 0
      %1726 = vmatpush1.bf16.msra.mxu0 0
      %1727 = vmatprep.subr.bf16.mxu0 0
      %1728 = vmatpush1.bf16.msra.mxu0 0
      %1729 = vmatprep.subr.bf16.mxu0 0
      %1730 = vmatpush1.bf16.msra.mxu0 0
      %1731 = vmatprep.subr.bf16.mxu0 0
      %1732 = vmatpush1.bf16.msra.mxu0 0
      %1733 = vmatprep.subr.bf16.mxu0 0
      %1734 = vmatpush1.bf16.msra.mxu0 0
      %1735 = vmatprep.subr.bf16.mxu0 0
      %1736 = vmatpush1.bf16.msra.mxu0 0
      %1737 = vmatprep.subr.bf16.mxu0 0
      %1738 = vmatpush1.bf16.msra.mxu0 0
      %1739 = vmatprep.subr.bf16.mxu0 0
      %1740 = vmatpush1.bf16.msra.mxu0 0
      %1741 = vmatprep.subr.bf16.mxu0 0
      %1742 = vmatpush1.bf16.msra.mxu0 0
      %1743 = vmatprep.subr.bf16.mxu0 0
      %1744 = vmatpush1.bf16.msra.mxu0 0
      %1745 = vmatprep.subr.bf16.mxu0 0
      %1746 = vmatpush1.bf16.msra.mxu0 0
      %1747 = vmatprep.subr.bf16.mxu0 0
      %1748 = vmatpush1.bf16.msra.mxu0 0
      %1749 = vmatprep.mubr.bf16.mxu0 0
      %1750 = vmatmul.mubr.bf16.gmra.mrb[0].mxu0 %v1706
      %v1751 = vpop.f32.mrb[0].mxu0
      %v1752 = vadd.f32 0.0, %v1751
      %v1753 = vpop.f32.mrb[0].mxu0
      %v1754 = vpop.f32.mrb[0].mxu0
      %v1755 = vadd.f32 0.0, %v1754
      %v1756 = vpop.f32.mrb[0].mxu0
      %1757 = vmatprep.mubr.bf16.mxu0 0
      %1758 = vmatmul.mubr.bf16.gmra.mrb[0].mxu0 %v1709
      %v1759 = vpop.f32.mrb[0].mxu0
      %v1760 = vadd.f32 0.0, %v1759
      %v1761 = vpop.f32.mrb[0].mxu0
      %v1762 = vpop.f32.mrb[0].mxu0
      %v1763 = vadd.f32 0.0, %v1762
      %v1764 = vpop.f32.mrb[0].mxu0
      %1765 = vmatprep.mubr.bf16.mxu0 0
      %1766 = vmatmul.mubr.bf16.gmra.mrb[0].mxu0 %v1712
      %v1767 = vpop.f32.mrb[0].mxu0
      %v1768 = vadd.f32 0.0, %v1767
      %v1769 = vpop.f32.mrb[0].mxu0
      %v1770 = vpop.f32.mrb[0].mxu0
      %v1771 = vadd.f32 0.0, %v1770
      %v1772 = vpop.f32.mrb[0].mxu0
      %1773 = vmatprep.mubr.bf16.mxu0 0
      %1774 = vmatmul.mubr.bf16.gmra.mrb[0].mxu0 %v1715
      %v1775 = vpop.f32.mrb[0].mxu0
      %v1776 = vadd.f32 0.0, %v1775
      %v1777 = vpop.f32.mrb[0].mxu0
      %v1778 = vpop.f32.mrb[0].mxu0
      %v1779 = vadd.f32 0.0, %v1778
      %v1780 = vpop.f32.mrb[0].mxu0
      %1781 = vdwg.mxu0
      %v1782 = vadd.f32 %v1677, %v1752
      %v1783 = vadd.f32 %v1678, %v1755
      %v1784 = vadd.f32 %v1679, %v1760
      %v1785 = vadd.f32 %v1680, %v1763
      %v1786 = vadd.f32 %v1681, %v1768
      %v1787 = vadd.f32 %v1682, %v1771
      %v1788 = vadd.f32 %v1683, %v1776
      %v1789 = vadd.f32 %v1684, %v1779
      %v1790 = vlaneseq
      %v1791 = vshrl.u32 %v1790, 7
      %v1792 = vsub.s32 2, %v1791
      %v1793 = vrot.slane %v493, %v1792
      %v1794 = vadd.f32 %v1782, %v1793
      %v1795 = vadd.f32 %v1783, %v1793
      %v1796 = vadd.f32 %v1784, %v1793
      %v1797 = vadd.f32 %v1785, %v1793
      %v1798 = vadd.f32 %v1786, %v1793
      %v1799 = vadd.f32 %v1787, %v1793
      %v1800 = vadd.f32 %v1788, %v1793
      %v1801 = vadd.f32 %v1789, %v1793
      %v1802 = vsel %vm494, %v1794, 0.0
      %1803 = vadd.xlane.f32.xlu0 %v1802
      %v1804 = vpop.xlane.xlu0 %1803
      %v1805 = vsel %vm494, %v1795, 0.0
      %1806 = vadd.xlane.f32.xlu0 %v1805
      %v1807 = vpop.xlane.xlu0 %1806
      %v1808 = vsel %vm494, %v1796, 0.0
      %1809 = vadd.xlane.f32.xlu0 %v1808
      %v1810 = vpop.xlane.xlu0 %1809
      %v1811 = vsel %vm494, %v1797, 0.0
      %1812 = vadd.xlane.f32.xlu0 %v1811
      %v1813 = vpop.xlane.xlu0 %1812
      %v1814 = vsel %vm494, %v1798, 0.0
      %1815 = vadd.xlane.f32.xlu0 %v1814
      %v1816 = vpop.xlane.xlu0 %1815
      %v1817 = vsel %vm494, %v1799, 0.0
      %1818 = vadd.xlane.f32.xlu0 %v1817
      %v1819 = vpop.xlane.xlu0 %1818
      %v1820 = vsel %vm494, %v1800, 0.0
      %1821 = vadd.xlane.f32.xlu0 %v1820
      %v1822 = vpop.xlane.xlu0 %1821
      %v1823 = vsel %vm494, %v1801, 0.0
      %1824 = vadd.xlane.f32.xlu0 %v1823
      %v1825 = vpop.xlane.xlu0 %1824
      %v1826 = vmul.f32 %v1804, %v519
      %v1827 = vmul.f32 %v1807, %v519
      %v1828 = vmul.f32 %v1810, %v519
      %v1829 = vmul.f32 %v1813, %v519
      %v1830 = vmul.f32 %v1816, %v519
      %v1831 = vmul.f32 %v1819, %v519
      %v1832 = vmul.f32 %v1822, %v519
      %v1833 = vmul.f32 %v1825, %v519
      %v1834 = vsub.f32 %v1794, %v1826
      %v1835 = vsub.f32 %v1795, %v1827
      %v1836 = vsub.f32 %v1796, %v1828
      %v1837 = vsub.f32 %v1797, %v1829
      %v1838 = vsub.f32 %v1798, %v1830
      %v1839 = vsub.f32 %v1799, %v1831
      %v1840 = vsub.f32 %v1800, %v1832
      %v1841 = vsub.f32 %v1801, %v1833
      %v1842 = vmul.f32 %v1834, %v1834
      %v1843 = vmul.f32 %v1835, %v1835
      %v1844 = vmul.f32 %v1836, %v1836
      %v1845 = vmul.f32 %v1837, %v1837
      %v1846 = vmul.f32 %v1838, %v1838
      %v1847 = vmul.f32 %v1839, %v1839
      %v1848 = vmul.f32 %v1840, %v1840
      %v1849 = vmul.f32 %v1841, %v1841
      %v1850 = vsel %vm494, %v1842, 0.0
      %1851 = vadd.xlane.f32.xlu0 %v1850
      %v1852 = vpop.xlane.xlu0 %1851
      %v1853 = vsel %vm494, %v1843, 0.0
      %1854 = vadd.xlane.f32.xlu0 %v1853
      %v1855 = vpop.xlane.xlu0 %1854
      %v1856 = vsel %vm494, %v1844, 0.0
      %1857 = vadd.xlane.f32.xlu0 %v1856
      %v1858 = vpop.xlane.xlu0 %1857
      %v1859 = vsel %vm494, %v1845, 0.0
      %1860 = vadd.xlane.f32.xlu0 %v1859
      %v1861 = vpop.xlane.xlu0 %1860
      %v1862 = vsel %vm494, %v1846, 0.0
      %1863 = vadd.xlane.f32.xlu0 %v1862
      %v1864 = vpop.xlane.xlu0 %1863
      %v1865 = vsel %vm494, %v1847, 0.0
      %1866 = vadd.xlane.f32.xlu0 %v1865
      %v1867 = vpop.xlane.xlu0 %1866
      %v1868 = vsel %vm494, %v1848, 0.0
      %1869 = vadd.xlane.f32.xlu0 %v1868
      %v1870 = vpop.xlane.xlu0 %1869
      %v1871 = vsel %vm494, %v1849, 0.0
      %1872 = vadd.xlane.f32.xlu0 %v1871
      %v1873 = vpop.xlane.xlu0 %1872
      %v1874 = vmul.f32 %v1852, %v519
      %v1875 = vmul.f32 %v1855, %v519
      %v1876 = vmul.f32 %v1858, %v519
      %v1877 = vmul.f32 %v1861, %v519
      %v1878 = vmul.f32 %v1864, %v519
      %v1879 = vmul.f32 %v1867, %v519
      %v1880 = vmul.f32 %v1870, %v519
      %v1881 = vmul.f32 %v1873, %v519
      %v1882 = vadd.f32 %v1874, 1e-05
      %v1883 = vadd.f32 %v1875, 1e-05
      %v1884 = vadd.f32 %v1876, 1e-05
      %v1885 = vadd.f32 %v1877, 1e-05
      %v1886 = vadd.f32 %v1878, 1e-05
      %v1887 = vadd.f32 %v1879, 1e-05
      %v1888 = vadd.f32 %v1880, 1e-05
      %v1889 = vadd.f32 %v1881, 1e-05
      %v1890 = vrsqrt.pop %v1882
      %v1891 = vrsqrt.pop %v1883
      %v1892 = vrsqrt.pop %v1884
      %v1893 = vrsqrt.pop %v1885
      %v1894 = vrsqrt.pop %v1886
      %v1895 = vrsqrt.pop %v1887
      %v1896 = vrsqrt.pop %v1888
      %v1897 = vrsqrt.pop %v1889
      %v1898 = vmul.f32 %v1834, %v1890
      %v1899 = vmul.f32 %v1835, %v1891
      %v1900 = vmul.f32 %v1836, %v1892
      %v1901 = vmul.f32 %v1837, %v1893
      %v1902 = vmul.f32 %v1838, %v1894
      %v1903 = vmul.f32 %v1839, %v1895
      %v1904 = vmul.f32 %v1840, %v1896
      %v1905 = vmul.f32 %v1841, %v1897
      %v1906 = vlaneseq
      %v1907 = vshrl.u32 %v1906, 7
      %v1908 = vsub.s32 3, %v1907
      %v1909 = vrot.slane %v493, %v1908
      %v1910 = vmul.f32 %v1898, %v1909
      %v1911 = vmul.f32 %v1899, %v1909
      %v1912 = vmul.f32 %v1900, %v1909
      %v1913 = vmul.f32 %v1901, %v1909
      %v1914 = vmul.f32 %v1902, %v1909
      %v1915 = vmul.f32 %v1903, %v1909
      %v1916 = vmul.f32 %v1904, %v1909
      %v1917 = vmul.f32 %v1905, %v1909
      %v1918 = vlaneseq
      %v1919 = vshrl.u32 %v1918, 7
      %v1920 = vsub.s32 4, %v1919
      %v1921 = vrot.slane %v493, %v1920
      %v1922 = vadd.f32 %v1910, %v1921
      %v1923 = vadd.f32 %v1911, %v1921
      %v1924 = vadd.f32 %v1912, %v1921
      %v1925 = vadd.f32 %v1913, %v1921
      %v1926 = vadd.f32 %v1914, %v1921
      %v1927 = vadd.f32 %v1915, %v1921
      %v1928 = vadd.f32 %v1916, %v1921
      %v1929 = vadd.f32 %v1917, %v1921
      %v1930 = vpack.c.bf16 %v1923, %v1922
      %v1931 = vpack.c.bf16 %v1925, %v1924
      %v1932 = vpack.c.bf16 %v1927, %v1926
      %v1933 = vpack.c.bf16 %v1929, %v1928
      %v1934 = vld [vmem:[%s450] sm:$0xf]
      %v1935 = vld [vmem:[%s450 + $0x4] sm:$0xf]
      %v1936 = vld [vmem:[%s450 + $0x8] sm:$0xf]
      %v1937 = vld [vmem:[%s450 + $0xc] sm:$0xf]
      %v1938 = vlaneseq
      %v1939 = vshrl.u32 %v1938, 7
      %v1940 = vsub.s32 6, %v1939
      %v1941 = vrot.slane %v493, %v1940
      %v1946 = vunpack.c.l.b16 %v1934
      %v1947 = vunpack.c.l.b16 %v1935
      %v1948 = vunpack.c.l.b16 %v1936
      %v1949 = vunpack.c.l.b16 %v1937
      %v1950 = vpack.c.b16 %v1947, %v1946
      %v1951 = vpack.c.b16 %v1949, %v1948
      %v1955 = vsel %vm494, %v1930, 0
      %v1958 = vsel %vm494, %v1931, 0
      %v1961 = vsel %vm494, %v1932, 0
      %v1964 = vsel %vm494, %v1933, 0
      %1966 = vmatprep.subr.bf16.mxu0 0
      %1967 = vmatpush1.bf16.msra.mxu0 %v1950
      %1968 = vmatprep.subr.bf16.mxu0 0
      %1969 = vmatpush1.bf16.msra.mxu0 %v1951
      %1970 = vmatprep.subr.bf16.mxu0 0
      %1971 = vmatpush1.bf16.msra.mxu0 0
      %1972 = vmatprep.subr.bf16.mxu0 0
      %1973 = vmatpush1.bf16.msra.mxu0 0
      %1974 = vmatprep.subr.bf16.mxu0 0
      %1975 = vmatpush1.bf16.msra.mxu0 0
      %1976 = vmatprep.subr.bf16.mxu0 0
      %1977 = vmatpush1.bf16.msra.mxu0 0
      %1978 = vmatprep.subr.bf16.mxu0 0
      %1979 = vmatpush1.bf16.msra.mxu0 0
      %1980 = vmatprep.subr.bf16.mxu0 0
      %1981 = vmatpush1.bf16.msra.mxu0 0
      %1982 = vmatprep.subr.bf16.mxu0 0
      %1983 = vmatpush1.bf16.msra.mxu0 0
      %1984 = vmatprep.subr.bf16.mxu0 0
      %1985 = vmatpush1.bf16.msra.mxu0 0
      %1986 = vmatprep.subr.bf16.mxu0 0
      %1987 = vmatpush1.bf16.msra.mxu0 0
      %1988 = vmatprep.subr.bf16.mxu0 0
      %1989 = vmatpush1.bf16.msra.mxu0 0
      %1990 = vmatprep.subr.bf16.mxu0 0
      %1991 = vmatpush1.bf16.msra.mxu0 0
      %1992 = vmatprep.subr.bf16.mxu0 0
      %1993 = vmatpush1.bf16.msra.mxu0 0
      %1994 = vmatprep.subr.bf16.mxu0 0
      %1995 = vmatpush1.bf16.msra.mxu0 0
      %1996 = vmatprep.subr.bf16.mxu0 0
      %1997 = vmatpush1.bf16.msra.mxu0 0
      %1998 = vmatprep.mubr.bf16.mxu0 0
      %1999 = vmatmul.mubr.bf16.gmra.mrb[0].mxu0 %v1955
      %v2000 = vpop.f32.mrb[0].mxu0
      %v2001 = vadd.f32 %v1941, %v2000
      %v2002 = vpop.f32.mrb[0].mxu0
      %v2003 = vpop.f32.mrb[0].mxu0
      %v2004 = vadd.f32 %v1941, %v2003
      %v2005 = vpop.f32.mrb[0].mxu0
      %2006 = vmatprep.mubr.bf16.mxu0 0
      %2007 = vmatmul.mubr.bf16.gmra.mrb[0].mxu0 %v1958
      %v2008 = vpop.f32.mrb[0].mxu0
      %v2009 = vadd.f32 %v1941, %v2008
      %v2010 = vpop.f32.mrb[0].mxu0
      %v2011 = vpop.f32.mrb[0].mxu0
      %v2012 = vadd.f32 %v1941, %v2011
      %v2013 = vpop.f32.mrb[0].mxu0
      %2014 = vmatprep.mubr.bf16.mxu0 0
      %2015 = vmatmul.mubr.bf16.gmra.mrb[0].mxu0 %v1961
      %v2016 = vpop.f32.mrb[0].mxu0
      %v2017 = vadd.f32 %v1941, %v2016
      %v2018 = vpop.f32.mrb[0].mxu0
      %v2019 = vpop.f32.mrb[0].mxu0
      %v2020 = vadd.f32 %v1941, %v2019
      %v2021 = vpop.f32.mrb[0].mxu0
      %2022 = vmatprep.mubr.bf16.mxu0 0
      %2023 = vmatmul.mubr.bf16.gmra.mrb[0].mxu0 %v1964
      %v2024 = vpop.f32.mrb[0].mxu0
      %v2025 = vadd.f32 %v1941, %v2024
      %v2026 = vpop.f32.mrb[0].mxu0
      %v2027 = vpop.f32.mrb[0].mxu0
      %v2028 = vadd.f32 %v1941, %v2027
      %v2029 = vpop.f32.mrb[0].mxu0
      %2030 = vdwg.mxu0
      %v2031 = vmul.f32 %v2001, 0.5
      %v2032 = vmul.f32 %v2004, 0.5
      %v2033 = vmul.f32 %v2009, 0.5
      %v2034 = vmul.f32 %v2012, 0.5
      %v2035 = vmul.f32 %v2017, 0.5
      %v2036 = vmul.f32 %v2020, 0.5
      %v2037 = vmul.f32 %v2025, 0.5
      %v2038 = vmul.f32 %v2028, 0.5
      %v2039 = vmul.f32 %v2001, %v2001
      %v2040 = vmul.f32 %v2004, %v2004
      %v2041 = vmul.f32 %v2009, %v2009
      %v2042 = vmul.f32 %v2012, %v2012
      %v2043 = vmul.f32 %v2017, %v2017
      %v2044 = vmul.f32 %v2020, %v2020
      %v2045 = vmul.f32 %v2025, %v2025
      %v2046 = vmul.f32 %v2028, %v2028
      %v2047 = vmul.f32 %v2039, %v2001
      %v2048 = vmul.f32 %v2040, %v2004
      %v2049 = vmul.f32 %v2041, %v2009
      %v2050 = vmul.f32 %v2042, %v2012
      %v2051 = vmul.f32 %v2043, %v2017
      %v2052 = vmul.f32 %v2044, %v2020
      %v2053 = vmul.f32 %v2045, %v2025
      %v2054 = vmul.f32 %v2046, %v2028
      %v2055 = vmul.f32 %v2047, 0.044715
      %v2056 = vmul.f32 %v2048, 0.044715
      %v2057 = vmul.f32 %v2049, 0.044715
      %v2058 = vmul.f32 %v2050, 0.044715
      %v2059 = vmul.f32 %v2051, 0.044715
      %v2060 = vmul.f32 %v2052, 0.044715
      %v2061 = vmul.f32 %v2053, 0.044715
      %v2062 = vmul.f32 %v2054, 0.044715
      %v2063 = vadd.f32 %v2001, %v2055
      %v2064 = vadd.f32 %v2004, %v2056
      %v2065 = vadd.f32 %v2009, %v2057
      %v2066 = vadd.f32 %v2012, %v2058
      %v2067 = vadd.f32 %v2017, %v2059
      %v2068 = vadd.f32 %v2020, %v2060
      %v2069 = vadd.f32 %v2025, %v2061
      %v2070 = vadd.f32 %v2028, %v2062
      %v2071 = vmul.f32 %v2063, 0.7978846
      %v2072 = vmul.f32 %v2064, 0.7978846
      %v2073 = vmul.f32 %v2065, 0.7978846
      %v2074 = vmul.f32 %v2066, 0.7978846
      %v2075 = vmul.f32 %v2067, 0.7978846
      %v2076 = vmul.f32 %v2068, 0.7978846
      %v2077 = vmul.f32 %v2069, 0.7978846
      %v2078 = vmul.f32 %v2070, 0.7978846
      %v2079 = vtanh.pop %v2071
      %v2080 = vtanh.pop %v2072
      %v2081 = vtanh.pop %v2073
      %v2082 = vtanh.pop %v2074
      %v2083 = vtanh.pop %v2075
      %v2084 = vtanh.pop %v2076
      %v2085 = vtanh.pop %v2077
      %v2086 = vtanh.pop %v2078
      %v2087 = vadd.f32 %v2079, 1.0
      %v2088 = vadd.f32 %v2080, 1.0
      %v2089 = vadd.f32 %v2081, 1.0
      %v2090 = vadd.f32 %v2082, 1.0
      %v2091 = vadd.f32 %v2083, 1.0
      %v2092 = vadd.f32 %v2084, 1.0
      %v2093 = vadd.f32 %v2085, 1.0
      %v2094 = vadd.f32 %v2086, 1.0
      %v2095 = vmul.f32 %v2031, %v2087
      %v2096 = vmul.f32 %v2032, %v2088
      %v2097 = vmul.f32 %v2033, %v2089
      %v2098 = vmul.f32 %v2034, %v2090
      %v2099 = vmul.f32 %v2035, %v2091
      %v2100 = vmul.f32 %v2036, %v2092
      %v2101 = vmul.f32 %v2037, %v2093
      %v2102 = vmul.f32 %v2038, %v2094
      %v2103 = vpack.c.bf16 %v2096, %v2095
      %v2104 = vpack.c.bf16 %v2098, %v2097
      %v2105 = vpack.c.bf16 %v2100, %v2099
      %v2106 = vpack.c.bf16 %v2102, %v2101
      %v2107 = vld [vmem:[%s455] sm:$0xf]
      %v2108 = vld [vmem:[%s455 + $0x4] sm:$0xf]
      %v2109 = vld [vmem:[%s455 + $0x8] sm:$0xf]
      %v2110 = vld [vmem:[%s455 + $0xc] sm:$0xf]
      %v2111 = vld [vmem:[%s455 + $0x10] sm:$0xf]
      %v2112 = vld [vmem:[%s455 + $0x14] sm:$0xf]
      %v2113 = vld [vmem:[%s455 + $0x18] sm:$0xf]
      %v2114 = vld [vmem:[%s455 + $0x1c] sm:$0xf]
      %v2123 = vunpack.c.l.b16 %v2107
      %v2124 = vunpack.c.l.b16 %v2108
      %v2125 = vunpack.c.l.b16 %v2109
      %v2126 = vunpack.c.l.b16 %v2110
      %v2127 = vunpack.c.l.b16 %v2111
      %v2128 = vunpack.c.l.b16 %v2112
      %v2129 = vunpack.c.l.b16 %v2113
      %v2130 = vunpack.c.l.b16 %v2114
      %v2131 = vpack.c.b16 %v2124, %v2123
      %v2132 = vpack.c.b16 %v2126, %v2125
      %v2133 = vpack.c.b16 %v2128, %v2127
      %v2134 = vpack.c.b16 %v2130, %v2129
      %vm2139 = vcmask 523264
      %v2141 = vsel %vm2139, %v2103, 0
      %v2144 = vsel %vm2139, %v2104, 0
      %v2147 = vsel %vm2139, %v2105, 0
      %v2150 = vsel %vm2139, %v2106, 0
      %2152 = vmatprep.subr.bf16.mxu0 0
      %2153 = vmatpush1.bf16.msra.mxu0 %v2131
      %2154 = vmatprep.subr.bf16.mxu0 0
      %2155 = vmatpush1.bf16.msra.mxu0 %v2132
      %2156 = vmatprep.subr.bf16.mxu0 0
      %2157 = vmatpush1.bf16.msra.mxu0 %v2133
      %2158 = vmatprep.subr.bf16.mxu0 0
      %2159 = vmatpush1.bf16.msra.mxu0 %v2134
      %2160 = vmatprep.subr.bf16.mxu0 0
      %2161 = vmatpush1.bf16.msra.mxu0 0
      %2162 = vmatprep.subr.bf16.mxu0 0
      %2163 = vmatpush1.bf16.msra.mxu0 0
      %2164 = vmatprep.subr.bf16.mxu0 0
      %2165 = vmatpush1.bf16.msra.mxu0 0
      %2166 = vmatprep.subr.bf16.mxu0 0
      %2167 = vmatpush1.bf16.msra.mxu0 0
      %2168 = vmatprep.subr.bf16.mxu0 0
      %2169 = vmatpush1.bf16.msra.mxu0 0
      %2170 = vmatprep.subr.bf16.mxu0 0
      %2171 = vmatpush1.bf16.msra.mxu0 0
      %2172 = vmatprep.subr.bf16.mxu0 0
      %2173 = vmatpush1.bf16.msra.mxu0 0
      %2174 = vmatprep.subr.bf16.mxu0 0
      %2175 = vmatpush1.bf16.msra.mxu0 0
      %2176 = vmatprep.subr.bf16.mxu0 0
      %2177 = vmatpush1.bf16.msra.mxu0 0
      %2178 = vmatprep.subr.bf16.mxu0 0
      %2179 = vmatpush1.bf16.msra.mxu0 0
      %2180 = vmatprep.subr.bf16.mxu0 0
      %2181 = vmatpush1.bf16.msra.mxu0 0
      %2182 = vmatprep.subr.bf16.mxu0 0
      %2183 = vmatpush1.bf16.msra.mxu0 0
      %2184 = vmatprep.mubr.bf16.mxu0 0
      %2185 = vmatmul.mubr.bf16.gmra.mrb[0].mxu0 %v2141
      %v2186 = vpop.f32.mrb[0].mxu0
      %v2187 = vadd.f32 0.0, %v2186
      %v2188 = vpop.f32.mrb[0].mxu0
      %v2189 = vpop.f32.mrb[0].mxu0
      %v2190 = vadd.f32 0.0, %v2189
      %v2191 = vpop.f32.mrb[0].mxu0
      %2192 = vmatprep.mubr.bf16.mxu0 0
      %2193 = vmatmul.mubr.bf16.gmra.mrb[0].mxu0 %v2144
      %v2194 = vpop.f32.mrb[0].mxu0
      %v2195 = vadd.f32 0.0, %v2194
      %v2196 = vpop.f32.mrb[0].mxu0
      %v2197 = vpop.f32.mrb[0].mxu0
      %v2198 = vadd.f32 0.0, %v2197
      %v2199 = vpop.f32.mrb[0].mxu0
      %2200 = vmatprep.mubr.bf16.mxu0 0
      %2201 = vmatmul.mubr.bf16.gmra.mrb[0].mxu0 %v2147
      %v2202 = vpop.f32.mrb[0].mxu0
      %v2203 = vadd.f32 0.0, %v2202
      %v2204 = vpop.f32.mrb[0].mxu0
      %v2205 = vpop.f32.mrb[0].mxu0
      %v2206 = vadd.f32 0.0, %v2205
      %v2207 = vpop.f32.mrb[0].mxu0
      %2208 = vmatprep.mubr.bf16.mxu0 0
      %2209 = vmatmul.mubr.bf16.gmra.mrb[0].mxu0 %v2150
      %v2210 = vpop.f32.mrb[0].mxu0
      %v2211 = vadd.f32 0.0, %v2210
      %v2212 = vpop.f32.mrb[0].mxu0
      %v2213 = vpop.f32.mrb[0].mxu0
      %v2214 = vadd.f32 0.0, %v2213
      %v2215 = vpop.f32.mrb[0].mxu0
      %2216 = vdwg.mxu0
      %v2217 = vadd.f32 %v1794, %v2187
      %v2218 = vadd.f32 %v1795, %v2190
      %v2219 = vadd.f32 %v1796, %v2195
      %v2220 = vadd.f32 %v1797, %v2198
      %v2221 = vadd.f32 %v1798, %v2203
      %v2222 = vadd.f32 %v1799, %v2206
      %v2223 = vadd.f32 %v1800, %v2211
      %v2224 = vadd.f32 %v1801, %v2214
      %v2225 = vlaneseq
      %v2226 = vshrl.u32 %v2225, 7
      %v2227 = vsub.s32 5, %v2226
      %v2228 = vrot.slane %v493, %v2227
      %v2229 = vadd.f32 %v2217, %v2228
      %v2230 = vadd.f32 %v2218, %v2228
      %v2231 = vadd.f32 %v2219, %v2228
      %v2232 = vadd.f32 %v2220, %v2228
      %v2233 = vadd.f32 %v2221, %v2228
      %v2234 = vadd.f32 %v2222, %v2228
      %v2235 = vadd.f32 %v2223, %v2228
      %v2236 = vadd.f32 %v2224, %v2228
      %2237 = vst.msk [vmem:[%s461] sm:$0xff] %vm494, %v2229
      %2238 = vst.msk [vmem:[%s461 + $0x8] sm:$0xff] %vm494, %v2230
      %2239 = vst.msk [vmem:[%s461 + $0x10] sm:$0xff] %vm494, %v2231
      %2240 = vst.msk [vmem:[%s461 + $0x18] sm:$0xff] %vm494, %v2232
      %2241 = vst.msk [vmem:[%s461 + $0x20] sm:$0xff] %vm494, %v2233
      %2242 = vst.msk [vmem:[%s461 + $0x28] sm:$0xff] %vm494, %v2234
      %2243 = vst.msk [vmem:[%s461 + $0x30] sm:$0xff] %vm494, %v2235
      %2244 = vst.msk [vmem:[%s461 + $0x38] sm:$0xff] %vm494, %v2236
      %s2245 = smul.u32 2, %s23
      %p2246 = scmp.lt.s32.totalorder %s2245, 1
      %s2247 = scalar_select %p2246, %s2245, 1
      %s2248 = smul.addr %s2247, 4
      %s2249 = smul.addr %s2248, 8
      %s2250 = scalar_lea.vmem %s8, %s2249
      // Predicated region
      $region64: #{vit_forward.4} parent=51 // pred_check
        %p2251 = pneg %p257
      $region65: #{vit_forward.4} parent=51 // pred_check_branch
        %2253 = sbr.rel (%p2251) target = $region67
      $region66: #{vit_forward.4} parent=51 // pred_region
        %s2254 = smul.u32 2, %s23
      $region67: #{vit_forward.4} parent=51 // pred_fallthru
        _
      // Predicated region
      $region68: #{vit_forward.4} parent=51 // pred_check
        %p2255 = pneg %p257
      $region69: #{vit_forward.4} parent=51 // pred_check_branch
        %2257 = sbr.rel (%p2255) target = $region71
      $region70: #{vit_forward.4} parent=51 // pred_region
        %s2258 = smul.u32 2, %s23
        %p2259 = scmp.lt.s32.totalorder %s2258, 1
        %s2260 = scalar_select %p2259, %s2258, 1
        %s2261 = smul.addr %s2260, 4
        %s2262 = smul.addr %s2261, 8
        %s2263 = scalar_lea.vmem %s8, %s2262
      $region71: #{vit_forward.4} parent=51 // pred_fallthru
        _
    $region52: #{vit_forward.4} parent=5 // pred_fallthru
      _
    %p2264 = scmp.le.s32.totalorder 2, %s14
    // Predicated region
    $region72: #{vit_forward.4} parent=5 // pred_check
      %p2265 = pneg %p2264
    $region73: #{vit_forward.4} parent=5 // pred_check_branch
      %2267 = sbr.rel (%p2265) target = $region75
    $region74: #{vit_forward.4} parent=5 // pred_region
      %s2268 = ssub.s32 %s14, 2
    $region75: #{vit_forward.4} parent=5 // pred_fallthru
      _
  $region6: #{vit_forward.4} parent=0 // loop_footer
    %s18 = sadd.s32 1, %s14
  $region7: #{vit_forward.4} parent=0 // loop_footer_branch
    %13 = sbr.rel target = $region3
  $region8: #{vit_forward.4} parent=0 // loop_exit
    _

</llo_original>
